<compile_context>
chip_gen: v5e
topology: v5e:2x2
jax: 0.10.0
libtpu: 0.0.40
codegen_flags: <defaults>
</compile_context>

<pallas_src>
import math
from functools import partial

import jax
import jax.numpy as jnp
from jax import lax
from jax.experimental import pallas as pl
from jax.experimental.pallas import tpu as pltpu

_NEG = -1e30  # additive mask (f32) for cross-batch attention entries


# ---------------------------------------------------------------------------
# Helpers
# ---------------------------------------------------------------------------
def _full_spec(shape):
    """Whole-array block, no grid (legal: block == full array)."""
    return pl.BlockSpec(shape, lambda: (0,) * len(shape))


def _layernorm(x, g, b, eps):
    mu = jnp.mean(x, axis=-1, keepdims=True)
    var = jnp.mean((x - mu) ** 2, axis=-1, keepdims=True)
    return (x - mu) * lax.rsqrt(var + eps) * g + b


def _bdot(a_f32, w_bf16):
    """f32 activations x bf16 weights on the MXU, f32 accumulation."""
    return jnp.dot(a_f32.astype(jnp.bfloat16), w_bf16,
                   preferred_element_type=jnp.float32)


# ---------------------------------------------------------------------------
# Kernel 1: input MLP (Linear -> BN(eval) -> ReLU -> Linear) + positional enc.
# pe is passed as (S, d_model) and broadcast over the batch dim in-kernel
# (rows are s-major: row = s*B + b), so no (S*B, d_model) pe_flat in HBM.
# ---------------------------------------------------------------------------
def _input_mlp_pe_kernel(x_ref, w1_ref, b1_ref, s_ref, t_ref, w2_ref, b2_ref,
                         pe_ref, o_ref, *, S, B):
    h = _bdot(x_ref[...], w1_ref[...]) + b1_ref[...]
    h = jnp.maximum(h * s_ref[...] + t_ref[...], 0.0)
    y = _bdot(h, w2_ref[...]) + b2_ref[...]                 # (S*B, d_model) f32
    pe = pe_ref[...]                                        # (S, d_model)
    parts = [y[s * B:(s + 1) * B, :] + pe[s:s + 1, :] for s in range(S)]
    o_ref[...] = jnp.concatenate(parts, axis=0).astype(o_ref.dtype)


def input_mlp_pe(p, x, pe, *, S, B):
    n = x.shape[0]
    hid = p["w1"].shape[1]
    d_model = p["w2"].shape[1]
    return pl.pallas_call(
        partial(_input_mlp_pe_kernel, S=S, B=B),
        out_shape=jax.ShapeDtypeStruct((n, d_model), jnp.float32),
        in_specs=[
            _full_spec(x.shape),
            _full_spec(p["w1"].shape), _full_spec((1, hid)),
            _full_spec((1, hid)), _full_spec((1, hid)),
            _full_spec(p["w2"].shape), _full_spec((1, d_model)),
            _full_spec(pe.shape),
        ],
        out_specs=_full_spec((n, d_model)),
    )(x, p["w1"], p["b1"].reshape(1, hid), p["bn_scale"].reshape(1, hid),
      p["bn_shift"].reshape(1, hid), p["w2"], p["b2"].reshape(1, d_model), pe)


# ---------------------------------------------------------------------------
# Kernel 2: the WHOLE transformer encoder stack in one gridded pallas_call.
# grid = (num_layers,): per-layer weights stream in via index_map lambda l;
# y stays resident in a VMEM scratch across the (arbitrary) layer axis and is
# stored to HBM only on the last layer.
# ---------------------------------------------------------------------------
def _encoder_stack_kernel(x0_ref, bias_ref, wqkv_ref, bqkv_ref, wo_ref, bo_ref,
                          ln1g_ref, ln1b_ref, w1_ref, b1_ref, w2_ref, b2_ref,
                          ln2g_ref, ln2b_ref, o_ref, y_acc,
                          *, nhead, num_layers, eps):
    layer = pl.program_id(0)

    @pl.when(layer == 0)
    def _():
        y_acc[...] = x0_ref[...]

    x = y_acc[...]                                  # (N, D) f32, rows = s*B + b
    n, d = x.shape
    dh = d // nhead

    # in_proj (softmax 1/sqrt(dh) folded into the Q columns at init time)
    qkv = _bdot(x, wqkv_ref[0]) + bqkv_ref[0]       # (N, 3D) f32

    # Head-batched attention: ONE score matmul, ONE softmax chain, ONE PV matmul.
    q = jnp.stack([qkv[:, h * dh:(h + 1) * dh] for h in range(nhead)], axis=0)
    k = jnp.stack([qkv[:, d + h * dh:d + (h + 1) * dh] for h in range(nhead)], axis=0)
    v = jnp.stack([qkv[:, 2 * d + h * dh:2 * d + (h + 1) * dh] for h in range(nhead)], axis=0)

    s = jnp.einsum("hqc,hkc->hqk", q.astype(jnp.bfloat16), k.astype(jnp.bfloat16),
                   preferred_element_type=jnp.float32)        # (H, N, N) f32
    s = s + bias_ref[...]                            # block-diag batch mask (f32)
    s = s - jnp.max(s, axis=-1, keepdims=True)
    p = jnp.exp(s)
    p = p * pl.reciprocal(jnp.sum(p, axis=-1, keepdims=True), approx=True)
    ctx = jnp.einsum("hqk,hkc->hqc", p.astype(jnp.bfloat16), v.astype(jnp.bfloat16),
                     preferred_element_type=jnp.float32)      # (H, N, dh)

    # out_proj folded per head (no lane-axis concat): attn = sum_h ctx_h @ Wo_h
    wo = wo_ref[0]                                   # (H, dh, D) bf16, pre-split
    attn = jnp.zeros((n, d), jnp.float32) + bo_ref[0]
    for h in range(nhead):
        attn = attn + _bdot(ctx[h], wo[h])

    # residual + LayerNorm 1
    x = _layernorm(x + attn, ln1g_ref[0], ln1b_ref[0], eps)

    # FFN: Linear -> ReLU -> Linear (dff-wide intermediate stays in VMEM)
    ff = jnp.maximum(_bdot(x, w1_ref[0]) + b1_ref[0], 0.0)
    ff = _bdot(ff, w2_ref[0]) + b2_ref[0]

    # residual + LayerNorm 2
    x = _layernorm(x + ff, ln2g_ref[0], ln2b_ref[0], eps)
    y_acc[...] = x

    @pl.when(layer == num_layers - 1)
    def _():
        o_ref[...] = x.astype(o_ref.dtype)


def encoder_stack(sp, y, attn_bias, *, nhead, eps=1e-5):
    n, d = y.shape
    num_layers = sp["in_proj_w"].shape[0]

    def const_spec(shape):           # DMA'd once (block index never changes)
        nd = len(shape)
        return pl.BlockSpec(shape, lambda l, _nd=nd: (0,) * _nd)

    def layer_spec(arr):             # stream layer l's slice each grid step
        shape = arr.shape
        nd = len(shape)
        return pl.BlockSpec((1,) + shape[1:],
                            lambda l, _nd=nd: (l,) + (0,) * (_nd - 1))

    w_names = ["in_proj_w", "in_proj_b", "out_proj_w", "out_proj_b",
               "ln1_g", "ln1_b", "lin1_w", "lin1_b", "lin2_w", "lin2_b",
               "ln2_g", "ln2_b"]
    w_args = [sp[nm] for nm in w_names]

    return pl.pallas_call(
        partial(_encoder_stack_kernel, nhead=nhead, num_layers=num_layers, eps=eps),
        out_shape=jax.ShapeDtypeStruct((n, d), jnp.float32),
        grid=(num_layers,),
        in_specs=[const_spec((n, d)), const_spec((n, n))]
                 + [layer_spec(a) for a in w_args],
        out_specs=const_spec((n, d)),
        scratch_shapes=[pltpu.VMEM((n, d), jnp.float32)],   # resident y
        compiler_params=pltpu.CompilerParams(
            dimension_semantics=("arbitrary",)),
    )(y, attn_bias, *w_args)


# ---------------------------------------------------------------------------
# Kernel 3: fused tail.  Receives only the last sequence step's rows (B, d).
# final encoder Linear -> conditional `main` layers -> step head (+sigmoid)
# and output head (+L2 normalize), packed into one lane-dense output slab.
# ---------------------------------------------------------------------------
def _tail_kernel(y_ref, c_ref, enc_w_ref, enc_b_ref, *refs,
                 n_main, style_dim, out_w):
    # refs layout: [wx, wc, b] * n_main,
    #              step head (w1, b1, bn_scale, bn_shift, w2, b2),
    #              output head (w1, b1, bn_scale, bn_shift, w2, b2),
    #              packed output ref
    y0 = _bdot(y_ref[...], enc_w_ref[...]) + enc_b_ref[...]   # (B, hid_c)
    cc = c_ref[...]
    i = 0
    for _ in range(n_main):                                   # conditional layers
        wx, wc, b = refs[i], refs[i + 1], refs[i + 2]
        i += 3
        y0 = jnp.maximum(_bdot(y0, wx[...]) + _bdot(cc, wc[...]) + b[...], 0.0)

    sw1, sb1, ssc, ssh, sw2, sb2 = refs[i:i + 6]
    i += 6
    ow1, ob1, osc, osh, ow2, ob2 = refs[i:i + 6]
    i += 6
    out_ref = refs[i]

    # step head: Linear -> BN(eval) -> ReLU -> Linear -> sigmoid
    h = jnp.maximum((_bdot(y0, sw1[...]) + sb1[...]) * ssc[...] + ssh[...], 0.0)
    step = jax.nn.sigmoid(_bdot(h, sw2[...]) + sb2[...])       # (B, 1)

    # output head: Linear -> BN(eval) -> ReLU -> Linear -> L2 normalize
    h = jnp.maximum((_bdot(y0, ow1[...]) + ob1[...]) * osc[...] + osh[...], 0.0)
    dy = _bdot(h, ow2[...]) + ob2[...]                          # (B, style_dim)
    inv = lax.rsqrt(jnp.maximum(jnp.sum(dy * dy, axis=-1, keepdims=True), 1e-24))
    dy = dy * inv

    pad = jnp.zeros((dy.shape[0], out_w - style_dim - 1), jnp.float32)
    out_ref[...] = jnp.concatenate([dy, step, pad], axis=-1).astype(out_ref.dtype)


def tail(params, y_last, c, *, style_dim):
    batch = y_last.shape[0]
    hid = params["enc_w"].shape[1]
    sp, op = params["step_layer"], params["output_layer"]
    out_w = ((style_dim + 1 + 127) // 128) * 128               # lane-dense slab

    args = [y_last, c, params["enc_w"], params["enc_b"].reshape(1, hid)]
    specs = [_full_spec(y_last.shape), _full_spec(c.shape),
             _full_spec(params["enc_w"].shape), _full_spec((1, hid))]
    for mp in params["main"]:
        args += [mp["wx"], mp["wc"], mp["b"].reshape(1, hid)]
        specs += [_full_spec(mp["wx"].shape), _full_spec(mp["wc"].shape),
                  _full_spec((1, hid))]
    for p in (sp, op):
        h = p["w1"].shape[1]
        o = p["w2"].shape[1]
        args += [p["w1"], p["b1"].reshape(1, h), p["bn_scale"].reshape(1, h),
                 p["bn_shift"].reshape(1, h), p["w2"], p["b2"].reshape(1, o)]
        specs += [_full_spec(p["w1"].shape), _full_spec((1, h)),
                  _full_spec((1, h)), _full_spec((1, h)),
                  _full_spec(p["w2"].shape), _full_spec((1, o))]

    packed = pl.pallas_call(
        partial(_tail_kernel, n_main=len(params["main"]),
                style_dim=style_dim, out_w=out_w),
        out_shape=jax.ShapeDtypeStruct((batch, out_w), jnp.float32),
        in_specs=specs,
        out_specs=_full_spec((batch, out_w)),
    )(*args)
    dy = packed[:, :style_dim]
    step = packed[:, style_dim:style_dim + 1]
    return dy, step


# ---------------------------------------------------------------------------
# Parameter initialization (deterministic, in-script). Weight matrices bf16,
# biases / BN / LN params f32.
# ---------------------------------------------------------------------------
def _linear_params(key, in_c, out_c, scale=0.1):
    kw, kb = jax.random.split(key)
    return (jax.random.normal(kw, (in_c, out_c), jnp.float32) * scale,
            jax.random.normal(kb, (out_c,), jnp.float32) * scale)


def _mlp_params(key, in_c, hid_c, out_c):
    k1, k2 = jax.random.split(key)
    w1, b1 = _linear_params(k1, in_c, hid_c)
    w2, b2 = _linear_params(k2, hid_c, out_c)
    eps = 1e-5
    # BatchNorm1d eval fold: gamma=1, beta=0, running_mean=0, running_var=1
    return {"w1": w1.astype(jnp.bfloat16), "b1": b1,
            "bn_scale": jnp.ones((hid_c,), jnp.float32) / jnp.sqrt(1.0 + eps),
            "bn_shift": jnp.zeros((hid_c,), jnp.float32),
            "w2": w2.astype(jnp.bfloat16), "b2": b2}


def _enc_layer_params(key, d_model, nhead, dff):
    ks = jax.random.split(key, 4)
    head_dim = d_model // nhead
    scale = 1.0 / math.sqrt(head_dim)
    in_proj_w = jax.random.normal(ks[0], (d_model, 3 * d_model), jnp.float32) * 0.1
    in_proj_b = jnp.zeros((3 * d_model,), jnp.float32)
    # Fold the attention softmax scale into the Q block (zero runtime cost).
    in_proj_w = in_proj_w.at[:, :d_model].multiply(scale)
    out_proj_w = jax.random.normal(ks[1], (d_model, d_model), jnp.float32) * 0.1
    return {
        "in_proj_w": in_proj_w, "in_proj_b": in_proj_b,
        # pre-split per head: rows h*dh..(h+1)*dh of Wo -> Wo[h]
        "out_proj_w": out_proj_w.reshape(nhead, head_dim, d_model),
        "out_proj_b": jnp.zeros((d_model,), jnp.float32),
        "ln1_g": jnp.ones((d_model,), jnp.float32),
        "ln1_b": jnp.zeros((d_model,), jnp.float32),
        "lin1_w": jax.random.normal(ks[2], (d_model, dff), jnp.float32) * 0.05,
        "lin1_b": jnp.zeros((dff,), jnp.float32),
        "lin2_w": jax.random.normal(ks[3], (dff, d_model), jnp.float32) * 0.05,
        "lin2_b": jnp.zeros((d_model,), jnp.float32),
        "ln2_g": jnp.ones((d_model,), jnp.float32),
        "ln2_b": jnp.zeros((d_model,), jnp.float32),
    }


def _stack_enc_layers(layers):
    def stk(name, dtype, add_row=False):
        a = jnp.stack([lp[name] for lp in layers], axis=0)
        if add_row:
            a = a[:, None, :]                 # (L, 1, dim): 2-D minor block dims
        return a.astype(dtype)
    return {
        "in_proj_w": stk("in_proj_w", jnp.bfloat16),        # (L, D, 3D)
        "in_proj_b": stk("in_proj_b", jnp.float32, True),   # (L, 1, 3D)
        "out_proj_w": stk("out_proj_w", jnp.bfloat16),      # (L, H, dh, D)
        "out_proj_b": stk("out_proj_b", jnp.float32, True),
        "ln1_g": stk("ln1_g", jnp.float32, True),
        "ln1_b": stk("ln1_b", jnp.float32, True),
        "lin1_w": stk("lin1_w", jnp.bfloat16),              # (L, D, dff)
        "lin1_b": stk("lin1_b", jnp.float32, True),
        "lin2_w": stk("lin2_w", jnp.bfloat16),              # (L, dff, D)
        "lin2_b": stk("lin2_b", jnp.float32, True),
        "ln2_g": stk("ln2_g", jnp.float32, True),
        "ln2_b": stk("ln2_b", jnp.float32, True),
    }


def _positional_encoding(max_len, d_model):
    position = jnp.arange(max_len, dtype=jnp.float32)[:, None]
    div_term = jnp.exp(
        jnp.arange(0, d_model, 2, dtype=jnp.float32) * (-math.log(10000.0) / d_model))
    pe = jnp.zeros((max_len, d_model), jnp.float32)
    pe = pe.at[:, 0::2].set(jnp.sin(position * div_term))
    pe = pe.at[:, 1::2].set(jnp.cos(position * div_term))
    return pe                                                 # (max_len, d_model)


def init_params(key, style_dim, hid_c, c_dim, n_styles, tp,
                dim_feedforward=2048, max_len=64):
    d_model, nhead, num_layers = tp["d_model"], tp["nhead"], tp["num_layers"]
    keys = jax.random.split(key, 6 + num_layers)
    layers = [_enc_layer_params(keys[6 + i], d_model, nhead, dim_feedforward)
              for i in range(num_layers)]
    enc_w, enc_b = _linear_params(keys[3], d_model, hid_c)
    main_wx, main_b = _linear_params(keys[4], hid_c, hid_c)
    main_wc, _ = _linear_params(keys[5], c_dim, hid_c)
    return {
        "pe": _positional_encoding(max_len, d_model),
        "input_layer": _mlp_params(keys[0], style_dim * n_styles, hid_c, d_model),
        "output_layer": _mlp_params(keys[1], hid_c, hid_c, style_dim),
        "step_layer": _mlp_params(keys[2], hid_c, hid_c, 1),
        "enc_stack": _stack_enc_layers(layers),
        "enc_w": enc_w.astype(jnp.bfloat16), "enc_b": enc_b,
        # self.main: n_layer=0 default => a single conditional layer (stand-in)
        "main": [{"wx": main_wx.astype(jnp.bfloat16),
                  "wc": main_wc.astype(jnp.bfloat16), "b": main_b}],
    }


# ---------------------------------------------------------------------------
# Forward pass (thin jitted glue; all compute in exactly 3 pallas_calls)
# ---------------------------------------------------------------------------
def style_transformer_forward(params, trajectory, c, *, nhead):
    traj = jnp.stack(trajectory, axis=0)                 # (S, B, n_styles, style_dim)
    S, B = traj.shape[0], traj.shape[1]
    flat = traj.reshape(S * B, -1)                       # flatten(-2) + view(-1, .)
    n = S * B

    # Kernel 1: input MLP + positional encoding (pe broadcast in-kernel)
    y = input_mlp_pe(params["input_layer"], flat, params["pe"][:S], S=S, B=B)

    # Hoisted constant: additive block-diagonal batch mask (depends only on
    # static S, B -> constant-folded by XLA; DMA'd once into the layer-stack
    # kernel thanks to its constant index_map).
    bid = jnp.arange(n, dtype=jnp.int32) % B
    attn_bias = jnp.where(bid[:, None] == bid[None, :], 0.0, _NEG).astype(jnp.float32)

    # Kernel 2: all encoder layers in one gridded pallas_call
    y = encoder_stack(params["enc_stack"], y, attn_bias, nhead=nhead)

    # Kernel 3: fused tail, only on the last sequence step's rows
    style_dim = params["output_layer"]["w2"].shape[1]
    y_last = y[n - B:, :]
    dy, step_size = tail(params, y_last, c, style_dim=style_dim)
    return dy[:, None, :], step_size                     # (B,1,style_dim), (B,1)


if __name__ == "__main__":
    key = jax.random.PRNGKey(0)
    k_params, k_traj, k_c = jax.random.split(key, 3)

    # Small shapes consistent with the module
    S, B = 4, 2
    n_styles, style_dim = 2, 8
    hid_c, c_dim = 32, 4
    transformer_params = {"d_model": 32, "nhead": 4, "num_layers": 2}

    params = init_params(k_params, style_dim, hid_c, c_dim, n_styles,
                         transformer_params)

    traj_keys = jax.random.split(k_traj, S)
    trajectory = [jax.random.normal(traj_keys[i], (B, n_styles, style_dim), jnp.float32)
                  for i in range(S)]
    c = jax.random.normal(k_c, (B, c_dim), jnp.float32)

    forward = jax.jit(partial(style_transformer_forward,
                              nhead=transformer_params["nhead"]))

    dy, step_size = forward(params, trajectory, c)
    jax.block_until_ready((dy, step_size))

    assert dy.shape == (B, 1, style_dim), dy.shape
    assert step_size.shape == (B, 1), step_size.shape
    assert bool(jnp.all(jnp.isfinite(dy))) and bool(jnp.all(jnp.isfinite(step_size)))
    # L2-normalized output rows should be (approximately) unit norm
    norms = jnp.linalg.norm(dy[:, 0, :], axis=-1)
    assert bool(jnp.all(jnp.abs(norms - 1.0) < 1e-2)), norms
    # sigmoid output must lie in (0, 1)
    assert bool(jnp.all((step_size > 0.0) & (step_size < 1.0)))
    print("KERNEL_OK")
</pallas_src>

<mosaic_0001>
module attributes {stable_mosaic.version = 11 : i64} {
  func.func @_input_mlp_pe_kernel(%arg0: memref<8x16xf32, #tpu.memory_space<vmem>>, %arg1: memref<16x32xbf16, #tpu.memory_space<vmem>>, %arg2: memref<1x32xf32, #tpu.memory_space<vmem>>, %arg3: memref<1x32xf32, #tpu.memory_space<vmem>>, %arg4: memref<1x32xf32, #tpu.memory_space<vmem>>, %arg5: memref<32x32xbf16, #tpu.memory_space<vmem>>, %arg6: memref<1x32xf32, #tpu.memory_space<vmem>>, %arg7: memref<4x32xf32, #tpu.memory_space<vmem>>, %arg8: memref<8x32xf32, #tpu.memory_space<vmem>>) attributes {dimension_semantics = [], scalar_prefetch = 0 : i64, scratch_operands = 0 : i64, tpu.core_type = #tpu.core_type<tc>} {
    %c0 = arith.constant 0 : index
    %c0_0 = arith.constant 0 : index
    %0 = vector.load %arg0[%c0, %c0_0] : memref<8x16xf32, #tpu.memory_space<vmem>>, vector<8x16xf32>
    %c0_1 = arith.constant 0 : index
    %c0_2 = arith.constant 0 : index
    %1 = vector.load %arg1[%c0_1, %c0_2] : memref<16x32xbf16, #tpu.memory_space<vmem>>, vector<16x32xbf16>
    %2 = arith.truncf %0 : vector<8x16xf32> to vector<8x16xbf16>
    %cst = arith.constant dense<0.000000e+00> : vector<8x32xf32>
    %3 = tpu.matmul %2, %1, %cst {dimension_numbers = #tpu.dot_dimension_numbers<[1], [0], [0], [1], [0, 0, 1, 1], [], []>} : vector<8x16xbf16>, vector<16x32xbf16>, vector<8x32xf32> -> vector<8x32xf32>
    %c0_3 = arith.constant 0 : index
    %c0_4 = arith.constant 0 : index
    %4 = vector.load %arg2[%c0_3, %c0_4] : memref<1x32xf32, #tpu.memory_space<vmem>>, vector<1x32xf32>
    %5 = vector.broadcast %4 : vector<1x32xf32> to vector<8x32xf32>
    %6 = arith.addf %3, %5 : vector<8x32xf32>
    %c0_5 = arith.constant 0 : index
    %c0_6 = arith.constant 0 : index
    %7 = vector.load %arg3[%c0_5, %c0_6] : memref<1x32xf32, #tpu.memory_space<vmem>>, vector<1x32xf32>
    %8 = vector.broadcast %7 : vector<1x32xf32> to vector<8x32xf32>
    %9 = arith.mulf %6, %8 : vector<8x32xf32>
    %c0_7 = arith.constant 0 : index
    %c0_8 = arith.constant 0 : index
    %10 = vector.load %arg4[%c0_7, %c0_8] : memref<1x32xf32, #tpu.memory_space<vmem>>, vector<1x32xf32>
    %11 = vector.broadcast %10 : vector<1x32xf32> to vector<8x32xf32>
    %12 = arith.addf %9, %11 : vector<8x32xf32>
    %cst_9 = arith.constant 0.000000e+00 : f32
    %13 = vector.broadcast %cst_9 : f32 to vector<8x32xf32>
    %14 = arith.maximumf %12, %13 : vector<8x32xf32>
    %c0_10 = arith.constant 0 : index
    %c0_11 = arith.constant 0 : index
    %15 = vector.load %arg5[%c0_10, %c0_11] : memref<32x32xbf16, #tpu.memory_space<vmem>>, vector<32x32xbf16>
    %16 = arith.truncf %14 : vector<8x32xf32> to vector<8x32xbf16>
    %cst_12 = arith.constant dense<0.000000e+00> : vector<8x32xf32>
    %17 = tpu.matmul %16, %15, %cst_12 {dimension_numbers = #tpu.dot_dimension_numbers<[1], [0], [0], [1], [0, 0, 1, 1], [], []>} : vector<8x32xbf16>, vector<32x32xbf16>, vector<8x32xf32> -> vector<8x32xf32>
    %c0_13 = arith.constant 0 : index
    %c0_14 = arith.constant 0 : index
    %18 = vector.load %arg6[%c0_13, %c0_14] : memref<1x32xf32, #tpu.memory_space<vmem>>, vector<1x32xf32>
    %19 = vector.broadcast %18 : vector<1x32xf32> to vector<8x32xf32>
    %20 = arith.addf %17, %19 : vector<8x32xf32>
    %c0_15 = arith.constant 0 : index
    %c0_16 = arith.constant 0 : index
    %21 = vector.load %arg7[%c0_15, %c0_16] : memref<4x32xf32, #tpu.memory_space<vmem>>, vector<4x32xf32>
    %22 = vector.extract_strided_slice %20 {offsets = [0, 0], sizes = [2, 32], strides = [1, 1]} : vector<8x32xf32> to vector<2x32xf32>
    %23 = vector.extract_strided_slice %21 {offsets = [0, 0], sizes = [1, 32], strides = [1, 1]} : vector<4x32xf32> to vector<1x32xf32>
    %24 = vector.broadcast %23 : vector<1x32xf32> to vector<2x32xf32>
    %25 = arith.addf %22, %24 : vector<2x32xf32>
    %26 = vector.extract_strided_slice %20 {offsets = [2, 0], sizes = [2, 32], strides = [1, 1]} : vector<8x32xf32> to vector<2x32xf32>
    %27 = vector.extract_strided_slice %21 {offsets = [1, 0], sizes = [1, 32], strides = [1, 1]} : vector<4x32xf32> to vector<1x32xf32>
    %28 = vector.broadcast %27 : vector<1x32xf32> to vector<2x32xf32>
    %29 = arith.addf %26, %28 : vector<2x32xf32>
    %30 = vector.extract_strided_slice %20 {offsets = [4, 0], sizes = [2, 32], strides = [1, 1]} : vector<8x32xf32> to vector<2x32xf32>
    %31 = vector.extract_strided_slice %21 {offsets = [2, 0], sizes = [1, 32], strides = [1, 1]} : vector<4x32xf32> to vector<1x32xf32>
    %32 = vector.broadcast %31 : vector<1x32xf32> to vector<2x32xf32>
    %33 = arith.addf %30, %32 : vector<2x32xf32>
    %34 = vector.extract_strided_slice %20 {offsets = [6, 0], sizes = [2, 32], strides = [1, 1]} : vector<8x32xf32> to vector<2x32xf32>
    %35 = vector.extract_strided_slice %21 {offsets = [3, 0], sizes = [1, 32], strides = [1, 1]} : vector<4x32xf32> to vector<1x32xf32>
    %36 = vector.broadcast %35 : vector<1x32xf32> to vector<2x32xf32>
    %37 = arith.addf %34, %36 : vector<2x32xf32>
    %38 = tpu.concatenate %25, %29, %33, %37 in 0 : vector<2x32xf32>, vector<2x32xf32>, vector<2x32xf32>, vector<2x32xf32> -> vector<8x32xf32>
    %c0_17 = arith.constant 0 : index
    %c0_18 = arith.constant 0 : index
    %39 = vector.load %arg8[%c0_17, %c0_18] : memref<8x32xf32, #tpu.memory_space<vmem>>, vector<8x32xf32>
    tpu.vector_store %arg8[%c0_17, %c0_18], %38 {strides = array<i32>} : memref<8x32xf32, #tpu.memory_space<vmem>>, vector<8x32xf32>,
    return
  }
}

module attributes {stable_mosaic.version = 11 : i64} {
  func.func @_encoder_stack_kernel(%arg0: i32, %arg1: memref<8x32xf32, #tpu.memory_space<vmem>>, %arg2: memref<8x8xf32, #tpu.memory_space<vmem>>, %arg3: memref<1x32x96xbf16, #tpu.memory_space<vmem>>, %arg4: memref<1x1x96xf32, #tpu.memory_space<vmem>>, %arg5: memref<1x4x8x32xbf16, #tpu.memory_space<vmem>>, %arg6: memref<1x1x32xf32, #tpu.memory_space<vmem>>, %arg7: memref<1x1x32xf32, #tpu.memory_space<vmem>>, %arg8: memref<1x1x32xf32, #tpu.memory_space<vmem>>, %arg9: memref<1x32x2048xbf16, #tpu.memory_space<vmem>>, %arg10: memref<1x1x2048xf32, #tpu.memory_space<vmem>>, %arg11: memref<1x2048x32xbf16, #tpu.memory_space<vmem>>, %arg12: memref<1x1x32xf32, #tpu.memory_space<vmem>>, %arg13: memref<1x1x32xf32, #tpu.memory_space<vmem>>, %arg14: memref<1x1x32xf32, #tpu.memory_space<vmem>>, %arg15: memref<8x32xf32, #tpu.memory_space<vmem>>, %arg16: memref<8x32xf32, #tpu.memory_space<vmem>>) attributes {dimension_semantics = [#tpu.dimension_semantics<arbitrary>], iteration_bounds = array<i64: 2>, scalar_prefetch = 0 : i64, scratch_operands = 1 : i64, tpu.core_type = #tpu.core_type<tc>, window_params = [{pipeline_mode = #tpu.pipeline_mode<synchronous>, transform_indices = @transform_0, window_bounds = array<i64: 8, 32>}, {pipeline_mode = #tpu.pipeline_mode<synchronous>, transform_indices = @transform_1, window_bounds = array<i64: 8, 8>}, {transform_indices = @transform_2, window_bounds = array<i64: 1, 32, 96>}, {transform_indices = @transform_3, window_bounds = array<i64: 1, 1, 96>}, {transform_indices = @transform_4, window_bounds = array<i64: 1, 4, 8, 32>}, {transform_indices = @transform_5, window_bounds = array<i64: 1, 1, 32>}, {transform_indices = @transform_6, window_bounds = array<i64: 1, 1, 32>}, {transform_indices = @transform_7, window_bounds = array<i64: 1, 1, 32>}, {transform_indices = @transform_8, window_bounds = array<i64: 1, 32, 2048>}, {transform_indices = @transform_9, window_bounds = array<i64: 1, 1, 2048>}, {transform_indices = @transform_10, window_bounds = array<i64: 1, 2048, 32>}, {transform_indices = @transform_11, window_bounds = array<i64: 1, 1, 32>}, {transform_indices = @transform_12, window_bounds = array<i64: 1, 1, 32>}, {transform_indices = @transform_13, window_bounds = array<i64: 1, 1, 32>}, {pipeline_mode = #tpu.pipeline_mode<synchronous>, transform_indices = @transform_14, window_bounds = array<i64: 8, 32>}]} {
    %c0_i32 = arith.constant 0 : i32
    %0 = arith.cmpi eq, %arg0, %c0_i32 : i32
    %1 = arith.extui %0 : i1 to i32
    %c0_i32_0 = arith.constant 0 : i32
    %2 = arith.cmpi ne, %1, %c0_i32_0 : i32
    scf.if %2 {
      %c0_66 = arith.constant 0 : index
      %c0_67 = arith.constant 0 : index
      %170 = vector.load %arg1[%c0_66, %c0_67] : memref<8x32xf32, #tpu.memory_space<vmem>>, vector<8x32xf32>
      %c0_68 = arith.constant 0 : index
      %c0_69 = arith.constant 0 : index
      %171 = vector.load %arg16[%c0_68, %c0_69] : memref<8x32xf32, #tpu.memory_space<vmem>>, vector<8x32xf32>
      tpu.vector_store %arg16[%c0_68, %c0_69], %170 {strides = array<i32>} : memref<8x32xf32, #tpu.memory_space<vmem>>, vector<8x32xf32>,
    } else {
    }
    %c0 = arith.constant 0 : index
    %c0_1 = arith.constant 0 : index
    %3 = vector.load %arg16[%c0, %c0_1] : memref<8x32xf32, #tpu.memory_space<vmem>>, vector<8x32xf32>
    %c0_2 = arith.constant 0 : index
    %c0_3 = arith.constant 0 : index
    %c0_4 = arith.constant 0 : index
    %4 = vector.load %arg3[%c0_2, %c0_3, %c0_4] : memref<1x32x96xbf16, #tpu.memory_space<vmem>>, vector<1x32x96xbf16>
    %5 = vector.shape_cast %4 : vector<1x32x96xbf16> to vector<32x96xbf16>
    %6 = arith.truncf %3 : vector<8x32xf32> to vector<8x32xbf16>
    %cst = arith.constant dense<0.000000e+00> : vector<8x96xf32>
    %7 = tpu.matmul %6, %5, %cst {dimension_numbers = #tpu.dot_dimension_numbers<[1], [0], [0], [1], [0, 0, 1, 1], [], []>} : vector<8x32xbf16>, vector<32x96xbf16>, vector<8x96xf32> -> vector<8x96xf32>
    %c0_5 = arith.constant 0 : index
    %c0_6 = arith.constant 0 : index
    %c0_7 = arith.constant 0 : index
    %8 = vector.load %arg4[%c0_5, %c0_6, %c0_7] : memref<1x1x96xf32, #tpu.memory_space<vmem>>, vector<1x1x96xf32>
    %9 = vector.shape_cast %8 : vector<1x1x96xf32> to vector<1x96xf32>
    %10 = vector.broadcast %9 : vector<1x96xf32> to vector<8x96xf32>
    %11 = arith.addf %7, %10 : vector<8x96xf32>
    %12 = vector.extract_strided_slice %11 {offsets = [0, 0], sizes = [8, 8], strides = [1, 1]} : vector<8x96xf32> to vector<8x8xf32>
    %13 = vector.extract_strided_slice %11 {offsets = [0, 8], sizes = [8, 8], strides = [1, 1]} : vector<8x96xf32> to vector<8x8xf32>
    %14 = vector.extract_strided_slice %11 {offsets = [0, 16], sizes = [8, 8], strides = [1, 1]} : vector<8x96xf32> to vector<8x8xf32>
    %15 = vector.extract_strided_slice %11 {offsets = [0, 24], sizes = [8, 8], strides = [1, 1]} : vector<8x96xf32> to vector<8x8xf32>
    %16 = vector.shape_cast %12 : vector<8x8xf32> to vector<1x8x8xf32>
    %17 = vector.shape_cast %13 : vector<8x8xf32> to vector<1x8x8xf32>
    %18 = vector.shape_cast %14 : vector<8x8xf32> to vector<1x8x8xf32>
    %19 = vector.shape_cast %15 : vector<8x8xf32> to vector<1x8x8xf32>
    %20 = tpu.concatenate %16, %17, %18, %19 in 0 : vector<1x8x8xf32>, vector<1x8x8xf32>, vector<1x8x8xf32>, vector<1x8x8xf32> -> vector<4x8x8xf32>
    %21 = vector.extract_strided_slice %11 {offsets = [0, 32], sizes = [8, 8], strides = [1, 1]} : vector<8x96xf32> to vector<8x8xf32>
    %22 = vector.extract_strided_slice %11 {offsets = [0, 40], sizes = [8, 8], strides = [1, 1]} : vector<8x96xf32> to vector<8x8xf32>
    %23 = vector.extract_strided_slice %11 {offsets = [0, 48], sizes = [8, 8], strides = [1, 1]} : vector<8x96xf32> to vector<8x8xf32>
    %24 = vector.extract_strided_slice %11 {offsets = [0, 56], sizes = [8, 8], strides = [1, 1]} : vector<8x96xf32> to vector<8x8xf32>
    %25 = vector.shape_cast %21 : vector<8x8xf32> to vector<1x8x8xf32>
    %26 = vector.shape_cast %22 : vector<8x8xf32> to vector<1x8x8xf32>
    %27 = vector.shape_cast %23 : vector<8x8xf32> to vector<1x8x8xf32>
    %28 = vector.shape_cast %24 : vector<8x8xf32> to vector<1x8x8xf32>
    %29 = tpu.concatenate %25, %26, %27, %28 in 0 : vector<1x8x8xf32>, vector<1x8x8xf32>, vector<1x8x8xf32>, vector<1x8x8xf32> -> vector<4x8x8xf32>
    %30 = vector.extract_strided_slice %11 {offsets = [0, 64], sizes = [8, 8], strides = [1, 1]} : vector<8x96xf32> to vector<8x8xf32>
    %31 = vector.extract_strided_slice %11 {offsets = [0, 72], sizes = [8, 8], strides = [1, 1]} : vector<8x96xf32> to vector<8x8xf32>
    %32 = vector.extract_strided_slice %11 {offsets = [0, 80], sizes = [8, 8], strides = [1, 1]} : vector<8x96xf32> to vector<8x8xf32>
    %33 = vector.extract_strided_slice %11 {offsets = [0, 88], sizes = [8, 8], strides = [1, 1]} : vector<8x96xf32> to vector<8x8xf32>
    %34 = vector.shape_cast %30 : vector<8x8xf32> to vector<1x8x8xf32>
    %35 = vector.shape_cast %31 : vector<8x8xf32> to vector<1x8x8xf32>
    %36 = vector.shape_cast %32 : vector<8x8xf32> to vector<1x8x8xf32>
    %37 = vector.shape_cast %33 : vector<8x8xf32> to vector<1x8x8xf32>
    %38 = tpu.concatenate %34, %35, %36, %37 in 0 : vector<1x8x8xf32>, vector<1x8x8xf32>, vector<1x8x8xf32>, vector<1x8x8xf32> -> vector<4x8x8xf32>
    %39 = arith.truncf %20 : vector<4x8x8xf32> to vector<4x8x8xbf16>
    %40 = arith.truncf %29 : vector<4x8x8xf32> to vector<4x8x8xbf16>
    "tpu.trace_start"() <{level = 10 : i32, message = "hqc,hkc->hqk"}> : () -> ()
    %cst_8 = arith.constant dense<0.000000e+00> : vector<4x8x8xf32>
    %41 = tpu.matmul %39, %40, %cst_8 {dimension_numbers = #tpu.dot_dimension_numbers<[2], [2], [1], [1], [0, 0, 0, 1, 1, 1], [0], [0]>} : vector<4x8x8xbf16>, vector<4x8x8xbf16>, vector<4x8x8xf32> -> vector<4x8x8xf32>
    "tpu.trace_stop"() : () -> ()
    %c0_9 = arith.constant 0 : index
    %c0_10 = arith.constant 0 : index
    %42 = vector.load %arg2[%c0_9, %c0_10] : memref<8x8xf32, #tpu.memory_space<vmem>>, vector<8x8xf32>
    %43 = vector.shape_cast %42 : vector<8x8xf32> to vector<1x8x8xf32>
    %44 = vector.broadcast %43 : vector<1x8x8xf32> to vector<4x8x8xf32>
    %45 = arith.addf %41, %44 : vector<4x8x8xf32>
    %cst_11 = arith.constant dense<0xFF800000> : vector<4x8xf32>
    %46 = vector.multi_reduction <maximumf>, %45, %cst_11 [2] : vector<4x8x8xf32> to vector<4x8xf32>
    %47 = vector.shape_cast %46 : vector<4x8xf32> to vector<4x8x1xf32>
    %48 = vector.broadcast %47 : vector<4x8x1xf32> to vector<4x8x8xf32>
    %49 = arith.subf %45, %48 : vector<4x8x8xf32>
    %50 = math.exp %49 : vector<4x8x8xf32>
    %cst_12 = arith.constant dense<0.000000e+00> : vector<4x8xf32>
    %51 = vector.multi_reduction <add>, %50, %cst_12 [2] : vector<4x8x8xf32> to vector<4x8xf32>
    %52 = vector.shape_cast %51 : vector<4x8xf32> to vector<4x8x1xf32>
    %53 = tpu.reciprocal %52 {approx = true} : vector<4x8x1xf32> -> vector<4x8x1xf32>
    %54 = vector.broadcast %53 : vector<4x8x1xf32> to vector<4x8x8xf32>
    %55 = arith.mulf %50, %54 : vector<4x8x8xf32>
    %56 = arith.truncf %55 : vector<4x8x8xf32> to vector<4x8x8xbf16>
    %57 = arith.truncf %38 : vector<4x8x8xf32> to vector<4x8x8xbf16>
    "tpu.trace_start"() <{level = 10 : i32, message = "hqk,hkc->hqc"}> : () -> ()
    %cst_13 = arith.constant dense<0.000000e+00> : vector<4x8x8xf32>
    %58 = tpu.matmul %56, %57, %cst_13 {dimension_numbers = #tpu.dot_dimension_numbers<[2], [1], [1], [2], [0, 0, 0, 1, 1, 2], [0], [0]>} : vector<4x8x8xbf16>, vector<4x8x8xbf16>, vector<4x8x8xf32> -> vector<4x8x8xf32>
    "tpu.trace_stop"() : () -> ()
    %c0_14 = arith.constant 0 : index
    %c0_15 = arith.constant 0 : index
    %c0_16 = arith.constant 0 : index
    %c0_17 = arith.constant 0 : index
    %59 = vector.load %arg5[%c0_14, %c0_15, %c0_16, %c0_17] : memref<1x4x8x32xbf16, #tpu.memory_space<vmem>>, vector<1x4x8x32xbf16>
    %60 = vector.shape_cast %59 : vector<1x4x8x32xbf16> to vector<4x8x32xbf16>
    %cst_18 = arith.constant 0.000000e+00 : f32
    %61 = vector.broadcast %cst_18 : f32 to vector<8x32xf32>
    %c0_19 = arith.constant 0 : index
    %c0_20 = arith.constant 0 : index
    %c0_21 = arith.constant 0 : index
    %62 = vector.load %arg6[%c0_19, %c0_20, %c0_21] : memref<1x1x32xf32, #tpu.memory_space<vmem>>, vector<1x1x32xf32>
    %63 = vector.shape_cast %62 : vector<1x1x32xf32> to vector<1x32xf32>
    %64 = vector.broadcast %63 : vector<1x32xf32> to vector<8x32xf32>
    %65 = arith.addf %61, %64 : vector<8x32xf32>
    %66 = vector.extract_strided_slice %58 {offsets = [0, 0, 0], sizes = [1, 8, 8], strides = [1, 1, 1]} : vector<4x8x8xf32> to vector<1x8x8xf32>
    %67 = vector.shape_cast %66 : vector<1x8x8xf32> to vector<8x8xf32>
    %68 = vector.extract_strided_slice %60 {offsets = [0, 0, 0], sizes = [1, 8, 32], strides = [1, 1, 1]} : vector<4x8x32xbf16> to vector<1x8x32xbf16>
    %69 = vector.shape_cast %68 : vector<1x8x32xbf16> to vector<8x32xbf16>
    %70 = arith.truncf %67 : vector<8x8xf32> to vector<8x8xbf16>
    %cst_22 = arith.constant dense<0.000000e+00> : vector<8x32xf32>
    %71 = tpu.matmul %70, %69, %cst_22 {dimension_numbers = #tpu.dot_dimension_numbers<[1], [0], [0], [1], [0, 0, 1, 1], [], []>} : vector<8x8xbf16>, vector<8x32xbf16>, vector<8x32xf32> -> vector<8x32xf32>
    %72 = arith.addf %65, %71 : vector<8x32xf32>
    %73 = vector.extract_strided_slice %58 {offsets = [1, 0, 0], sizes = [1, 8, 8], strides = [1, 1, 1]} : vector<4x8x8xf32> to vector<1x8x8xf32>
    %74 = vector.shape_cast %73 : vector<1x8x8xf32> to vector<8x8xf32>
    %75 = vector.extract_strided_slice %60 {offsets = [1, 0, 0], sizes = [1, 8, 32], strides = [1, 1, 1]} : vector<4x8x32xbf16> to vector<1x8x32xbf16>
    %76 = vector.shape_cast %75 : vector<1x8x32xbf16> to vector<8x32xbf16>
    %77 = arith.truncf %74 : vector<8x8xf32> to vector<8x8xbf16>
    %cst_23 = arith.constant dense<0.000000e+00> : vector<8x32xf32>
    %78 = tpu.matmul %77, %76, %cst_23 {dimension_numbers = #tpu.dot_dimension_numbers<[1], [0], [0], [1], [0, 0, 1, 1], [], []>} : vector<8x8xbf16>, vector<8x32xbf16>, vector<8x32xf32> -> vector<8x32xf32>
    %79 = arith.addf %72, %78 : vector<8x32xf32>
    %80 = vector.extract_strided_slice %58 {offsets = [2, 0, 0], sizes = [1, 8, 8], strides = [1, 1, 1]} : vector<4x8x8xf32> to vector<1x8x8xf32>
    %81 = vector.shape_cast %80 : vector<1x8x8xf32> to vector<8x8xf32>
    %82 = vector.extract_strided_slice %60 {offsets = [2, 0, 0], sizes = [1, 8, 32], strides = [1, 1, 1]} : vector<4x8x32xbf16> to vector<1x8x32xbf16>
    %83 = vector.shape_cast %82 : vector<1x8x32xbf16> to vector<8x32xbf16>
    %84 = arith.truncf %81 : vector<8x8xf32> to vector<8x8xbf16>
    %cst_24 = arith.constant dense<0.000000e+00> : vector<8x32xf32>
    %85 = tpu.matmul %84, %83, %cst_24 {dimension_numbers = #tpu.dot_dimension_numbers<[1], [0], [0], [1], [0, 0, 1, 1], [], []>} : vector<8x8xbf16>, vector<8x32xbf16>, vector<8x32xf32> -> vector<8x32xf32>
    %86 = arith.addf %79, %85 : vector<8x32xf32>
    %87 = vector.extract_strided_slice %58 {offsets = [3, 0, 0], sizes = [1, 8, 8], strides = [1, 1, 1]} : vector<4x8x8xf32> to vector<1x8x8xf32>
    %88 = vector.shape_cast %87 : vector<1x8x8xf32> to vector<8x8xf32>
    %89 = vector.extract_strided_slice %60 {offsets = [3, 0, 0], sizes = [1, 8, 32], strides = [1, 1, 1]} : vector<4x8x32xbf16> to vector<1x8x32xbf16>
    %90 = vector.shape_cast %89 : vector<1x8x32xbf16> to vector<8x32xbf16>
    %91 = arith.truncf %88 : vector<8x8xf32> to vector<8x8xbf16>
    %cst_25 = arith.constant dense<0.000000e+00> : vector<8x32xf32>
    %92 = tpu.matmul %91, %90, %cst_25 {dimension_numbers = #tpu.dot_dimension_numbers<[1], [0], [0], [1], [0, 0, 1, 1], [], []>} : vector<8x8xbf16>, vector<8x32xbf16>, vector<8x32xf32> -> vector<8x32xf32>
    %93 = arith.addf %86, %92 : vector<8x32xf32>
    %94 = arith.addf %3, %93 : vector<8x32xf32>
    %c0_26 = arith.constant 0 : index
    %c0_27 = arith.constant 0 : index
    %c0_28 = arith.constant 0 : index
    %95 = vector.load %arg7[%c0_26, %c0_27, %c0_28] : memref<1x1x32xf32, #tpu.memory_space<vmem>>, vector<1x1x32xf32>
    %96 = vector.shape_cast %95 : vector<1x1x32xf32> to vector<1x32xf32>
    %c0_29 = arith.constant 0 : index
    %c0_30 = arith.constant 0 : index
    %c0_31 = arith.constant 0 : index
    %97 = vector.load %arg8[%c0_29, %c0_30, %c0_31] : memref<1x1x32xf32, #tpu.memory_space<vmem>>, vector<1x1x32xf32>
    %98 = vector.shape_cast %97 : vector<1x1x32xf32> to vector<1x32xf32>
    %cst_32 = arith.constant dense<0.000000e+00> : vector<8xf32>
    %99 = vector.multi_reduction <add>, %94, %cst_32 [1] : vector<8x32xf32> to vector<8xf32>
    %100 = vector.shape_cast %99 : vector<8xf32> to vector<8x1xf32>
    %cst_33 = arith.constant 3.200000e+01 : f32
    %101 = vector.broadcast %cst_33 : f32 to vector<8x1xf32>
    %102 = arith.divf %100, %101 : vector<8x1xf32>
    %103 = vector.broadcast %102 : vector<8x1xf32> to vector<8x32xf32>
    %104 = arith.subf %94, %103 : vector<8x32xf32>
    %105 = arith.mulf %104, %104 : vector<8x32xf32>
    %cst_34 = arith.constant dense<0.000000e+00> : vector<8xf32>
    %106 = vector.multi_reduction <add>, %105, %cst_34 [1] : vector<8x32xf32> to vector<8xf32>
    %107 = vector.shape_cast %106 : vector<8xf32> to vector<8x1xf32>
    %cst_35 = arith.constant 3.200000e+01 : f32
    %108 = vector.broadcast %cst_35 : f32 to vector<8x1xf32>
    %109 = arith.divf %107, %108 : vector<8x1xf32>
    %110 = vector.broadcast %102 : vector<8x1xf32> to vector<8x32xf32>
    %111 = arith.subf %94, %110 : vector<8x32xf32>
    %cst_36 = arith.constant 9.99999974E-6 : f32
    %112 = vector.broadcast %cst_36 : f32 to vector<8x1xf32>
    %113 = arith.addf %109, %112 : vector<8x1xf32>
    %114 = math.rsqrt %113 : vector<8x1xf32>
    %115 = vector.broadcast %114 : vector<8x1xf32> to vector<8x32xf32>
    %116 = arith.mulf %111, %115 : vector<8x32xf32>
    %117 = vector.broadcast %96 : vector<1x32xf32> to vector<8x32xf32>
    %118 = arith.mulf %116, %117 : vector<8x32xf32>
    %119 = vector.broadcast %98 : vector<1x32xf32> to vector<8x32xf32>
    %120 = arith.addf %118, %119 : vector<8x32xf32>
    %c0_37 = arith.constant 0 : index
    %c0_38 = arith.constant 0 : index
    %c0_39 = arith.constant 0 : index
    %121 = vector.load %arg9[%c0_37, %c0_38, %c0_39] : memref<1x32x2048xbf16, #tpu.memory_space<vmem>>, vector<1x32x2048xbf16>
    %122 = vector.shape_cast %121 : vector<1x32x2048xbf16> to vector<32x2048xbf16>
    %123 = arith.truncf %120 : vector<8x32xf32> to vector<8x32xbf16>
    %cst_40 = arith.constant dense<0.000000e+00> : vector<8x2048xf32>
    %124 = tpu.matmul %123, %122, %cst_40 {dimension_numbers = #tpu.dot_dimension_numbers<[1], [0], [0], [1], [0, 0, 1, 1], [], []>} : vector<8x32xbf16>, vector<32x2048xbf16>, vector<8x2048xf32> -> vector<8x2048xf32>
    %c0_41 = arith.constant 0 : index
    %c0_42 = arith.constant 0 : index
    %c0_43 = arith.constant 0 : index
    %125 = vector.load %arg10[%c0_41, %c0_42, %c0_43] : memref<1x1x2048xf32, #tpu.memory_space<vmem>>, vector<1x1x2048xf32>
    %126 = vector.shape_cast %125 : vector<1x1x2048xf32> to vector<1x2048xf32>
    %127 = vector.broadcast %126 : vector<1x2048xf32> to vector<8x2048xf32>
    %128 = arith.addf %124, %127 : vector<8x2048xf32>
    %cst_44 = arith.constant 0.000000e+00 : f32
    %129 = vector.broadcast %cst_44 : f32 to vector<8x2048xf32>
    %130 = arith.maximumf %128, %129 : vector<8x2048xf32>
    %c0_45 = arith.constant 0 : index
    %c0_46 = arith.constant 0 : index
    %c0_47 = arith.constant 0 : index
    %131 = vector.load %arg11[%c0_45, %c0_46, %c0_47] : memref<1x2048x32xbf16, #tpu.memory_space<vmem>>, vector<1x2048x32xbf16>
    %132 = vector.shape_cast %131 : vector<1x2048x32xbf16> to vector<2048x32xbf16>
    %133 = arith.truncf %130 : vector<8x2048xf32> to vector<8x2048xbf16>
    %cst_48 = arith.constant dense<0.000000e+00> : vector<8x32xf32>
    %134 = tpu.matmul %133, %132, %cst_48 {dimension_numbers = #tpu.dot_dimension_numbers<[1], [0], [0], [1], [0, 0, 1, 1], [], []>} : vector<8x2048xbf16>, vector<2048x32xbf16>, vector<8x32xf32> -> vector<8x32xf32>
    %c0_49 = arith.constant 0 : index
    %c0_50 = arith.constant 0 : index
    %c0_51 = arith.constant 0 : index
    %135 = vector.load %arg12[%c0_49, %c0_50, %c0_51] : memref<1x1x32xf32, #tpu.memory_space<vmem>>, vector<1x1x32xf32>
    %136 = vector.shape_cast %135 : vector<1x1x32xf32> to vector<1x32xf32>
    %137 = vector.broadcast %136 : vector<1x32xf32> to vector<8x32xf32>
    %138 = arith.addf %134, %137 : vector<8x32xf32>
    %139 = arith.addf %120, %138 : vector<8x32xf32>
    %c0_52 = arith.constant 0 : index
    %c0_53 = arith.constant 0 : index
    %c0_54 = arith.constant 0 : index
    %140 = vector.load %arg13[%c0_52, %c0_53, %c0_54] : memref<1x1x32xf32, #tpu.memory_space<vmem>>, vector<1x1x32xf32>
    %141 = vector.shape_cast %140 : vector<1x1x32xf32> to vector<1x32xf32>
    %c0_55 = arith.constant 0 : index
    %c0_56 = arith.constant 0 : index
    %c0_57 = arith.constant 0 : index
    %142 = vector.load %arg14[%c0_55, %c0_56, %c0_57] : memref<1x1x32xf32, #tpu.memory_space<vmem>>, vector<1x1x32xf32>
    %143 = vector.shape_cast %142 : vector<1x1x32xf32> to vector<1x32xf32>
    %cst_58 = arith.constant dense<0.000000e+00> : vector<8xf32>
    %144 = vector.multi_reduction <add>, %139, %cst_58 [1] : vector<8x32xf32> to vector<8xf32>
    %145 = vector.shape_cast %144 : vector<8xf32> to vector<8x1xf32>
    %cst_59 = arith.constant 3.200000e+01 : f32
    %146 = vector.broadcast %cst_59 : f32 to vector<8x1xf32>
    %147 = arith.divf %145, %146 : vector<8x1xf32>
    %148 = vector.broadcast %147 : vector<8x1xf32> to vector<8x32xf32>
    %149 = arith.subf %139, %148 : vector<8x32xf32>
    %150 = arith.mulf %149, %149 : vector<8x32xf32>
    %cst_60 = arith.constant dense<0.000000e+00> : vector<8xf32>
    %151 = vector.multi_reduction <add>, %150, %cst_60 [1] : vector<8x32xf32> to vector<8xf32>
    %152 = vector.shape_cast %151 : vector<8xf32> to vector<8x1xf32>
    %cst_61 = arith.constant 3.200000e+01 : f32
    %153 = vector.broadcast %cst_61 : f32 to vector<8x1xf32>
    %154 = arith.divf %152, %153 : vector<8x1xf32>
    %155 = vector.broadcast %147 : vector<8x1xf32> to vector<8x32xf32>
    %156 = arith.subf %139, %155 : vector<8x32xf32>
    %cst_62 = arith.constant 9.99999974E-6 : f32
    %157 = vector.broadcast %cst_62 : f32 to vector<8x1xf32>
    %158 = arith.addf %154, %157 : vector<8x1xf32>
    %159 = math.rsqrt %158 : vector<8x1xf32>
    %160 = vector.broadcast %159 : vector<8x1xf32> to vector<8x32xf32>
    %161 = arith.mulf %156, %160 : vector<8x32xf32>
    %162 = vector.broadcast %141 : vector<1x32xf32> to vector<8x32xf32>
    %163 = arith.mulf %161, %162 : vector<8x32xf32>
    %164 = vector.broadcast %143 : vector<1x32xf32> to vector<8x32xf32>
    %165 = arith.addf %163, %164 : vector<8x32xf32>
    %c0_63 = arith.constant 0 : index
    %c0_64 = arith.constant 0 : index
    %166 = vector.load %arg16[%c0_63, %c0_64] : memref<8x32xf32, #tpu.memory_space<vmem>>, vector<8x32xf32>
    tpu.vector_store %arg16[%c0_63, %c0_64], %165 {strides = array<i32>} : memref<8x32xf32, #tpu.memory_space<vmem>>, vector<8x32xf32>,
    %c1_i32 = arith.constant 1 : i32
    %167 = arith.cmpi eq, %arg0, %c1_i32 : i32
    %168 = arith.extui %167 : i1 to i32
    %c0_i32_65 = arith.constant 0 : i32
    %169 = arith.cmpi ne, %168, %c0_i32_65 : i32
    scf.if %169 {
      %c0_66 = arith.constant 0 : index
      %c0_67 = arith.constant 0 : index
      %170 = vector.load %arg15[%c0_66, %c0_67] : memref<8x32xf32, #tpu.memory_space<vmem>>, vector<8x32xf32>
      tpu.vector_store %arg15[%c0_66, %c0_67], %165 {strides = array<i32>} : memref<8x32xf32, #tpu.memory_space<vmem>>, vector<8x32xf32>,
    } else {
    }
    return
  }
  func.func @transform_0(%arg0: i32) -> (i32, i32) {
    %c0_i32 = arith.constant 0 : i32
    %c0_i32_0 = arith.constant 0 : i32
    %c0_i32_1 = arith.constant 0 : i32
    return %c0_i32, %c0_i32_0 : i32, i32
  }
  func.func @transform_1(%arg0: i32) -> (i32, i32) {
    %c0_i32 = arith.constant 0 : i32
    %c0_i32_0 = arith.constant 0 : i32
    %c0_i32_1 = arith.constant 0 : i32
    return %c0_i32, %c0_i32_0 : i32, i32
  }
  func.func @transform_2(%arg0: i32) -> (i32, i32, i32) {
    %c0_i32 = arith.constant 0 : i32
    %c0_i32_0 = arith.constant 0 : i32
    %c0_i32_1 = arith.constant 0 : i32
    return %arg0, %c0_i32, %c0_i32_0 : i32, i32, i32
  }
  func.func @transform_3(%arg0: i32) -> (i32, i32, i32) {
    %c0_i32 = arith.constant 0 : i32
    %c0_i32_0 = arith.constant 0 : i32
    %c0_i32_1 = arith.constant 0 : i32
    return %arg0, %c0_i32, %c0_i32_0 : i32, i32, i32
  }
  func.func @transform_4(%arg0: i32) -> (i32, i32, i32, i32) {
    %c0_i32 = arith.constant 0 : i32
    %c0_i32_0 = arith.constant 0 : i32
    %c0_i32_1 = arith.constant 0 : i32
    %c0_i32_2 = arith.constant 0 : i32
    return %arg0, %c0_i32, %c0_i32_0, %c0_i32_1 : i32, i32, i32, i32
  }
  func.func @transform_5(%arg0: i32) -> (i32, i32, i32) {
    %c0_i32 = arith.constant 0 : i32
    %c0_i32_0 = arith.constant 0 : i32
    %c0_i32_1 = arith.constant 0 : i32
    return %arg0, %c0_i32, %c0_i32_0 : i32, i32, i32
  }
  func.func @transform_6(%arg0: i32) -> (i32, i32, i32) {
    %c0_i32 = arith.constant 0 : i32
    %c0_i32_0 = arith.constant 0 : i32
    %c0_i32_1 = arith.constant 0 : i32
    return %arg0, %c0_i32, %c0_i32_0 : i32, i32, i32
  }
  func.func @transform_7(%arg0: i32) -> (i32, i32, i32) {
    %c0_i32 = arith.constant 0 : i32
    %c0_i32_0 = arith.constant 0 : i32
    %c0_i32_1 = arith.constant 0 : i32
    return %arg0, %c0_i32, %c0_i32_0 : i32, i32, i32
  }
  func.func @transform_8(%arg0: i32) -> (i32, i32, i32) {
    %c0_i32 = arith.constant 0 : i32
    %c0_i32_0 = arith.constant 0 : i32
    %c0_i32_1 = arith.constant 0 : i32
    return %arg0, %c0_i32, %c0_i32_0 : i32, i32, i32
  }
  func.func @transform_9(%arg0: i32) -> (i32, i32, i32) {
    %c0_i32 = arith.constant 0 : i32
    %c0_i32_0 = arith.constant 0 : i32
    %c0_i32_1 = arith.constant 0 : i32
    return %arg0, %c0_i32, %c0_i32_0 : i32, i32, i32
  }
  func.func @transform_10(%arg0: i32) -> (i32, i32, i32) {
    %c0_i32 = arith.constant 0 : i32
    %c0_i32_0 = arith.constant 0 : i32
    %c0_i32_1 = arith.constant 0 : i32
    return %arg0, %c0_i32, %c0_i32_0 : i32, i32, i32
  }
  func.func @transform_11(%arg0: i32) -> (i32, i32, i32) {
    %c0_i32 = arith.constant 0 : i32
    %c0_i32_0 = arith.constant 0 : i32
    %c0_i32_1 = arith.constant 0 : i32
    return %arg0, %c0_i32, %c0_i32_0 : i32, i32, i32
  }
  func.func @transform_12(%arg0: i32) -> (i32, i32, i32) {
    %c0_i32 = arith.constant 0 : i32
    %c0_i32_0 = arith.constant 0 : i32
    %c0_i32_1 = arith.constant 0 : i32
    return %arg0, %c0_i32, %c0_i32_0 : i32, i32, i32
  }
  func.func @transform_13(%arg0: i32) -> (i32, i32, i32) {
    %c0_i32 = arith.constant 0 : i32
    %c0_i32_0 = arith.constant 0 : i32
    %c0_i32_1 = arith.constant 0 : i32
    return %arg0, %c0_i32, %c0_i32_0 : i32, i32, i32
  }
  func.func @transform_14(%arg0: i32) -> (i32, i32) {
    %c0_i32 = arith.constant 0 : i32
    %c0_i32_0 = arith.constant 0 : i32
    %c0_i32_1 = arith.constant 0 : i32
    return %c0_i32, %c0_i32_0 : i32, i32
  }
}

module attributes {stable_mosaic.version = 11 : i64} {
  func.func @_tail_kernel(%arg0: memref<2x32xf32, #tpu.memory_space<vmem>>, %arg1: memref<2x4xf32, #tpu.memory_space<vmem>>, %arg2: memref<32x32xbf16, #tpu.memory_space<vmem>>, %arg3: memref<1x32xf32, #tpu.memory_space<vmem>>, %arg4: memref<32x32xbf16, #tpu.memory_space<vmem>>, %arg5: memref<4x32xbf16, #tpu.memory_space<vmem>>, %arg6: memref<1x32xf32, #tpu.memory_space<vmem>>, %arg7: memref<32x32xbf16, #tpu.memory_space<vmem>>, %arg8: memref<1x32xf32, #tpu.memory_space<vmem>>, %arg9: memref<1x32xf32, #tpu.memory_space<vmem>>, %arg10: memref<1x32xf32, #tpu.memory_space<vmem>>, %arg11: memref<32x1xbf16, #tpu.memory_space<vmem>>, %arg12: memref<1x1xf32, #tpu.memory_space<vmem>>, %arg13: memref<32x32xbf16, #tpu.memory_space<vmem>>, %arg14: memref<1x32xf32, #tpu.memory_space<vmem>>, %arg15: memref<1x32xf32, #tpu.memory_space<vmem>>, %arg16: memref<1x32xf32, #tpu.memory_space<vmem>>, %arg17: memref<32x8xbf16, #tpu.memory_space<vmem>>, %arg18: memref<1x8xf32, #tpu.memory_space<vmem>>, %arg19: memref<2x128xf32, #tpu.memory_space<vmem>>) attributes {dimension_semantics = [], scalar_prefetch = 0 : i64, scratch_operands = 0 : i64, tpu.core_type = #tpu.core_type<tc>} {
    %c0 = arith.constant 0 : index
    %c0_0 = arith.constant 0 : index
    %0 = vector.load %arg0[%c0, %c0_0] : memref<2x32xf32, #tpu.memory_space<vmem>>, vector<2x32xf32>
    %c0_1 = arith.constant 0 : index
    %c0_2 = arith.constant 0 : index
    %1 = vector.load %arg2[%c0_1, %c0_2] : memref<32x32xbf16, #tpu.memory_space<vmem>>, vector<32x32xbf16>
    %2 = arith.truncf %0 : vector<2x32xf32> to vector<2x32xbf16>
    %cst = arith.constant dense<0.000000e+00> : vector<2x32xf32>
    %3 = tpu.matmul %2, %1, %cst {dimension_numbers = #tpu.dot_dimension_numbers<[1], [0], [0], [1], [0, 0, 1, 1], [], []>} : vector<2x32xbf16>, vector<32x32xbf16>, vector<2x32xf32> -> vector<2x32xf32>
    %c0_3 = arith.constant 0 : index
    %c0_4 = arith.constant 0 : index
    %4 = vector.load %arg3[%c0_3, %c0_4] : memref<1x32xf32, #tpu.memory_space<vmem>>, vector<1x32xf32>
    %5 = vector.broadcast %4 : vector<1x32xf32> to vector<2x32xf32>
    %6 = arith.addf %3, %5 : vector<2x32xf32>
    %c0_5 = arith.constant 0 : index
    %c0_6 = arith.constant 0 : index
    %7 = vector.load %arg1[%c0_5, %c0_6] : memref<2x4xf32, #tpu.memory_space<vmem>>, vector<2x4xf32>
    %c0_7 = arith.constant 0 : index
    %c0_8 = arith.constant 0 : index
    %8 = vector.load %arg4[%c0_7, %c0_8] : memref<32x32xbf16, #tpu.memory_space<vmem>>, vector<32x32xbf16>
    %9 = arith.truncf %6 : vector<2x32xf32> to vector<2x32xbf16>
    %cst_9 = arith.constant dense<0.000000e+00> : vector<2x32xf32>
    %10 = tpu.matmul %9, %8, %cst_9 {dimension_numbers = #tpu.dot_dimension_numbers<[1], [0], [0], [1], [0, 0, 1, 1], [], []>} : vector<2x32xbf16>, vector<32x32xbf16>, vector<2x32xf32> -> vector<2x32xf32>
    %c0_10 = arith.constant 0 : index
    %c0_11 = arith.constant 0 : index
    %11 = vector.load %arg5[%c0_10, %c0_11] : memref<4x32xbf16, #tpu.memory_space<vmem>>, vector<4x32xbf16>
    %12 = arith.truncf %7 : vector<2x4xf32> to vector<2x4xbf16>
    %cst_12 = arith.constant dense<0.000000e+00> : vector<2x32xf32>
    %13 = tpu.matmul %12, %11, %cst_12 {dimension_numbers = #tpu.dot_dimension_numbers<[1], [0], [0], [1], [0, 0, 1, 1], [], []>} : vector<2x4xbf16>, vector<4x32xbf16>, vector<2x32xf32> -> vector<2x32xf32>
    %14 = arith.addf %10, %13 : vector<2x32xf32>
    %c0_13 = arith.constant 0 : index
    %c0_14 = arith.constant 0 : index
    %15 = vector.load %arg6[%c0_13, %c0_14] : memref<1x32xf32, #tpu.memory_space<vmem>>, vector<1x32xf32>
    %16 = vector.broadcast %15 : vector<1x32xf32> to vector<2x32xf32>
    %17 = arith.addf %14, %16 : vector<2x32xf32>
    %cst_15 = arith.constant 0.000000e+00 : f32
    %18 = vector.broadcast %cst_15 : f32 to vector<2x32xf32>
    %19 = arith.maximumf %17, %18 : vector<2x32xf32>
    %c0_16 = arith.constant 0 : index
    %c0_17 = arith.constant 0 : index
    %20 = vector.load %arg7[%c0_16, %c0_17] : memref<32x32xbf16, #tpu.memory_space<vmem>>, vector<32x32xbf16>
    %21 = arith.truncf %19 : vector<2x32xf32> to vector<2x32xbf16>
    %cst_18 = arith.constant dense<0.000000e+00> : vector<2x32xf32>
    %22 = tpu.matmul %21, %20, %cst_18 {dimension_numbers = #tpu.dot_dimension_numbers<[1], [0], [0], [1], [0, 0, 1, 1], [], []>} : vector<2x32xbf16>, vector<32x32xbf16>, vector<2x32xf32> -> vector<2x32xf32>
    %c0_19 = arith.constant 0 : index
    %c0_20 = arith.constant 0 : index
    %23 = vector.load %arg8[%c0_19, %c0_20] : memref<1x32xf32, #tpu.memory_space<vmem>>, vector<1x32xf32>
    %24 = vector.broadcast %23 : vector<1x32xf32> to vector<2x32xf32>
    %25 = arith.addf %22, %24 : vector<2x32xf32>
    %c0_21 = arith.constant 0 : index
    %c0_22 = arith.constant 0 : index
    %26 = vector.load %arg9[%c0_21, %c0_22] : memref<1x32xf32, #tpu.memory_space<vmem>>, vector<1x32xf32>
    %27 = vector.broadcast %26 : vector<1x32xf32> to vector<2x32xf32>
    %28 = arith.mulf %25, %27 : vector<2x32xf32>
    %c0_23 = arith.constant 0 : index
    %c0_24 = arith.constant 0 : index
    %29 = vector.load %arg10[%c0_23, %c0_24] : memref<1x32xf32, #tpu.memory_space<vmem>>, vector<1x32xf32>
    %30 = vector.broadcast %29 : vector<1x32xf32> to vector<2x32xf32>
    %31 = arith.addf %28, %30 : vector<2x32xf32>
    %cst_25 = arith.constant 0.000000e+00 : f32
    %32 = vector.broadcast %cst_25 : f32 to vector<2x32xf32>
    %33 = arith.maximumf %31, %32 : vector<2x32xf32>
    %c0_26 = arith.constant 0 : index
    %c0_27 = arith.constant 0 : index
    %34 = vector.load %arg11[%c0_26, %c0_27] : memref<32x1xbf16, #tpu.memory_space<vmem>>, vector<32x1xbf16>
    %35 = arith.truncf %33 : vector<2x32xf32> to vector<2x32xbf16>
    %cst_28 = arith.constant dense<0.000000e+00> : vector<2x1xf32>
    %36 = tpu.matmul %35, %34, %cst_28 {dimension_numbers = #tpu.dot_dimension_numbers<[1], [0], [0], [1], [0, 0, 1, 1], [], []>} : vector<2x32xbf16>, vector<32x1xbf16>, vector<2x1xf32> -> vector<2x1xf32>
    %c0_29 = arith.constant 0 : index
    %c0_30 = arith.constant 0 : index
    %37 = vector.load %arg12[%c0_29, %c0_30] : memref<1x1xf32, #tpu.memory_space<vmem>>, vector<1x1xf32>
    %38 = vector.broadcast %37 : vector<1x1xf32> to vector<2x1xf32>
    %39 = arith.addf %36, %38 : vector<2x1xf32>
    %40 = arith.negf %39 : vector<2x1xf32>
    %41 = math.exp %40 : vector<2x1xf32>
    %cst_31 = arith.constant 1.000000e+00 : f32
    %42 = vector.broadcast %cst_31 : f32 to vector<2x1xf32>
    %43 = arith.addf %42, %41 : vector<2x1xf32>
    %44 = arith.divf %42, %43 : vector<2x1xf32>
    %c0_32 = arith.constant 0 : index
    %c0_33 = arith.constant 0 : index
    %45 = vector.load %arg13[%c0_32, %c0_33] : memref<32x32xbf16, #tpu.memory_space<vmem>>, vector<32x32xbf16>
    %46 = arith.truncf %19 : vector<2x32xf32> to vector<2x32xbf16>
    %cst_34 = arith.constant dense<0.000000e+00> : vector<2x32xf32>
    %47 = tpu.matmul %46, %45, %cst_34 {dimension_numbers = #tpu.dot_dimension_numbers<[1], [0], [0], [1], [0, 0, 1, 1], [], []>} : vector<2x32xbf16>, vector<32x32xbf16>, vector<2x32xf32> -> vector<2x32xf32>
    %c0_35 = arith.constant 0 : index
    %c0_36 = arith.constant 0 : index
    %48 = vector.load %arg14[%c0_35, %c0_36] : memref<1x32xf32, #tpu.memory_space<vmem>>, vector<1x32xf32>
    %49 = vector.broadcast %48 : vector<1x32xf32> to vector<2x32xf32>
    %50 = arith.addf %47, %49 : vector<2x32xf32>
    %c0_37 = arith.constant 0 : index
    %c0_38 = arith.constant 0 : index
    %51 = vector.load %arg15[%c0_37, %c0_38] : memref<1x32xf32, #tpu.memory_space<vmem>>, vector<1x32xf32>
    %52 = vector.broadcast %51 : vector<1x32xf32> to vector<2x32xf32>
    %53 = arith.mulf %50, %52 : vector<2x32xf32>
    %c0_39 = arith.constant 0 : index
    %c0_40 = arith.constant 0 : index
    %54 = vector.load %arg16[%c0_39, %c0_40] : memref<1x32xf32, #tpu.memory_space<vmem>>, vector<1x32xf32>
    %55 = vector.broadcast %54 : vector<1x32xf32> to vector<2x32xf32>
    %56 = arith.addf %53, %55 : vector<2x32xf32>
    %cst_41 = arith.constant 0.000000e+00 : f32
    %57 = vector.broadcast %cst_41 : f32 to vector<2x32xf32>
    %58 = arith.maximumf %56, %57 : vector<2x32xf32>
    %c0_42 = arith.constant 0 : index
    %c0_43 = arith.constant 0 : index
    %59 = vector.load %arg17[%c0_42, %c0_43] : memref<32x8xbf16, #tpu.memory_space<vmem>>, vector<32x8xbf16>
    %60 = arith.truncf %58 : vector<2x32xf32> to vector<2x32xbf16>
    %cst_44 = arith.constant dense<0.000000e+00> : vector<2x8xf32>
    %61 = tpu.matmul %60, %59, %cst_44 {dimension_numbers = #tpu.dot_dimension_numbers<[1], [0], [0], [1], [0, 0, 1, 1], [], []>} : vector<2x32xbf16>, vector<32x8xbf16>, vector<2x8xf32> -> vector<2x8xf32>
    %c0_45 = arith.constant 0 : index
    %c0_46 = arith.constant 0 : index
    %62 = vector.load %arg18[%c0_45, %c0_46] : memref<1x8xf32, #tpu.memory_space<vmem>>, vector<1x8xf32>
    %63 = vector.broadcast %62 : vector<1x8xf32> to vector<2x8xf32>
    %64 = arith.addf %61, %63 : vector<2x8xf32>
    %65 = arith.mulf %64, %64 : vector<2x8xf32>
    %cst_47 = arith.constant dense<0.000000e+00> : vector<2xf32>
    %66 = vector.multi_reduction <add>, %65, %cst_47 [1] : vector<2x8xf32> to vector<2xf32>
    %67 = vector.shape_cast %66 : vector<2xf32> to vector<2x1xf32>
    %cst_48 = arith.constant 1.000000e-24 : f32
    %68 = vector.broadcast %cst_48 : f32 to vector<2x1xf32>
    %69 = arith.maximumf %67, %68 : vector<2x1xf32>
    %70 = math.rsqrt %69 : vector<2x1xf32>
    %71 = vector.broadcast %70 : vector<2x1xf32> to vector<2x8xf32>
    %72 = arith.mulf %64, %71 : vector<2x8xf32>
    %cst_49 = arith.constant 0.000000e+00 : f32
    %73 = vector.broadcast %cst_49 : f32 to vector<2x119xf32>
    %74 = tpu.concatenate %72, %44, %73 in 1 : vector<2x8xf32>, vector<2x1xf32>, vector<2x119xf32> -> vector<2x128xf32>
    %c0_50 = arith.constant 0 : index
    %c0_51 = arith.constant 0 : index
    %75 = vector.load %arg19[%c0_50, %c0_51] : memref<2x128xf32, #tpu.memory_space<vmem>>, vector<2x128xf32>
    tpu.vector_store %arg19[%c0_50, %c0_51], %74 {strides = array<i32>} : memref<2x128xf32, #tpu.memory_space<vmem>>, vector<2x128xf32>,
    return
  }
}

</mosaic_0001>

<llo_original>
// kernel: style_transformer_forward.3
$region0: #{style_transformer_forward.3}
  #allocation0 [shape = 'u32[]', space=smem, size = 0x4, offset = 0x4, fixed_abs, tag = 'smem constant byte address 0x4 - core index']
  #allocation1 [shape = 'u32[72,128]{1,0:T(1,128)}', space=vmem, size = 0x9000, scoped, tag = 'internal scratch']
  %s0 = inlined_call_operand.vmem [shape: f32[8,16], index: 0, kind: input, shape index: {}]
  %s1 = inlined_call_operand.vmem [shape: bf16[16,32], index: 1, kind: input, shape index: {}]
  %s2 = inlined_call_operand.vmem [shape: f32[1,32], index: 2, kind: input, shape index: {}]
  %s3 = inlined_call_operand.vmem [shape: f32[1,32], index: 3, kind: input, shape index: {}]
  %s4 = inlined_call_operand.vmem [shape: f32[1,32], index: 4, kind: input, shape index: {}]
  %s5 = inlined_call_operand.vmem [shape: bf16[32,32], index: 5, kind: input, shape index: {}]
  %s6 = inlined_call_operand.vmem [shape: f32[1,32], index: 6, kind: input, shape index: {}]
  %s7 = inlined_call_operand.vmem [shape: f32[4,32], index: 7, kind: input, shape index: {}]
  %s8 = inlined_call_operand.vmem [shape: f32[8,32], index: 8, kind: output, shape index: {}]
  %s9 = sld [smem:[#allocation0]]
  $region42: #{style_transformer_forward.3} parent=0
    _
  %s11 = ssub.s32 1, %s9
  %s12 = scalar_select 0, %s11, %s9
  // Predicated region
  $region2: #{style_transformer_forward.3} parent=0 // pred_check
    _
  $region3: #{style_transformer_forward.3} parent=0 // pred_check_branch
    %14 = sbr.rel (0) target = $region5
  $region4: #{style_transformer_forward.3} parent=0 // pred_region
    _
  $region5: #{style_transformer_forward.3} parent=0 // pred_fallthru
    _
  // Predicated region
  $region6: #{style_transformer_forward.3} parent=0 // pred_check
    _
  $region7: #{style_transformer_forward.3} parent=0 // pred_check_branch
    %16 = sbr.rel (0) target = $region9
  $region8: #{style_transformer_forward.3} parent=0 // pred_region
    _
  $region9: #{style_transformer_forward.3} parent=0 // pred_fallthru
    _
  // Predicated region
  $region10: #{style_transformer_forward.3} parent=0 // pred_check
    _
  $region11: #{style_transformer_forward.3} parent=0 // pred_check_branch
    %18 = sbr.rel (0) target = $region13
  $region12: #{style_transformer_forward.3} parent=0 // pred_region
    _
  $region13: #{style_transformer_forward.3} parent=0 // pred_fallthru
    _
  // Predicated region
  $region14: #{style_transformer_forward.3} parent=0 // pred_check
    _
  $region15: #{style_transformer_forward.3} parent=0 // pred_check_branch
    %20 = sbr.rel (0) target = $region17
  $region16: #{style_transformer_forward.3} parent=0 // pred_region
    _
  $region17: #{style_transformer_forward.3} parent=0 // pred_fallthru
    _
  // Predicated region
  $region18: #{style_transformer_forward.3} parent=0 // pred_check
    _
  $region19: #{style_transformer_forward.3} parent=0 // pred_check_branch
    %22 = sbr.rel (0) target = $region21
  $region20: #{style_transformer_forward.3} parent=0 // pred_region
    _
  $region21: #{style_transformer_forward.3} parent=0 // pred_fallthru
    _
  // Predicated region
  $region22: #{style_transformer_forward.3} parent=0 // pred_check
    _
  $region23: #{style_transformer_forward.3} parent=0 // pred_check_branch
    %24 = sbr.rel (0) target = $region25
  $region24: #{style_transformer_forward.3} parent=0 // pred_region
    _
  $region25: #{style_transformer_forward.3} parent=0 // pred_fallthru
    _
  // Predicated region
  $region26: #{style_transformer_forward.3} parent=0 // pred_check
    _
  $region27: #{style_transformer_forward.3} parent=0 // pred_check_branch
    %26 = sbr.rel (0) target = $region29
  $region28: #{style_transformer_forward.3} parent=0 // pred_region
    _
  $region29: #{style_transformer_forward.3} parent=0 // pred_fallthru
    _
  // Predicated region
  $region30: #{style_transformer_forward.3} parent=0 // pred_check
    _
  $region31: #{style_transformer_forward.3} parent=0 // pred_check_branch
    %28 = sbr.rel (0) target = $region33
  $region32: #{style_transformer_forward.3} parent=0 // pred_region
    _
  $region33: #{style_transformer_forward.3} parent=0 // pred_fallthru
    _
  %v30 = vld [vmem:[%s0] sm:$0xff]
  %v31 = vld [vmem:[%s1] sm:$0xf]
  %v32 = vld [vmem:[%s1 + $0x4] sm:$0xf]
  %v33 = vpack.c.bf16 %v30, %v30
  %v34 = vld [vmem:[%s2] sm:$0x1]
  %v36 = vperm.slane %v34, 0
  %v40 = vunpack.c.l.b16 %v31
  %v41 = vunpack.c.l.b16 %v32
  %v42 = vpack.c.b16 %v41, %v40
  %vm44 = vcmask 130048
  %v46 = vsel %vm44, %v33, 0
  %48 = vmatpush.bf16.msra.mxu0 0
  %49 = vmatpush.bf16.msra.mxu0 0
  %50 = vmatpush.bf16.msra.mxu0 0
  %51 = vmatpush.bf16.msra.mxu0 0
  %52 = vmatpush.bf16.msra.mxu0 0
  %53 = vmatpush.bf16.msra.mxu0 0
  %54 = vmatpush.bf16.msra.mxu0 0
  %55 = vmatpush.bf16.msra.mxu0 %v42
  %56 = vmatmul.bf16.gmra.mxu0 %v46
  %v57 = vpop.f32.mrf.mxu0
  %v58 = vadd.f32 %v36, %v57
  %v59 = vpop.f32.mrf.mxu0
  %60 = vdwg.mxu0
  %v61 = vld [vmem:[%s3] sm:$0x1]
  %v63 = vperm.slane %v61, 0
  %v65 = vmul.f32 %v58, %v63
  %v66 = vld [vmem:[%s4] sm:$0x1]
  %v68 = vperm.slane %v66, 0
  %v70 = vadd.f32 %v65, %v68
  %v71 = vmax.f32 %v70, 0.0
  %v72 = vld [vmem:[%s5] sm:$0xf]
  %v73 = vld [vmem:[%s5 + $0x4] sm:$0xf]
  %v74 = vld [vmem:[%s5 + $0x8] sm:$0xf]
  %v75 = vld [vmem:[%s5 + $0xc] sm:$0xf]
  %v76 = vpack.c.bf16 %v71, %v71
  %v77 = vld [vmem:[%s6] sm:$0x1]
  %v79 = vperm.slane %v77, 0
  %v85 = vunpack.c.l.b16 %v72
  %v86 = vunpack.c.l.b16 %v73
  %v87 = vunpack.c.l.b16 %v74
  %v88 = vunpack.c.l.b16 %v75
  %v89 = vpack.c.b16 %v86, %v85
  %v90 = vpack.c.b16 %v88, %v87
  %vm93 = vcmask 261120
  %v95 = vsel %vm93, %v76, 0
  %97 = vmatpush.bf16.msra.mxu0 0
  %98 = vmatpush.bf16.msra.mxu0 0
  %99 = vmatpush.bf16.msra.mxu0 0
  %100 = vmatpush.bf16.msra.mxu0 0
  %101 = vmatpush.bf16.msra.mxu0 0
  %102 = vmatpush.bf16.msra.mxu0 0
  %103 = vmatpush.bf16.msra.mxu0 %v90
  %104 = vmatpush.bf16.msra.mxu0 %v89
  %105 = vmatmul.bf16.gmra.mxu0 %v95
  %v106 = vpop.f32.mrf.mxu0
  %v107 = vadd.f32 %v79, %v106
  %v108 = vpop.f32.mrf.mxu0
  %109 = vdwg.mxu0
  %v110 = vld [vmem:[%s7] sm:$0xf]
  %v111 = vperm.slane %v110, 0
  %v112 = vadd.f32 %v107, %v111
  %v113 = vperm.slane %v110, 1
  %v114 = vadd.f32 %v107, %v113
  %v115 = vperm.slane %v110, 2
  %v116 = vadd.f32 %v107, %v115
  %v117 = vperm.slane %v110, 3
  %v118 = vadd.f32 %v107, %v117
  %vm119 = vcmask 1041408
  %v120 = vsel %vm119, %v112, %v114
  %vm121 = vcmask 1043456
  %v122 = vsel %vm121, %v120, %v116
  %vm123 = vcmask 1045504
  %v124 = vsel %vm123, %v122, %v118
  %125 = vst.msk [vmem:[%s8] sm:$0xff] %vm93, %v124
  // Predicated region
  $region34: #{style_transformer_forward.3} parent=0 // pred_check
    _
  $region35: #{style_transformer_forward.3} parent=0 // pred_check_branch
    %127 = sbr.rel (0) target = $region37
  $region36: #{style_transformer_forward.3} parent=0 // pred_region
    _
  $region37: #{style_transformer_forward.3} parent=0 // pred_fallthru
    _
  // Predicated region
  $region38: #{style_transformer_forward.3} parent=0 // pred_check
    _
  $region39: #{style_transformer_forward.3} parent=0 // pred_check_branch
    %129 = sbr.rel (0) target = $region41
  $region40: #{style_transformer_forward.3} parent=0 // pred_region
    _
  $region41: #{style_transformer_forward.3} parent=0 // pred_fallthru
    _

// kernel: style_transformer_forward.5
$region0: #{style_transformer_forward.5}
  #allocation0 [shape = 'u32[]', space=smem, size = 0x4, offset = 0x4, fixed_abs, tag = 'smem constant byte address 0x4 - core index']
  #allocation1 [shape = 'u32[72,128]{1,0:T(1,128)}', space=vmem, size = 0x9000, scoped, tag = 'internal scratch']
  #allocation2 [shape = 'f32[1,1]{1,0:T(1,128)S(1)}', space=vmem, size = 0x200, scoped, tag = 'scoped memory for style_transformer_forward.5']
  %s0 = inlined_call_operand.vmem [shape: f32[2,32], index: 0, kind: input, shape index: {}]
  %s1 = inlined_call_operand.vmem [shape: f32[2,4], index: 1, kind: input, shape index: {}]
  %s2 = inlined_call_operand.vmem [shape: bf16[32,32], index: 2, kind: input, shape index: {}]
  %s3 = inlined_call_operand.vmem [shape: f32[1,32], index: 3, kind: input, shape index: {}]
  %s4 = inlined_call_operand.vmem [shape: bf16[32,32], index: 4, kind: input, shape index: {}]
  %s5 = inlined_call_operand.vmem [shape: bf16[4,32], index: 5, kind: input, shape index: {}]
  %s6 = inlined_call_operand.vmem [shape: f32[1,32], index: 6, kind: input, shape index: {}]
  %s7 = inlined_call_operand.vmem [shape: bf16[32,32], index: 7, kind: input, shape index: {}]
  %s8 = inlined_call_operand.vmem [shape: f32[1,32], index: 8, kind: input, shape index: {}]
  %s9 = inlined_call_operand.vmem [shape: f32[1,32], index: 9, kind: input, shape index: {}]
  %s10 = inlined_call_operand.vmem [shape: f32[1,32], index: 10, kind: input, shape index: {}]
  %s11 = inlined_call_operand.vmem [shape: bf16[32,1], index: 11, kind: input, shape index: {}]
  %s12 = inlined_call_operand.<no memory space> [shape: f32[1,1], index: 12, kind: input, shape index: {}]
  %s13 = inlined_call_operand.vmem [shape: bf16[32,32], index: 13, kind: input, shape index: {}]
  %s14 = inlined_call_operand.vmem [shape: f32[1,32], index: 14, kind: input, shape index: {}]
  %s15 = inlined_call_operand.vmem [shape: f32[1,32], index: 15, kind: input, shape index: {}]
  %s16 = inlined_call_operand.vmem [shape: f32[1,32], index: 16, kind: input, shape index: {}]
  %s17 = inlined_call_operand.vmem [shape: bf16[32,8], index: 17, kind: input, shape index: {}]
  %s18 = inlined_call_operand.vmem [shape: f32[1,8], index: 18, kind: input, shape index: {}]
  %s19 = inlined_call_operand.vmem [shape: f32[2,128], index: 19, kind: output, shape index: {}]
  %s20 = sld [smem:[#allocation0]]
  $region86: #{style_transformer_forward.5} parent=0
    _
  %s22 = ssub.s32 1, %s20
  %s23 = scalar_select 0, %s22, %s20
  %v24 = vstv %s12
  %25 = vst [vmem:[#allocation2] sm:$0x1] %v24
  // Predicated region
  $region2: #{style_transformer_forward.5} parent=0 // pred_check
    _
  $region3: #{style_transformer_forward.5} parent=0 // pred_check_branch
    %27 = sbr.rel (0) target = $region5
  $region4: #{style_transformer_forward.5} parent=0 // pred_region
    _
  $region5: #{style_transformer_forward.5} parent=0 // pred_fallthru
    _
  // Predicated region
  $region6: #{style_transformer_forward.5} parent=0 // pred_check
    _
  $region7: #{style_transformer_forward.5} parent=0 // pred_check_branch
    %29 = sbr.rel (0) target = $region9
  $region8: #{style_transformer_forward.5} parent=0 // pred_region
    _
  $region9: #{style_transformer_forward.5} parent=0 // pred_fallthru
    _
  // Predicated region
  $region10: #{style_transformer_forward.5} parent=0 // pred_check
    _
  $region11: #{style_transformer_forward.5} parent=0 // pred_check_branch
    %31 = sbr.rel (0) target = $region13
  $region12: #{style_transformer_forward.5} parent=0 // pred_region
    _
  $region13: #{style_transformer_forward.5} parent=0 // pred_fallthru
    _
  // Predicated region
  $region14: #{style_transformer_forward.5} parent=0 // pred_check
    _
  $region15: #{style_transformer_forward.5} parent=0 // pred_check_branch
    %33 = sbr.rel (0) target = $region17
  $region16: #{style_transformer_forward.5} parent=0 // pred_region
    _
  $region17: #{style_transformer_forward.5} parent=0 // pred_fallthru
    _
  // Predicated region
  $region18: #{style_transformer_forward.5} parent=0 // pred_check
    _
  $region19: #{style_transformer_forward.5} parent=0 // pred_check_branch
    %35 = sbr.rel (0) target = $region21
  $region20: #{style_transformer_forward.5} parent=0 // pred_region
    _
  $region21: #{style_transformer_forward.5} parent=0 // pred_fallthru
    _
  // Predicated region
  $region22: #{style_transformer_forward.5} parent=0 // pred_check
    _
  $region23: #{style_transformer_forward.5} parent=0 // pred_check_branch
    %37 = sbr.rel (0) target = $region25
  $region24: #{style_transformer_forward.5} parent=0 // pred_region
    _
  $region25: #{style_transformer_forward.5} parent=0 // pred_fallthru
    _
  // Predicated region
  $region26: #{style_transformer_forward.5} parent=0 // pred_check
    _
  $region27: #{style_transformer_forward.5} parent=0 // pred_check_branch
    %39 = sbr.rel (0) target = $region29
  $region28: #{style_transformer_forward.5} parent=0 // pred_region
    _
  $region29: #{style_transformer_forward.5} parent=0 // pred_fallthru
    _
  // Predicated region
  $region30: #{style_transformer_forward.5} parent=0 // pred_check
    _
  $region31: #{style_transformer_forward.5} parent=0 // pred_check_branch
    %41 = sbr.rel (0) target = $region33
  $region32: #{style_transformer_forward.5} parent=0 // pred_region
    _
  $region33: #{style_transformer_forward.5} parent=0 // pred_fallthru
    _
  // Predicated region
  $region34: #{style_transformer_forward.5} parent=0 // pred_check
    _
  $region35: #{style_transformer_forward.5} parent=0 // pred_check_branch
    %43 = sbr.rel (0) target = $region37
  $region36: #{style_transformer_forward.5} parent=0 // pred_region
    _
  $region37: #{style_transformer_forward.5} parent=0 // pred_fallthru
    _
  // Predicated region
  $region38: #{style_transformer_forward.5} parent=0 // pred_check
    _
  $region39: #{style_transformer_forward.5} parent=0 // pred_check_branch
    %45 = sbr.rel (0) target = $region41
  $region40: #{style_transformer_forward.5} parent=0 // pred_region
    _
  $region41: #{style_transformer_forward.5} parent=0 // pred_fallthru
    _
  // Predicated region
  $region42: #{style_transformer_forward.5} parent=0 // pred_check
    _
  $region43: #{style_transformer_forward.5} parent=0 // pred_check_branch
    %47 = sbr.rel (0) target = $region45
  $region44: #{style_transformer_forward.5} parent=0 // pred_region
    _
  $region45: #{style_transformer_forward.5} parent=0 // pred_fallthru
    _
  // Predicated region
  $region46: #{style_transformer_forward.5} parent=0 // pred_check
    _
  $region47: #{style_transformer_forward.5} parent=0 // pred_check_branch
    %49 = sbr.rel (0) target = $region49
  $region48: #{style_transformer_forward.5} parent=0 // pred_region
    _
  $region49: #{style_transformer_forward.5} parent=0 // pred_fallthru
    _
  // Predicated region
  $region50: #{style_transformer_forward.5} parent=0 // pred_check
    _
  $region51: #{style_transformer_forward.5} parent=0 // pred_check_branch
    %51 = sbr.rel (0) target = $region53
  $region52: #{style_transformer_forward.5} parent=0 // pred_region
    _
  $region53: #{style_transformer_forward.5} parent=0 // pred_fallthru
    _
  // Predicated region
  $region54: #{style_transformer_forward.5} parent=0 // pred_check
    _
  $region55: #{style_transformer_forward.5} parent=0 // pred_check_branch
    %53 = sbr.rel (0) target = $region57
  $region56: #{style_transformer_forward.5} parent=0 // pred_region
    _
  $region57: #{style_transformer_forward.5} parent=0 // pred_fallthru
    _
  // Predicated region
  $region58: #{style_transformer_forward.5} parent=0 // pred_check
    _
  $region59: #{style_transformer_forward.5} parent=0 // pred_check_branch
    %55 = sbr.rel (0) target = $region61
  $region60: #{style_transformer_forward.5} parent=0 // pred_region
    _
  $region61: #{style_transformer_forward.5} parent=0 // pred_fallthru
    _
  // Predicated region
  $region62: #{style_transformer_forward.5} parent=0 // pred_check
    _
  $region63: #{style_transformer_forward.5} parent=0 // pred_check_branch
    %57 = sbr.rel (0) target = $region65
  $region64: #{style_transformer_forward.5} parent=0 // pred_region
    _
  $region65: #{style_transformer_forward.5} parent=0 // pred_fallthru
    _
  // Predicated region
  $region66: #{style_transformer_forward.5} parent=0 // pred_check
    _
  $region67: #{style_transformer_forward.5} parent=0 // pred_check_branch
    %59 = sbr.rel (0) target = $region69
  $region68: #{style_transformer_forward.5} parent=0 // pred_region
    _
  $region69: #{style_transformer_forward.5} parent=0 // pred_fallthru
    _
  // Predicated region
  $region70: #{style_transformer_forward.5} parent=0 // pred_check
    _
  $region71: #{style_transformer_forward.5} parent=0 // pred_check_branch
    %61 = sbr.rel (0) target = $region73
  $region72: #{style_transformer_forward.5} parent=0 // pred_region
    _
  $region73: #{style_transformer_forward.5} parent=0 // pred_fallthru
    _
  // Predicated region
  $region74: #{style_transformer_forward.5} parent=0 // pred_check
    _
  $region75: #{style_transformer_forward.5} parent=0 // pred_check_branch
    %63 = sbr.rel (0) target = $region77
  $region76: #{style_transformer_forward.5} parent=0 // pred_region
    _
  $region77: #{style_transformer_forward.5} parent=0 // pred_fallthru
    _
  %v65 = vld [vmem:[%s0] sm:$0x3]
  %v66 = vld [vmem:[%s2] sm:$0xf]
  %v67 = vld [vmem:[%s2 + $0x4] sm:$0xf]
  %v68 = vld [vmem:[%s2 + $0x8] sm:$0xf]
  %v69 = vld [vmem:[%s2 + $0xc] sm:$0xf]
  %v70 = vpack.c.bf16 %v65, %v65
  %v71 = vld [vmem:[%s3] sm:$0x1]
  %v73 = vperm.slane %v71, 0
  %v79 = vunpack.c.l.b16 %v66
  %v80 = vunpack.c.l.b16 %v67
  %v81 = vunpack.c.l.b16 %v68
  %v82 = vunpack.c.l.b16 %v69
  %v83 = vpack.c.b16 %v80, %v79
  %v84 = vpack.c.b16 %v82, %v81
  %vm87 = vcmask 261120
  %v89 = vsel %vm87, %v70, 0
  %91 = vmatpush.bf16.msra.mxu0 0
  %92 = vmatpush.bf16.msra.mxu0 0
  %93 = vmatpush.bf16.msra.mxu0 0
  %94 = vmatpush.bf16.msra.mxu0 0
  %95 = vmatpush.bf16.msra.mxu0 0
  %96 = vmatpush.bf16.msra.mxu0 0
  %97 = vmatpush.bf16.msra.mxu0 %v84
  %98 = vmatpush.bf16.msra.mxu0 %v83
  %99 = vmatmul.bf16.gmra.mxu0 %v89
  %v100 = vpop.f32.mrf.mxu0
  %v101 = vadd.f32 %v73, %v100
  %v102 = vpop.f32.mrf.mxu0
  %103 = vdwg.mxu0
  %v104 = vld [vmem:[%s1] sm:$0x3]
  %v105 = vld [vmem:[%s4] sm:$0xf]
  %v106 = vld [vmem:[%s4 + $0x4] sm:$0xf]
  %v107 = vld [vmem:[%s4 + $0x8] sm:$0xf]
  %v108 = vld [vmem:[%s4 + $0xc] sm:$0xf]
  %v109 = vpack.c.bf16 %v101, %v101
  %v110 = vld [vmem:[%s5] sm:$0x3]
  %v111 = vpack.c.bf16 %v104, %v104
  %vm112 = vcmask 31744
  %v114 = vsel %vm112, %v111, 0
  %vm116 = vcmask 1041408
  %v118 = vsel %vm116, %v110, 0
  %120 = vmatpush.bf16.msra.mxu0 0
  %121 = vmatpush.bf16.msra.mxu0 0
  %122 = vmatpush.bf16.msra.mxu0 0
  %123 = vmatpush.bf16.msra.mxu0 0
  %124 = vmatpush.bf16.msra.mxu0 0
  %125 = vmatpush.bf16.msra.mxu0 0
  %126 = vmatpush.bf16.msra.mxu0 0
  %127 = vmatpush.bf16.msra.mxu0 %v118
  %128 = vmatmul.bf16.gmra.mxu0 %v114
  %v129 = vpop.f32.mrf.mxu0
  %v130 = vadd.f32 0.0, %v129
  %v131 = vpop.f32.mrf.mxu0
  %132 = vdwg.mxu0
  %v137 = vunpack.c.l.b16 %v105
  %v138 = vunpack.c.l.b16 %v106
  %v139 = vunpack.c.l.b16 %v107
  %v140 = vunpack.c.l.b16 %v108
  %v141 = vpack.c.b16 %v138, %v137
  %v142 = vpack.c.b16 %v140, %v139
  %v146 = vsel %vm87, %v109, 0
  %148 = vmatpush.bf16.msra.mxu0 0
  %149 = vmatpush.bf16.msra.mxu0 0
  %150 = vmatpush.bf16.msra.mxu0 0
  %151 = vmatpush.bf16.msra.mxu0 0
  %152 = vmatpush.bf16.msra.mxu0 0
  %153 = vmatpush.bf16.msra.mxu0 0
  %154 = vmatpush.bf16.msra.mxu0 %v142
  %155 = vmatpush.bf16.msra.mxu0 %v141
  %156 = vmatmul.bf16.gmra.mxu0 %v146
  %v157 = vpop.f32.mrf.mxu0
  %v158 = vadd.f32 %v130, %v157
  %v159 = vpop.f32.mrf.mxu0
  %160 = vdwg.mxu0
  %v161 = vld [vmem:[%s6] sm:$0x1]
  %v163 = vperm.slane %v161, 0
  %v165 = vadd.f32 %v158, %v163
  %v166 = vmax.f32 %v165, 0.0
  %v167 = vld [vmem:[%s7] sm:$0xf]
  %v168 = vld [vmem:[%s7 + $0x4] sm:$0xf]
  %v169 = vld [vmem:[%s7 + $0x8] sm:$0xf]
  %v170 = vld [vmem:[%s7 + $0xc] sm:$0xf]
  %v171 = vpack.c.bf16 %v166, %v166
  %v172 = vld [vmem:[%s8] sm:$0x1]
  %v174 = vperm.slane %v172, 0
  %v180 = vunpack.c.l.b16 %v167
  %v181 = vunpack.c.l.b16 %v168
  %v182 = vunpack.c.l.b16 %v169
  %v183 = vunpack.c.l.b16 %v170
  %v184 = vpack.c.b16 %v181, %v180
  %v185 = vpack.c.b16 %v183, %v182
  %v189 = vsel %vm87, %v171, 0
  %191 = vmatpush.bf16.msra.mxu0 0
  %192 = vmatpush.bf16.msra.mxu0 0
  %193 = vmatpush.bf16.msra.mxu0 0
  %194 = vmatpush.bf16.msra.mxu0 0
  %195 = vmatpush.bf16.msra.mxu0 0
  %196 = vmatpush.bf16.msra.mxu0 0
  %197 = vmatpush.bf16.msra.mxu0 %v185
  %198 = vmatpush.bf16.msra.mxu0 %v184
  %199 = vmatmul.bf16.gmra.mxu0 %v189
  %v200 = vpop.f32.mrf.mxu0
  %v201 = vadd.f32 %v174, %v200
  %v202 = vpop.f32.mrf.mxu0
  %203 = vdwg.mxu0
  %v204 = vld [vmem:[%s9] sm:$0x1]
  %v206 = vperm.slane %v204, 0
  %v208 = vmul.f32 %v201, %v206
  %v209 = vld [vmem:[%s10] sm:$0x1]
  %v211 = vperm.slane %v209, 0
  %v213 = vadd.f32 %v208, %v211
  %v214 = vmax.f32 %v213, 0.0
  %v215 = vld [vmem:[%s11] sm:$0xf]
  %v216 = vld [vmem:[%s11 + $0x4] sm:$0xf]
  %v217 = vld [vmem:[%s11 + $0x8] sm:$0xf]
  %v218 = vld [vmem:[%s11 + $0xc] sm:$0xf]
  %v219 = vpack.c.bf16 %v214, %v214
  %v220 = vld [vmem:[#allocation2] sm:$0x1]
  %v222 = vperm.slane %v220, 0
  %v228 = vunpack.c.l.b16 %v215
  %v229 = vunpack.c.l.b16 %v216
  %v230 = vunpack.c.l.b16 %v217
  %v231 = vunpack.c.l.b16 %v218
  %v232 = vpack.c.b16 %v229, %v228
  %v233 = vpack.c.b16 %v231, %v230
  %v237 = vsel %vm87, %v219, 0
  %239 = vmatpush.bf16.msra.mxu0 0
  %240 = vmatpush.bf16.msra.mxu0 0
  %241 = vmatpush.bf16.msra.mxu0 0
  %242 = vmatpush.bf16.msra.mxu0 0
  %243 = vmatpush.bf16.msra.mxu0 0
  %244 = vmatpush.bf16.msra.mxu0 0
  %245 = vmatpush.bf16.msra.mxu0 %v233
  %246 = vmatpush.bf16.msra.mxu0 %v232
  %247 = vmatmul.bf16.gmra.mxu0 %v237
  %v248 = vpop.f32.mrf.mxu0
  %v249 = vadd.f32 %v222, %v248
  %v250 = vpop.f32.mrf.mxu0
  %251 = vdwg.mxu0
  %v252 = vxor.u32 %v249, 2147483648
  %v253 = vmul.f32 %v252, 1.442695
  %v254 = vpow.pop %v253
  %v255 = vadd.f32 %v254, 1.0
  %v256 = vrcp.pop %v255
  %v257 = vmul.f32 %v255, %v256
  %v258 = vsub.f32 1.0, %v257
  %v259 = vmul.f32 %v256, %v258
  %v260 = vadd.f32 %v256, %v259
  %vm261 = vweird.f32 %v255
  %vm262 = vweird.f32 %v256
  %vm263 = vmor %vm261, %vm262
  %v264 = vsel %vm263, %v256, %v260
  %v265 = vand.u32 2147483647, %v255
  %vm266 = vcmp.eq.f32.partialorder %v265, 8.507059e+37
  %v267 = vand.u32 %v255, 2147483648
  %v268 = vor.u32 1.1754944e-38, %v267
  %v269 = vsel %vm266, %v268, %v264
  %v270 = vmul.f32 1.0, %v269
  %v271 = vld [vmem:[%s13] sm:$0xf]
  %v272 = vld [vmem:[%s13 + $0x4] sm:$0xf]
  %v273 = vld [vmem:[%s13 + $0x8] sm:$0xf]
  %v274 = vld [vmem:[%s13 + $0xc] sm:$0xf]
  %v275 = vld [vmem:[%s14] sm:$0x1]
  %v277 = vperm.slane %v275, 0
  %v283 = vunpack.c.l.b16 %v271
  %v284 = vunpack.c.l.b16 %v272
  %v285 = vunpack.c.l.b16 %v273
  %v286 = vunpack.c.l.b16 %v274
  %v287 = vpack.c.b16 %v284, %v283
  %v288 = vpack.c.b16 %v286, %v285
  %291 = vmatpush.bf16.msra.mxu0 0
  %292 = vmatpush.bf16.msra.mxu0 0
  %293 = vmatpush.bf16.msra.mxu0 0
  %294 = vmatpush.bf16.msra.mxu0 0
  %295 = vmatpush.bf16.msra.mxu0 0
  %296 = vmatpush.bf16.msra.mxu0 0
  %297 = vmatpush.bf16.msra.mxu0 %v288
  %298 = vmatpush.bf16.msra.mxu0 %v287
  %299 = vmatmul.bf16.gmra.mxu0 %v189
  %v300 = vpop.f32.mrf.mxu0
  %v301 = vadd.f32 %v277, %v300
  %v302 = vpop.f32.mrf.mxu0
  %303 = vdwg.mxu0
  %v304 = vld [vmem:[%s15] sm:$0x1]
  %v306 = vperm.slane %v304, 0
  %v308 = vmul.f32 %v301, %v306
  %v309 = vld [vmem:[%s16] sm:$0x1]
  %v311 = vperm.slane %v309, 0
  %v313 = vadd.f32 %v308, %v311
  %v314 = vmax.f32 %v313, 0.0
  %v315 = vld [vmem:[%s17] sm:$0xf]
  %v316 = vld [vmem:[%s17 + $0x4] sm:$0xf]
  %v317 = vld [vmem:[%s17 + $0x8] sm:$0xf]
  %v318 = vld [vmem:[%s17 + $0xc] sm:$0xf]
  %v319 = vpack.c.bf16 %v314, %v314
  %v320 = vld [vmem:[%s18] sm:$0x1]
  %v322 = vperm.slane %v320, 0
  %v328 = vunpack.c.l.b16 %v315
  %v329 = vunpack.c.l.b16 %v316
  %v330 = vunpack.c.l.b16 %v317
  %v331 = vunpack.c.l.b16 %v318
  %v332 = vpack.c.b16 %v329, %v328
  %v333 = vpack.c.b16 %v331, %v330
  %v337 = vsel %vm87, %v319, 0
  %339 = vmatpush.bf16.msra.mxu0 0
  %340 = vmatpush.bf16.msra.mxu0 0
  %341 = vmatpush.bf16.msra.mxu0 0
  %342 = vmatpush.bf16.msra.mxu0 0
  %343 = vmatpush.bf16.msra.mxu0 0
  %344 = vmatpush.bf16.msra.mxu0 0
  %345 = vmatpush.bf16.msra.mxu0 %v333
  %346 = vmatpush.bf16.msra.mxu0 %v332
  %347 = vmatmul.bf16.gmra.mxu0 %v337
  %v348 = vpop.f32.mrf.mxu0
  %v349 = vadd.f32 %v322, %v348
  %v350 = vpop.f32.mrf.mxu0
  %351 = vdwg.mxu0
  %v352 = vmul.f32 %v349, %v349
  %vm353 = vcmask 58368
  %v354 = vsel %vm353, %v352, 0.0
  %355 = vadd.xlane.f32.xlu0 %v354
  %v356 = vpop.xlane.xlu0 %355
  %v357 = vmax.f32 %v356, 1e-24
  %v358 = vrsqrt.pop %v357
  %v359 = vmul.f32 %v358, %v357
  %v360 = vmul.f32 %v359, %v358
  %v361 = vmul.f32 0.5, %v360
  %v362 = vsub.f32 1.5, %v361
  %v363 = vmul.f32 %v358, %v362
  %vm364 = vweird.f32 %v357
  %vm365 = vweird.f32 %v358
  %vm366 = vmor %vm364, %vm365
  %v367 = vsel %vm366, %v358, %v363
  %v368 = vmul.f32 %v349, %v367
  %370 = vrot.lane.b32.xlu0 %v270, 8
  %v371 = vpop.permute.xlu0 %370
  %vm373 = vcmask 64512
  %v374 = vsel %vm373, %v368, %v371
  %vm375 = vcmask 72704
  %v376 = vsel %vm375, %v374, 0.0
  %377 = vst [vmem:[%s19] sm:$0x3] %v376
  // Predicated region
  $region78: #{style_transformer_forward.5} parent=0 // pred_check
    _
  $region79: #{style_transformer_forward.5} parent=0 // pred_check_branch
    %379 = sbr.rel (0) target = $region81
  $region80: #{style_transformer_forward.5} parent=0 // pred_region
    _
  $region81: #{style_transformer_forward.5} parent=0 // pred_fallthru
    _
  // Predicated region
  $region82: #{style_transformer_forward.5} parent=0 // pred_check
    _
  $region83: #{style_transformer_forward.5} parent=0 // pred_check_branch
    %381 = sbr.rel (0) target = $region85
  $region84: #{style_transformer_forward.5} parent=0 // pred_region
    _
  $region85: #{style_transformer_forward.5} parent=0 // pred_fallthru
    _

// kernel: style_transformer_forward.4
$region0: #{style_transformer_forward.4}
  #allocation0 [shape = 'u32[]', space=smem, size = 0x4, offset = 0x4, fixed_abs, tag = 'smem constant byte address 0x4 - core index']
  #allocation1 [shape = 'u32[72,128]{1,0:T(1,128)}', space=vmem, size = 0x9000, scoped, tag = 'internal scratch']
  #allocation2 [shape = 'f32[8,32]{1,0:T(8,128)}', space=vmem, size = 0x1000, scoped, tag = 'scratch operand']
  %s0 = inlined_call_operand.vmem [shape: f32[8,32], index: 0, kind: input, shape index: {}]
  %s1 = inlined_call_operand.vmem [shape: f32[8,8], index: 1, kind: input, shape index: {}]
  %s2 = inlined_call_operand.vmem [shape: bf16[2,32,96], index: 2, kind: input, shape index: {}]
  %s3 = inlined_call_operand.vmem [shape: f32[2,1,96], index: 3, kind: input, shape index: {}]
  %s4 = inlined_call_operand.vmem [shape: bf16[2,4,8,32], index: 4, kind: input, shape index: {}]
  %s5 = inlined_call_operand.vmem [shape: f32[2,1,32], index: 5, kind: input, shape index: {}]
  %s6 = inlined_call_operand.vmem [shape: f32[2,1,32], index: 6, kind: input, shape index: {}]
  %s7 = inlined_call_operand.vmem [shape: f32[2,1,32], index: 7, kind: input, shape index: {}]
  %s8 = inlined_call_operand.vmem [shape: bf16[2,32,2048], index: 8, kind: input, shape index: {}]
  %s9 = inlined_call_operand.vmem [shape: f32[2,1,2048], index: 9, kind: input, shape index: {}]
  %s10 = inlined_call_operand.vmem [shape: bf16[2,2048,32], index: 10, kind: input, shape index: {}]
  %s11 = inlined_call_operand.vmem [shape: f32[2,1,32], index: 11, kind: input, shape index: {}]
  %s12 = inlined_call_operand.vmem [shape: f32[2,1,32], index: 12, kind: input, shape index: {}]
  %s13 = inlined_call_operand.vmem [shape: f32[2,1,32], index: 13, kind: input, shape index: {}]
  %s14 = inlined_call_operand.vmem [shape: f32[8,32], index: 14, kind: output, shape index: {}]
  %s15 = sld [smem:[#allocation0]]
  $region97: #{style_transformer_forward.4} parent=0
    _
  %s17 = ssub.s32 1, %s15
  %s18 = scalar_select 0, %s17, %s15
  loop: start=0, step=1, limit=4
  $region2: #{style_transformer_forward.4} parent=0 // loop_pre_header
    _
  $region3: #{style_transformer_forward.4} parent=0 // loop_header
    %s20 = sphi 0, %s24
    %p21 = scmp.ge.s32.totalorder %s20, 4
    %s28 = sphi 0, %s28
    %s30 = sphi 0, %s28
    %s31 = sphi 0, %s30
    %s45 = sphi 0, %s31
    %s49 = sphi 0, %s49
    %s51 = sphi 0, %s49
    %s52 = sphi 0, %s51
    %s66 = sphi 0, %s52
    %s72 = sphi 0, %s74
    %s75 = sphi 0, %s72
    %s76 = sphi 0, %s75
    %s92 = sphi 0, %s76
    %s98 = sphi 0, %s100
    %s101 = sphi 0, %s98
    %s102 = sphi 0, %s101
    %s118 = sphi 0, %s102
    %s124 = sphi 0, %s126
    %s127 = sphi 0, %s124
    %s128 = sphi 0, %s127
    %s144 = sphi 0, %s128
    %s150 = sphi 0, %s152
    %s153 = sphi 0, %s150
    %s154 = sphi 0, %s153
    %s170 = sphi 0, %s154
    %s176 = sphi 0, %s178
    %s179 = sphi 0, %s176
    %s180 = sphi 0, %s179
    %s196 = sphi 0, %s180
    %s202 = sphi 0, %s204
    %s205 = sphi 0, %s202
    %s206 = sphi 0, %s205
    %s222 = sphi 0, %s206
    %s228 = sphi 0, %s230
    %s231 = sphi 0, %s228
    %s232 = sphi 0, %s231
    %s248 = sphi 0, %s232
    %s254 = sphi 0, %s256
    %s257 = sphi 0, %s254
    %s258 = sphi 0, %s257
    %s274 = sphi 0, %s258
    %s280 = sphi 0, %s282
    %s283 = sphi 0, %s280
    %s284 = sphi 0, %s283
    %s300 = sphi 0, %s284
    %s306 = sphi 0, %s308
    %s309 = sphi 0, %s306
    %s310 = sphi 0, %s309
    %s326 = sphi 0, %s310
    %s332 = sphi 0, %s334
    %s335 = sphi 0, %s332
    %s336 = sphi 0, %s335
    %s352 = sphi 0, %s336
    %s358 = sphi 0, %s360
    %s361 = sphi 0, %s358
    %s362 = sphi 0, %s361
    %s378 = sphi 0, %s362
    %s382 = sphi 0, %s382
    %s384 = sphi 0, %s382
    %s385 = sphi 0, %s384
    %s399 = sphi 0, %s385
  $region4: #{style_transformer_forward.4} parent=0 // loop_header_branch
    %23 = sbr.rel (%p21) target = $region8
  $region5: #{style_transformer_forward.4} parent=0 // loop_body
    %s25 = ssub.s32 %s20, 1
    %s26 = ssub.s32 %s20, 2
    %s27 = sadd.s32 %s20, 1
    %s29 = sadd.s32 %s28, 1
    %p32 = scmp.eq.s32.totalorder %s20, 1
    %p33 = scmp.ne.s32.totalorder %s28, %s30
    %p34 = scmp.eq.s32.totalorder %s20, 0
    %p35 = por %p33, %p34
    %p36 = scmp.ne.s32.totalorder %s28, %s30
    %p37 = scmp.eq.s32.totalorder %s25, 1
    %p38 = por %p36, %p37
    %p39 = scmp.ne.s32.totalorder %s30, %s31
    %p40 = scmp.eq.s32.totalorder %s25, 0
    %p41 = por %p39, %p40
    %p42 = scmp.ne.s32.totalorder %s30, %s31
    %p43 = scmp.eq.s32.totalorder %s26, 1
    %p44 = por %p42, %p43
    %p46 = scmp.ne.s32.totalorder %s31, %s45
    %p47 = scmp.eq.s32.totalorder %s26, 0
    %p48 = por %p46, %p47
    %s50 = sadd.s32 %s49, 1
    %p53 = scmp.eq.s32.totalorder %s20, 1
    %p54 = scmp.ne.s32.totalorder %s49, %s51
    %p55 = scmp.eq.s32.totalorder %s20, 0
    %p56 = por %p54, %p55
    %p57 = scmp.ne.s32.totalorder %s49, %s51
    %p58 = scmp.eq.s32.totalorder %s25, 1
    %p59 = por %p57, %p58
    %p60 = scmp.ne.s32.totalorder %s51, %s52
    %p61 = scmp.eq.s32.totalorder %s25, 0
    %p62 = por %p60, %p61
    %p63 = scmp.ne.s32.totalorder %s51, %s52
    %p64 = scmp.eq.s32.totalorder %s26, 1
    %p65 = por %p63, %p64
    %p67 = scmp.ne.s32.totalorder %s52, %s66
    %p68 = scmp.eq.s32.totalorder %s26, 0
    %p69 = por %p67, %p68
    %s70 = ssub.s32 %s20, %s27
    %p71 = scmp.eq.s32.totalorder %s70, 0
    %s73 = sadd.s32 %s72, 1
    %s74 = scalar_select %p71, %s72, %s73
    %p77 = pneg %p71
    %p78 = scmp.eq.s32.totalorder %s20, 1
    %p79 = por %p77, %p78
    %p80 = scmp.ne.s32.totalorder %s72, %s75
    %p81 = scmp.eq.s32.totalorder %s20, 0
    %p82 = por %p80, %p81
    %p83 = scmp.ne.s32.totalorder %s72, %s75
    %p84 = scmp.eq.s32.totalorder %s25, 1
    %p85 = por %p83, %p84
    %p86 = scmp.ne.s32.totalorder %s75, %s76
    %p87 = scmp.eq.s32.totalorder %s25, 0
    %p88 = por %p86, %p87
    %p89 = scmp.ne.s32.totalorder %s75, %s76
    %p90 = scmp.eq.s32.totalorder %s26, 1
    %p91 = por %p89, %p90
    %p93 = scmp.ne.s32.totalorder %s76, %s92
    %p94 = scmp.eq.s32.totalorder %s26, 0
    %p95 = por %p93, %p94
    %s96 = ssub.s32 %s20, %s27
    %p97 = scmp.eq.s32.totalorder %s96, 0
    %s99 = sadd.s32 %s98, 1
    %s100 = scalar_select %p97, %s98, %s99
    %p103 = pneg %p97
    %p104 = scmp.eq.s32.totalorder %s20, 1
    %p105 = por %p103, %p104
    %p106 = scmp.ne.s32.totalorder %s98, %s101
    %p107 = scmp.eq.s32.totalorder %s20, 0
    %p108 = por %p106, %p107
    %p109 = scmp.ne.s32.totalorder %s98, %s101
    %p110 = scmp.eq.s32.totalorder %s25, 1
    %p111 = por %p109, %p110
    %p112 = scmp.ne.s32.totalorder %s101, %s102
    %p113 = scmp.eq.s32.totalorder %s25, 0
    %p114 = por %p112, %p113
    %p115 = scmp.ne.s32.totalorder %s101, %s102
    %p116 = scmp.eq.s32.totalorder %s26, 1
    %p117 = por %p115, %p116
    %p119 = scmp.ne.s32.totalorder %s102, %s118
    %p120 = scmp.eq.s32.totalorder %s26, 0
    %p121 = por %p119, %p120
    %s122 = ssub.s32 %s20, %s27
    %p123 = scmp.eq.s32.totalorder %s122, 0
    %s125 = sadd.s32 %s124, 1
    %s126 = scalar_select %p123, %s124, %s125
    %p129 = pneg %p123
    %p130 = scmp.eq.s32.totalorder %s20, 1
    %p131 = por %p129, %p130
    %p132 = scmp.ne.s32.totalorder %s124, %s127
    %p133 = scmp.eq.s32.totalorder %s20, 0
    %p134 = por %p132, %p133
    %p135 = scmp.ne.s32.totalorder %s124, %s127
    %p136 = scmp.eq.s32.totalorder %s25, 1
    %p137 = por %p135, %p136
    %p138 = scmp.ne.s32.totalorder %s127, %s128
    %p139 = scmp.eq.s32.totalorder %s25, 0
    %p140 = por %p138, %p139
    %p141 = scmp.ne.s32.totalorder %s127, %s128
    %p142 = scmp.eq.s32.totalorder %s26, 1
    %p143 = por %p141, %p142
    %p145 = scmp.ne.s32.totalorder %s128, %s144
    %p146 = scmp.eq.s32.totalorder %s26, 0
    %p147 = por %p145, %p146
    %s148 = ssub.s32 %s20, %s27
    %p149 = scmp.eq.s32.totalorder %s148, 0
    %s151 = sadd.s32 %s150, 1
    %s152 = scalar_select %p149, %s150, %s151
    %p155 = pneg %p149
    %p156 = scmp.eq.s32.totalorder %s20, 1
    %p157 = por %p155, %p156
    %p158 = scmp.ne.s32.totalorder %s150, %s153
    %p159 = scmp.eq.s32.totalorder %s20, 0
    %p160 = por %p158, %p159
    %p161 = scmp.ne.s32.totalorder %s150, %s153
    %p162 = scmp.eq.s32.totalorder %s25, 1
    %p163 = por %p161, %p162
    %p164 = scmp.ne.s32.totalorder %s153, %s154
    %p165 = scmp.eq.s32.totalorder %s25, 0
    %p166 = por %p164, %p165
    %p167 = scmp.ne.s32.totalorder %s153, %s154
    %p168 = scmp.eq.s32.totalorder %s26, 1
    %p169 = por %p167, %p168
    %p171 = scmp.ne.s32.totalorder %s154, %s170
    %p172 = scmp.eq.s32.totalorder %s26, 0
    %p173 = por %p171, %p172
    %s174 = ssub.s32 %s20, %s27
    %p175 = scmp.eq.s32.totalorder %s174, 0
    %s177 = sadd.s32 %s176, 1
    %s178 = scalar_select %p175, %s176, %s177
    %p181 = pneg %p175
    %p182 = scmp.eq.s32.totalorder %s20, 1
    %p183 = por %p181, %p182
    %p184 = scmp.ne.s32.totalorder %s176, %s179
    %p185 = scmp.eq.s32.totalorder %s20, 0
    %p186 = por %p184, %p185
    %p187 = scmp.ne.s32.totalorder %s176, %s179
    %p188 = scmp.eq.s32.totalorder %s25, 1
    %p189 = por %p187, %p188
    %p190 = scmp.ne.s32.totalorder %s179, %s180
    %p191 = scmp.eq.s32.totalorder %s25, 0
    %p192 = por %p190, %p191
    %p193 = scmp.ne.s32.totalorder %s179, %s180
    %p194 = scmp.eq.s32.totalorder %s26, 1
    %p195 = por %p193, %p194
    %p197 = scmp.ne.s32.totalorder %s180, %s196
    %p198 = scmp.eq.s32.totalorder %s26, 0
    %p199 = por %p197, %p198
    %s200 = ssub.s32 %s20, %s27
    %p201 = scmp.eq.s32.totalorder %s200, 0
    %s203 = sadd.s32 %s202, 1
    %s204 = scalar_select %p201, %s202, %s203
    %p207 = pneg %p201
    %p208 = scmp.eq.s32.totalorder %s20, 1
    %p209 = por %p207, %p208
    %p210 = scmp.ne.s32.totalorder %s202, %s205
    %p211 = scmp.eq.s32.totalorder %s20, 0
    %p212 = por %p210, %p211
    %p213 = scmp.ne.s32.totalorder %s202, %s205
    %p214 = scmp.eq.s32.totalorder %s25, 1
    %p215 = por %p213, %p214
    %p216 = scmp.ne.s32.totalorder %s205, %s206
    %p217 = scmp.eq.s32.totalorder %s25, 0
    %p218 = por %p216, %p217
    %p219 = scmp.ne.s32.totalorder %s205, %s206
    %p220 = scmp.eq.s32.totalorder %s26, 1
    %p221 = por %p219, %p220
    %p223 = scmp.ne.s32.totalorder %s206, %s222
    %p224 = scmp.eq.s32.totalorder %s26, 0
    %p225 = por %p223, %p224
    %s226 = ssub.s32 %s20, %s27
    %p227 = scmp.eq.s32.totalorder %s226, 0
    %s229 = sadd.s32 %s228, 1
    %s230 = scalar_select %p227, %s228, %s229
    %p233 = pneg %p227
    %p234 = scmp.eq.s32.totalorder %s20, 1
    %p235 = por %p233, %p234
    %p236 = scmp.ne.s32.totalorder %s228, %s231
    %p237 = scmp.eq.s32.totalorder %s20, 0
    %p238 = por %p236, %p237
    %p239 = scmp.ne.s32.totalorder %s228, %s231
    %p240 = scmp.eq.s32.totalorder %s25, 1
    %p241 = por %p239, %p240
    %p242 = scmp.ne.s32.totalorder %s231, %s232
    %p243 = scmp.eq.s32.totalorder %s25, 0
    %p244 = por %p242, %p243
    %p245 = scmp.ne.s32.totalorder %s231, %s232
    %p246 = scmp.eq.s32.totalorder %s26, 1
    %p247 = por %p245, %p246
    %p249 = scmp.ne.s32.totalorder %s232, %s248
    %p250 = scmp.eq.s32.totalorder %s26, 0
    %p251 = por %p249, %p250
    %s252 = ssub.s32 %s20, %s27
    %p253 = scmp.eq.s32.totalorder %s252, 0
    %s255 = sadd.s32 %s254, 1
    %s256 = scalar_select %p253, %s254, %s255
    %p259 = pneg %p253
    %p260 = scmp.eq.s32.totalorder %s20, 1
    %p261 = por %p259, %p260
    %p262 = scmp.ne.s32.totalorder %s254, %s257
    %p263 = scmp.eq.s32.totalorder %s20, 0
    %p264 = por %p262, %p263
    %p265 = scmp.ne.s32.totalorder %s254, %s257
    %p266 = scmp.eq.s32.totalorder %s25, 1
    %p267 = por %p265, %p266
    %p268 = scmp.ne.s32.totalorder %s257, %s258
    %p269 = scmp.eq.s32.totalorder %s25, 0
    %p270 = por %p268, %p269
    %p271 = scmp.ne.s32.totalorder %s257, %s258
    %p272 = scmp.eq.s32.totalorder %s26, 1
    %p273 = por %p271, %p272
    %p275 = scmp.ne.s32.totalorder %s258, %s274
    %p276 = scmp.eq.s32.totalorder %s26, 0
    %p277 = por %p275, %p276
    %s278 = ssub.s32 %s20, %s27
    %p279 = scmp.eq.s32.totalorder %s278, 0
    %s281 = sadd.s32 %s280, 1
    %s282 = scalar_select %p279, %s280, %s281
    %p285 = pneg %p279
    %p286 = scmp.eq.s32.totalorder %s20, 1
    %p287 = por %p285, %p286
    %p288 = scmp.ne.s32.totalorder %s280, %s283
    %p289 = scmp.eq.s32.totalorder %s20, 0
    %p290 = por %p288, %p289
    %p291 = scmp.ne.s32.totalorder %s280, %s283
    %p292 = scmp.eq.s32.totalorder %s25, 1
    %p293 = por %p291, %p292
    %p294 = scmp.ne.s32.totalorder %s283, %s284
    %p295 = scmp.eq.s32.totalorder %s25, 0
    %p296 = por %p294, %p295
    %p297 = scmp.ne.s32.totalorder %s283, %s284
    %p298 = scmp.eq.s32.totalorder %s26, 1
    %p299 = por %p297, %p298
    %p301 = scmp.ne.s32.totalorder %s284, %s300
    %p302 = scmp.eq.s32.totalorder %s26, 0
    %p303 = por %p301, %p302
    %s304 = ssub.s32 %s20, %s27
    %p305 = scmp.eq.s32.totalorder %s304, 0
    %s307 = sadd.s32 %s306, 1
    %s308 = scalar_select %p305, %s306, %s307
    %p311 = pneg %p305
    %p312 = scmp.eq.s32.totalorder %s20, 1
    %p313 = por %p311, %p312
    %p314 = scmp.ne.s32.totalorder %s306, %s309
    %p315 = scmp.eq.s32.totalorder %s20, 0
    %p316 = por %p314, %p315
    %p317 = scmp.ne.s32.totalorder %s306, %s309
    %p318 = scmp.eq.s32.totalorder %s25, 1
    %p319 = por %p317, %p318
    %p320 = scmp.ne.s32.totalorder %s309, %s310
    %p321 = scmp.eq.s32.totalorder %s25, 0
    %p322 = por %p320, %p321
    %p323 = scmp.ne.s32.totalorder %s309, %s310
    %p324 = scmp.eq.s32.totalorder %s26, 1
    %p325 = por %p323, %p324
    %p327 = scmp.ne.s32.totalorder %s310, %s326
    %p328 = scmp.eq.s32.totalorder %s26, 0
    %p329 = por %p327, %p328
    %s330 = ssub.s32 %s20, %s27
    %p331 = scmp.eq.s32.totalorder %s330, 0
    %s333 = sadd.s32 %s332, 1
    %s334 = scalar_select %p331, %s332, %s333
    %p337 = pneg %p331
    %p338 = scmp.eq.s32.totalorder %s20, 1
    %p339 = por %p337, %p338
    %p340 = scmp.ne.s32.totalorder %s332, %s335
    %p341 = scmp.eq.s32.totalorder %s20, 0
    %p342 = por %p340, %p341
    %p343 = scmp.ne.s32.totalorder %s332, %s335
    %p344 = scmp.eq.s32.totalorder %s25, 1
    %p345 = por %p343, %p344
    %p346 = scmp.ne.s32.totalorder %s335, %s336
    %p347 = scmp.eq.s32.totalorder %s25, 0
    %p348 = por %p346, %p347
    %p349 = scmp.ne.s32.totalorder %s335, %s336
    %p350 = scmp.eq.s32.totalorder %s26, 1
    %p351 = por %p349, %p350
    %p353 = scmp.ne.s32.totalorder %s336, %s352
    %p354 = scmp.eq.s32.totalorder %s26, 0
    %p355 = por %p353, %p354
    %s356 = ssub.s32 %s20, %s27
    %p357 = scmp.eq.s32.totalorder %s356, 0
    %s359 = sadd.s32 %s358, 1
    %s360 = scalar_select %p357, %s358, %s359
    %p363 = pneg %p357
    %p364 = scmp.eq.s32.totalorder %s20, 1
    %p365 = por %p363, %p364
    %p366 = scmp.ne.s32.totalorder %s358, %s361
    %p367 = scmp.eq.s32.totalorder %s20, 0
    %p368 = por %p366, %p367
    %p369 = scmp.ne.s32.totalorder %s358, %s361
    %p370 = scmp.eq.s32.totalorder %s25, 1
    %p371 = por %p369, %p370
    %p372 = scmp.ne.s32.totalorder %s361, %s362
    %p373 = scmp.eq.s32.totalorder %s25, 0
    %p374 = por %p372, %p373
    %p375 = scmp.ne.s32.totalorder %s361, %s362
    %p376 = scmp.eq.s32.totalorder %s26, 1
    %p377 = por %p375, %p376
    %p379 = scmp.ne.s32.totalorder %s362, %s378
    %p380 = scmp.eq.s32.totalorder %s26, 0
    %p381 = por %p379, %p380
    %s383 = sadd.s32 %s382, 1
    %p386 = scmp.eq.s32.totalorder %s20, 1
    %p387 = scmp.ne.s32.totalorder %s382, %s384
    %p388 = scmp.eq.s32.totalorder %s20, 0
    %p389 = por %p387, %p388
    %p390 = scmp.ne.s32.totalorder %s382, %s384
    %p391 = scmp.eq.s32.totalorder %s25, 1
    %p392 = por %p390, %p391
    %p393 = scmp.ne.s32.totalorder %s384, %s385
    %p394 = scmp.eq.s32.totalorder %s25, 0
    %p395 = por %p393, %p394
    %p396 = scmp.ne.s32.totalorder %s384, %s385
    %p397 = scmp.eq.s32.totalorder %s26, 1
    %p398 = por %p396, %p397
    %p400 = scmp.ne.s32.totalorder %s385, %s399
    %p401 = scmp.eq.s32.totalorder %s26, 0
    %p402 = por %p400, %p401
    %p403 = scmp.le.s32.totalorder 1, %s20
    %p404 = scmp.lt.s32.totalorder %s20, 3
    %p405 = pnand %p403, %p404
    %p406 = pneg %p405
    // Predicated region
    $region9: #{style_transformer_forward.4} parent=5 // pred_check
      _
    $region10: #{style_transformer_forward.4} parent=5 // pred_check_branch
      %408 = sbr.rel (%p405) target = $region12
    $region11: #{style_transformer_forward.4} parent=5 // pred_region
      %s409 = ssub.s32 %s20, 1
      // Predicated region
      $region13: #{style_transformer_forward.4} parent=11 // pred_check
        %p410 = pneg %p41
      $region14: #{style_transformer_forward.4} parent=11 // pred_check_branch
        %412 = sbr.rel (%p410) target = $region16
      $region15: #{style_transformer_forward.4} parent=11 // pred_region
        _
      $region16: #{style_transformer_forward.4} parent=11 // pred_fallthru
        _
      // Predicated region
      $region17: #{style_transformer_forward.4} parent=11 // pred_check
        %p413 = pneg %p62
      $region18: #{style_transformer_forward.4} parent=11 // pred_check_branch
        %415 = sbr.rel (%p413) target = $region20
      $region19: #{style_transformer_forward.4} parent=11 // pred_region
        _
      $region20: #{style_transformer_forward.4} parent=11 // pred_fallthru
        _
    $region12: #{style_transformer_forward.4} parent=5 // pred_fallthru
      _
    %p416 = scmp.lt.s32.totalorder %s20, 2
    // Predicated region
    $region21: #{style_transformer_forward.4} parent=5 // pred_check
      %p417 = pneg %p416
    $region22: #{style_transformer_forward.4} parent=5 // pred_check_branch
      %419 = sbr.rel (%p417) target = $region24
    $region23: #{style_transformer_forward.4} parent=5 // pred_region
      // Predicated region
      $region25: #{style_transformer_forward.4} parent=23 // pred_check
        %p420 = pneg %p82
      $region26: #{style_transformer_forward.4} parent=23 // pred_check_branch
        %422 = sbr.rel (%p420) target = $region28
      $region27: #{style_transformer_forward.4} parent=23 // pred_region
        %p423 = scmp.lt.s32.totalorder %s20, 1
        %s424 = scalar_select %p423, %s20, 1
        %s425 = smul.addr %s424, 4
        %s426 = smul.addr %s425, 4
        %s427 = scalar_lea.vmem %s2, %s426
      $region28: #{style_transformer_forward.4} parent=23 // pred_fallthru
        _
      // Predicated region
      $region29: #{style_transformer_forward.4} parent=23 // pred_check
        %p428 = pneg %p108
      $region30: #{style_transformer_forward.4} parent=23 // pred_check_branch
        %430 = sbr.rel (%p428) target = $region32
      $region31: #{style_transformer_forward.4} parent=23 // pred_region
        %p431 = scmp.lt.s32.totalorder %s20, 1
        %s432 = scalar_select %p431, %s20, 1
        %s433 = scalar_lea.vmem %s3, %s432
      $region32: #{style_transformer_forward.4} parent=23 // pred_fallthru
        _
      // Predicated region
      $region33: #{style_transformer_forward.4} parent=23 // pred_check
        %p434 = pneg %p134
      $region34: #{style_transformer_forward.4} parent=23 // pred_check_branch
        %436 = sbr.rel (%p434) target = $region36
      $region35: #{style_transformer_forward.4} parent=23 // pred_region
        %p437 = scmp.lt.s32.totalorder %s20, 1
        %s438 = scalar_select %p437, %s20, 1
        %s439 = smul.addr %s438, 4
        %s440 = smul.addr %s439, 4
        %s441 = scalar_lea.vmem %s4, %s440
      $region36: #{style_transformer_forward.4} parent=23 // pred_fallthru
        _
      // Predicated region
      $region37: #{style_transformer_forward.4} parent=23 // pred_check
        %p442 = pneg %p160
      $region38: #{style_transformer_forward.4} parent=23 // pred_check_branch
        %444 = sbr.rel (%p442) target = $region40
      $region39: #{style_transformer_forward.4} parent=23 // pred_region
        %p445 = scmp.lt.s32.totalorder %s20, 1
        %s446 = scalar_select %p445, %s20, 1
        %s447 = scalar_lea.vmem %s5, %s446
      $region40: #{style_transformer_forward.4} parent=23 // pred_fallthru
        _
      // Predicated region
      $region41: #{style_transformer_forward.4} parent=23 // pred_check
        %p448 = pneg %p186
      $region42: #{style_transformer_forward.4} parent=23 // pred_check_branch
        %450 = sbr.rel (%p448) target = $region44
      $region43: #{style_transformer_forward.4} parent=23 // pred_region
        %p451 = scmp.lt.s32.totalorder %s20, 1
        %s452 = scalar_select %p451, %s20, 1
        %s453 = scalar_lea.vmem %s6, %s452
      $region44: #{style_transformer_forward.4} parent=23 // pred_fallthru
        _
      // Predicated region
      $region45: #{style_transformer_forward.4} parent=23 // pred_check
        %p454 = pneg %p212
      $region46: #{style_transformer_forward.4} parent=23 // pred_check_branch
        %456 = sbr.rel (%p454) target = $region48
      $region47: #{style_transformer_forward.4} parent=23 // pred_region
        %p457 = scmp.lt.s32.totalorder %s20, 1
        %s458 = scalar_select %p457, %s20, 1
        %s459 = scalar_lea.vmem %s7, %s458
      $region48: #{style_transformer_forward.4} parent=23 // pred_fallthru
        _
      // Predicated region
      $region49: #{style_transformer_forward.4} parent=23 // pred_check
        %p460 = pneg %p238
      $region50: #{style_transformer_forward.4} parent=23 // pred_check_branch
        %462 = sbr.rel (%p460) target = $region52
      $region51: #{style_transformer_forward.4} parent=23 // pred_region
        %p463 = scmp.lt.s32.totalorder %s20, 1
        %s464 = scalar_select %p463, %s20, 1
        %s465 = smul.addr %s464, 64
        %s466 = smul.addr %s465, 4
        %s467 = scalar_lea.vmem %s8, %s466
      $region52: #{style_transformer_forward.4} parent=23 // pred_fallthru
        _
      // Predicated region
      $region53: #{style_transformer_forward.4} parent=23 // pred_check
        %p468 = pneg %p264
      $region54: #{style_transformer_forward.4} parent=23 // pred_check_branch
        %470 = sbr.rel (%p468) target = $region56
      $region55: #{style_transformer_forward.4} parent=23 // pred_region
        %p471 = scmp.lt.s32.totalorder %s20, 1
        %s472 = scalar_select %p471, %s20, 1
        %s473 = smul.addr %s472, 16
        %s474 = scalar_lea.vmem %s9, %s473
      $region56: #{style_transformer_forward.4} parent=23 // pred_fallthru
        _
      // Predicated region
      $region57: #{style_transformer_forward.4} parent=23 // pred_check
        %p475 = pneg %p290
      $region58: #{style_transformer_forward.4} parent=23 // pred_check_branch
        %477 = sbr.rel (%p475) target = $region60
      $region59: #{style_transformer_forward.4} parent=23 // pred_region
        %p478 = scmp.lt.s32.totalorder %s20, 1
        %s479 = scalar_select %p478, %s20, 1
        %s480 = smul.addr %s479, 256
        %s481 = smul.addr %s480, 4
        %s482 = scalar_lea.vmem %s10, %s481
      $region60: #{style_transformer_forward.4} parent=23 // pred_fallthru
        _
      // Predicated region
      $region61: #{style_transformer_forward.4} parent=23 // pred_check
        %p483 = pneg %p316
      $region62: #{style_transformer_forward.4} parent=23 // pred_check_branch
        %485 = sbr.rel (%p483) target = $region64
      $region63: #{style_transformer_forward.4} parent=23 // pred_region
        %p486 = scmp.lt.s32.totalorder %s20, 1
        %s487 = scalar_select %p486, %s20, 1
        %s488 = scalar_lea.vmem %s11, %s487
      $region64: #{style_transformer_forward.4} parent=23 // pred_fallthru
        _
      // Predicated region
      $region65: #{style_transformer_forward.4} parent=23 // pred_check
        %p489 = pneg %p342
      $region66: #{style_transformer_forward.4} parent=23 // pred_check_branch
        %491 = sbr.rel (%p489) target = $region68
      $region67: #{style_transformer_forward.4} parent=23 // pred_region
        %p492 = scmp.lt.s32.totalorder %s20, 1
        %s493 = scalar_select %p492, %s20, 1
        %s494 = scalar_lea.vmem %s12, %s493
      $region68: #{style_transformer_forward.4} parent=23 // pred_fallthru
        _
      // Predicated region
      $region69: #{style_transformer_forward.4} parent=23 // pred_check
        %p495 = pneg %p368
      $region70: #{style_transformer_forward.4} parent=23 // pred_check_branch
        %497 = sbr.rel (%p495) target = $region72
      $region71: #{style_transformer_forward.4} parent=23 // pred_region
        %p498 = scmp.lt.s32.totalorder %s20, 1
        %s499 = scalar_select %p498, %s20, 1
        %s500 = scalar_lea.vmem %s13, %s499
      $region72: #{style_transformer_forward.4} parent=23 // pred_fallthru
        _
    $region24: #{style_transformer_forward.4} parent=5 // pred_fallthru
      _
    %p501 = scmp.le.s32.totalorder 1, %s20
    %p502 = scmp.lt.s32.totalorder %s20, 3
    %p503 = pnand %p501, %p502
    %p504 = pneg %p503
    // Predicated region
    $region73: #{style_transformer_forward.4} parent=5 // pred_check
      _
    $region74: #{style_transformer_forward.4} parent=5 // pred_check_branch
      %506 = sbr.rel (%p503) target = $region76
    $region75: #{style_transformer_forward.4} parent=5 // pred_region
      %s507 = ssub.s32 %s20, 1
      %p508 = pneg %p41
      %p509 = pneg %p38
      %p510 = pneg %p62
      %p511 = pneg %p59
      %p512 = scmp.lt.s32.totalorder %s25, 1
      %s513 = scalar_select %p512, %s25, 1
      %s514 = smul.addr %s513, 4
      %s515 = smul.addr %s514, 4
      %s516 = scalar_lea.vmem %s2, %s515
      %p517 = pneg %p88
      %p518 = pneg %p85
      %p519 = scmp.lt.s32.totalorder %s25, 1
      %s520 = scalar_select %p519, %s25, 1
      %s521 = scalar_lea.vmem %s3, %s520
      %p522 = pneg %p114
      %p523 = pneg %p111
      %p524 = scmp.lt.s32.totalorder %s25, 1
      %s525 = scalar_select %p524, %s25, 1
      %s526 = smul.addr %s525, 4
      %s527 = smul.addr %s526, 4
      %s528 = scalar_lea.vmem %s4, %s527
      %p529 = pneg %p140
      %p530 = pneg %p137
      %p531 = scmp.lt.s32.totalorder %s25, 1
      %s532 = scalar_select %p531, %s25, 1
      %s533 = scalar_lea.vmem %s5, %s532
      %p534 = pneg %p166
      %p535 = pneg %p163
      %p536 = scmp.lt.s32.totalorder %s25, 1
      %s537 = scalar_select %p536, %s25, 1
      %s538 = scalar_lea.vmem %s6, %s537
      %p539 = pneg %p192
      %p540 = pneg %p189
      %p541 = scmp.lt.s32.totalorder %s25, 1
      %s542 = scalar_select %p541, %s25, 1
      %s543 = scalar_lea.vmem %s7, %s542
      %p544 = pneg %p218
      %p545 = pneg %p215
      %p546 = scmp.lt.s32.totalorder %s25, 1
      %s547 = scalar_select %p546, %s25, 1
      %s548 = smul.addr %s547, 64
      %s549 = smul.addr %s548, 4
      %s550 = scalar_lea.vmem %s8, %s549
      %p551 = pneg %p244
      %p552 = pneg %p241
      %p553 = scmp.lt.s32.totalorder %s25, 1
      %s554 = scalar_select %p553, %s25, 1
      %s555 = smul.addr %s554, 16
      %s556 = scalar_lea.vmem %s9, %s555
      %p557 = pneg %p270
      %p558 = pneg %p267
      %p559 = scmp.lt.s32.totalorder %s25, 1
      %s560 = scalar_select %p559, %s25, 1
      %s561 = smul.addr %s560, 256
      %s562 = smul.addr %s561, 4
      %s563 = scalar_lea.vmem %s10, %s562
      %p564 = pneg %p296
      %p565 = pneg %p293
      %p566 = scmp.lt.s32.totalorder %s25, 1
      %s567 = scalar_select %p566, %s25, 1
      %s568 = scalar_lea.vmem %s11, %s567
      %p569 = pneg %p322
      %p570 = pneg %p319
      %p571 = scmp.lt.s32.totalorder %s25, 1
      %s572 = scalar_select %p571, %s25, 1
      %s573 = scalar_lea.vmem %s12, %s572
      %p574 = pneg %p348
      %p575 = pneg %p345
      %p576 = scmp.lt.s32.totalorder %s25, 1
      %s577 = scalar_select %p576, %s25, 1
      %s578 = scalar_lea.vmem %s13, %s577
      %p579 = pneg %p374
      %p580 = pneg %p371
      %p581 = pneg %p395
      %p582 = pneg %p392
      %p583 = scmp.lt.s32.totalorder %s25, 1
      %s584 = scalar_select %p583, %s25, 1
      %s585 = smul.addr %s584, 4
      %s586 = smul.addr %s585, 4
      %s587 = scalar_lea.vmem %s2, %s586
      %p588 = scmp.lt.s32.totalorder %s25, 1
      %s589 = scalar_select %p588, %s25, 1
      %s590 = scalar_lea.vmem %s3, %s589
      %p591 = scmp.lt.s32.totalorder %s25, 1
      %s592 = scalar_select %p591, %s25, 1
      %s593 = smul.addr %s592, 4
      %s594 = smul.addr %s593, 4
      %s595 = scalar_lea.vmem %s4, %s594
      %p596 = scmp.lt.s32.totalorder %s25, 1
      %s597 = scalar_select %p596, %s25, 1
      %s598 = scalar_lea.vmem %s5, %s597
      %p599 = scmp.lt.s32.totalorder %s25, 1
      %s600 = scalar_select %p599, %s25, 1
      %s601 = scalar_lea.vmem %s6, %s600
      %p602 = scmp.lt.s32.totalorder %s25, 1
      %s603 = scalar_select %p602, %s25, 1
      %s604 = scalar_lea.vmem %s7, %s603
      %p605 = scmp.lt.s32.totalorder %s25, 1
      %s606 = scalar_select %p605, %s25, 1
      %s607 = smul.addr %s606, 64
      %s608 = smul.addr %s607, 4
      %s609 = scalar_lea.vmem %s8, %s608
      %p610 = scmp.lt.s32.totalorder %s25, 1
      %s611 = scalar_select %p610, %s25, 1
      %s612 = smul.addr %s611, 16
      %s613 = scalar_lea.vmem %s9, %s612
      %p614 = scmp.lt.s32.totalorder %s25, 1
      %s615 = scalar_select %p614, %s25, 1
      %s616 = smul.addr %s615, 256
      %s617 = smul.addr %s616, 4
      %s618 = scalar_lea.vmem %s10, %s617
      %p619 = scmp.lt.s32.totalorder %s25, 1
      %s620 = scalar_select %p619, %s25, 1
      %s621 = scalar_lea.vmem %s11, %s620
      %p622 = scmp.lt.s32.totalorder %s25, 1
      %s623 = scalar_select %p622, %s25, 1
      %s624 = scalar_lea.vmem %s12, %s623
      %p625 = scmp.lt.s32.totalorder %s25, 1
      %s626 = scalar_select %p625, %s25, 1
      %s627 = scalar_lea.vmem %s13, %s626
      %p629 = scmp.eq.s32.totalorder %s25, 0
      // Predicated region
      $region77: #{style_transformer_forward.4} parent=75 // pred_check
        %p630 = pneg %p629
      $region78: #{style_transformer_forward.4} parent=75 // pred_check_branch
        %632 = sbr.rel (%p630) target = $region80
      $region79: #{style_transformer_forward.4} parent=75 // pred_region
        %v633 = vld [vmem:[%s0] sm:$0xff]
        %vm634 = vcmask 261120
        %635 = vst.msk [vmem:[#allocation2] sm:$0xff] %vm634, %v633
      $region80: #{style_transformer_forward.4} parent=75 // pred_fallthru
        _
      %v636 = vld [vmem:[#allocation2] sm:$0xff]
      %v637 = vld [vmem:[%s587] sm:$0xf]
      %v638 = vld [vmem:[%s587 + $0x4] sm:$0xf]
      %v639 = vld [vmem:[%s587 + $0x8] sm:$0xf]
      %v640 = vld [vmem:[%s587 + $0xc] sm:$0xf]
      %v641 = vpack.c.bf16 %v636, %v636
      %v642 = vld [vmem:[%s590] sm:$0x1]
      %v644 = vperm.slane %v642, 0
      %v650 = vunpack.c.l.b16 %v637
      %v651 = vunpack.c.l.b16 %v638
      %v652 = vunpack.c.l.b16 %v639
      %v653 = vunpack.c.l.b16 %v640
      %v654 = vpack.c.b16 %v651, %v650
      %v655 = vpack.c.b16 %v653, %v652
      %vm658 = vcmask 261120
      %v660 = vsel %vm658, %v641, 0
      %662 = vmatpush.bf16.msra.mxu0 0
      %663 = vmatpush.bf16.msra.mxu0 0
      %664 = vmatpush.bf16.msra.mxu0 0
      %665 = vmatpush.bf16.msra.mxu0 0
      %666 = vmatpush.bf16.msra.mxu0 0
      %667 = vmatpush.bf16.msra.mxu0 0
      %668 = vmatpush.bf16.msra.mxu0 %v655
      %669 = vmatpush.bf16.msra.mxu0 %v654
      %670 = vmatmul.bf16.gmra.mxu0 %v660
      %v671 = vpop.f32.mrf.mxu0
      %v672 = vadd.f32 %v644, %v671
      %v673 = vpop.f32.mrf.mxu0
      %674 = vdwg.mxu0
      %676 = vrot.lane.b32.xlu0 %v672, 120
      %v677 = vpop.permute.xlu0 %676
      %679 = vrot.lane.b32.xlu0 %v672, 112
      %v680 = vpop.permute.xlu0 %679
      %682 = vrot.lane.b32.xlu0 %v672, 104
      %v683 = vpop.permute.xlu0 %682
      %v685 = vpack.c.bf16 %v672, %v672
      %v686 = vpack.c.bf16 %v677, %v677
      %v687 = vpack.c.bf16 %v680, %v680
      %v688 = vpack.c.bf16 %v683, %v683
      %v689 = vld [vmem:[%s1] sm:$0xff]
      %v691 = vunpack.c.l.b16 %v685
      %v692 = vpack.c.b16 %v691, %v691
      %693 = vrot.lane.b32.xlu0 %v692, 96
      %v694 = vpop.permute.xlu0 %693
      %vm695 = vcmask 64512
      %v697 = vsel %vm695, %v685, 0
      %v700 = vsel %vm695, %v694, 0
      %702 = vmatpush.bf16.xpose.msra.mxu0 0
      %703 = vmatpush.bf16.xpose.msra.mxu0 0
      %704 = vmatpush.bf16.xpose.msra.mxu0 0
      %705 = vmatpush.bf16.xpose.msra.mxu0 0
      %706 = vmatpush.bf16.xpose.msra.mxu0 0
      %707 = vmatpush.bf16.xpose.msra.mxu0 0
      %708 = vmatpush.bf16.xpose.msra.mxu0 0
      %709 = vmatpush.bf16.xpose.msra.mxu0 %v700
      %710 = vmatmul.bf16.gmra.mxu0 %v697
      %v711 = vpop.f32.mrf.mxu0
      %v712 = vadd.f32 %v689, %v711
      %v713 = vpop.f32.mrf.mxu0
      %714 = vdwg.mxu0
      %v716 = vunpack.c.l.b16 %v686
      %v717 = vpack.c.b16 %v716, %v716
      %718 = vrot.lane.b32.xlu0 %v717, 96
      %v719 = vpop.permute.xlu0 %718
      %v721 = vsel %vm695, %v686, 0
      %v724 = vsel %vm695, %v719, 0
      %726 = vmatpush.bf16.xpose.msra.mxu0 0
      %727 = vmatpush.bf16.xpose.msra.mxu0 0
      %728 = vmatpush.bf16.xpose.msra.mxu0 0
      %729 = vmatpush.bf16.xpose.msra.mxu0 0
      %730 = vmatpush.bf16.xpose.msra.mxu0 0
      %731 = vmatpush.bf16.xpose.msra.mxu0 0
      %732 = vmatpush.bf16.xpose.msra.mxu0 0
      %733 = vmatpush.bf16.xpose.msra.mxu0 %v724
      %734 = vmatmul.bf16.gmra.mxu0 %v721
      %v735 = vpop.f32.mrf.mxu0
      %v736 = vadd.f32 %v689, %v735
      %v737 = vpop.f32.mrf.mxu0
      %738 = vdwg.mxu0
      %v740 = vunpack.c.l.b16 %v687
      %v741 = vpack.c.b16 %v740, %v740
      %742 = vrot.lane.b32.xlu0 %v741, 96
      %v743 = vpop.permute.xlu0 %742
      %v745 = vsel %vm695, %v687, 0
      %v748 = vsel %vm695, %v743, 0
      %750 = vmatpush.bf16.xpose.msra.mxu0 0
      %751 = vmatpush.bf16.xpose.msra.mxu0 0
      %752 = vmatpush.bf16.xpose.msra.mxu0 0
      %753 = vmatpush.bf16.xpose.msra.mxu0 0
      %754 = vmatpush.bf16.xpose.msra.mxu0 0
      %755 = vmatpush.bf16.xpose.msra.mxu0 0
      %756 = vmatpush.bf16.xpose.msra.mxu0 0
      %757 = vmatpush.bf16.xpose.msra.mxu0 %v748
      %758 = vmatmul.bf16.gmra.mxu0 %v745
      %v759 = vpop.f32.mrf.mxu0
      %v760 = vadd.f32 %v689, %v759
      %v761 = vpop.f32.mrf.mxu0
      %762 = vdwg.mxu0
      %v764 = vunpack.c.l.b16 %v688
      %v765 = vpack.c.b16 %v764, %v764
      %766 = vrot.lane.b32.xlu0 %v765, 96
      %v767 = vpop.permute.xlu0 %766
      %v769 = vsel %vm695, %v688, 0
      %v772 = vsel %vm695, %v767, 0
      %774 = vmatpush.bf16.xpose.msra.mxu0 0
      %775 = vmatpush.bf16.xpose.msra.mxu0 0
      %776 = vmatpush.bf16.xpose.msra.mxu0 0
      %777 = vmatpush.bf16.xpose.msra.mxu0 0
      %778 = vmatpush.bf16.xpose.msra.mxu0 0
      %779 = vmatpush.bf16.xpose.msra.mxu0 0
      %780 = vmatpush.bf16.xpose.msra.mxu0 0
      %781 = vmatpush.bf16.xpose.msra.mxu0 %v772
      %782 = vmatmul.bf16.gmra.mxu0 %v769
      %v783 = vpop.f32.mrf.mxu0
      %v784 = vadd.f32 %v689, %v783
      %v785 = vpop.f32.mrf.mxu0
      %786 = vdwg.mxu0
      %v787 = vsel %vm695, %v712, -inf
      %788 = vmax.xlane.f32.xlu0 %v787
      %v789 = vpop.xlane.xlu0 %788
      %v790 = vsel %vm695, %v736, -inf
      %791 = vmax.xlane.f32.xlu0 %v790
      %v792 = vpop.xlane.xlu0 %791
      %v793 = vsel %vm695, %v760, -inf
      %794 = vmax.xlane.f32.xlu0 %v793
      %v795 = vpop.xlane.xlu0 %794
      %v796 = vsel %vm695, %v784, -inf
      %797 = vmax.xlane.f32.xlu0 %v796
      %v798 = vpop.xlane.xlu0 %797
      %v799 = vsub.f32 %v712, %v789
      %v800 = vsub.f32 %v736, %v792
      %v801 = vsub.f32 %v760, %v795
      %v802 = vsub.f32 %v784, %v798
      %v803 = vmul.f32 %v799, 1.442695
      %v804 = vpow.pop %v803
      %v805 = vmul.f32 %v800, 1.442695
      %v806 = vpow.pop %v805
      %v807 = vmul.f32 %v801, 1.442695
      %v808 = vpow.pop %v807
      %v809 = vmul.f32 %v802, 1.442695
      %v810 = vpow.pop %v809
      %v811 = vsel %vm695, %v804, 0.0
      %812 = vadd.xlane.f32.xlu0 %v811
      %v813 = vpop.xlane.xlu0 %812
      %v814 = vsel %vm695, %v806, 0.0
      %815 = vadd.xlane.f32.xlu0 %v814
      %v816 = vpop.xlane.xlu0 %815
      %v817 = vsel %vm695, %v808, 0.0
      %818 = vadd.xlane.f32.xlu0 %v817
      %v819 = vpop.xlane.xlu0 %818
      %v820 = vsel %vm695, %v810, 0.0
      %821 = vadd.xlane.f32.xlu0 %v820
      %v822 = vpop.xlane.xlu0 %821
      %v823 = vrcp.pop %v813
      %v824 = vrcp.pop %v816
      %v825 = vrcp.pop %v819
      %v826 = vrcp.pop %v822
      %v827 = vmul.f32 %v804, %v823
      %v828 = vmul.f32 %v806, %v824
      %v829 = vmul.f32 %v808, %v825
      %v830 = vmul.f32 %v810, %v826
      %v831 = vpack.c.bf16 %v827, %v827
      %v832 = vpack.c.bf16 %v828, %v828
      %v833 = vpack.c.bf16 %v829, %v829
      %v834 = vpack.c.bf16 %v830, %v830
      %835 = vrot.lane.b32.xlu0 %v692, 64
      %v836 = vpop.permute.xlu0 %835
      %v838 = vsel %vm695, %v831, 0
      %vm840 = vcmask 1043456
      %v842 = vsel %vm840, %v836, 0
      %844 = vmatpush.bf16.msra.mxu0 0
      %845 = vmatpush.bf16.msra.mxu0 0
      %846 = vmatpush.bf16.msra.mxu0 0
      %847 = vmatpush.bf16.msra.mxu0 0
      %848 = vmatpush.bf16.msra.mxu0 0
      %849 = vmatpush.bf16.msra.mxu0 0
      %850 = vmatpush.bf16.msra.mxu0 0
      %851 = vmatpush.bf16.msra.mxu0 %v842
      %852 = vmatmul.bf16.gmra.mxu0 %v838
      %v853 = vpop.f32.mrf.mxu0
      %v854 = vadd.f32 0.0, %v853
      %v855 = vpop.f32.mrf.mxu0
      %856 = vdwg.mxu0
      %857 = vrot.lane.b32.xlu0 %v717, 64
      %v858 = vpop.permute.xlu0 %857
      %v860 = vsel %vm695, %v832, 0
      %v863 = vsel %vm840, %v858, 0
      %865 = vmatpush.bf16.msra.mxu0 0
      %866 = vmatpush.bf16.msra.mxu0 0
      %867 = vmatpush.bf16.msra.mxu0 0
      %868 = vmatpush.bf16.msra.mxu0 0
      %869 = vmatpush.bf16.msra.mxu0 0
      %870 = vmatpush.bf16.msra.mxu0 0
      %871 = vmatpush.bf16.msra.mxu0 0
      %872 = vmatpush.bf16.msra.mxu0 %v863
      %873 = vmatmul.bf16.gmra.mxu0 %v860
      %v874 = vpop.f32.mrf.mxu0
      %v875 = vadd.f32 0.0, %v874
      %v876 = vpop.f32.mrf.mxu0
      %877 = vdwg.mxu0
      %878 = vrot.lane.b32.xlu0 %v741, 64
      %v879 = vpop.permute.xlu0 %878
      %v881 = vsel %vm695, %v833, 0
      %v884 = vsel %vm840, %v879, 0
      %886 = vmatpush.bf16.msra.mxu0 0
      %887 = vmatpush.bf16.msra.mxu0 0
      %888 = vmatpush.bf16.msra.mxu0 0
      %889 = vmatpush.bf16.msra.mxu0 0
      %890 = vmatpush.bf16.msra.mxu0 0
      %891 = vmatpush.bf16.msra.mxu0 0
      %892 = vmatpush.bf16.msra.mxu0 0
      %893 = vmatpush.bf16.msra.mxu0 %v884
      %894 = vmatmul.bf16.gmra.mxu0 %v881
      %v895 = vpop.f32.mrf.mxu0
      %v896 = vadd.f32 0.0, %v895
      %v897 = vpop.f32.mrf.mxu0
      %898 = vdwg.mxu0
      %899 = vrot.lane.b32.xlu0 %v765, 64
      %v900 = vpop.permute.xlu0 %899
      %v902 = vsel %vm695, %v834, 0
      %v905 = vsel %vm840, %v900, 0
      %907 = vmatpush.bf16.msra.mxu0 0
      %908 = vmatpush.bf16.msra.mxu0 0
      %909 = vmatpush.bf16.msra.mxu0 0
      %910 = vmatpush.bf16.msra.mxu0 0
      %911 = vmatpush.bf16.msra.mxu0 0
      %912 = vmatpush.bf16.msra.mxu0 0
      %913 = vmatpush.bf16.msra.mxu0 0
      %914 = vmatpush.bf16.msra.mxu0 %v905
      %915 = vmatmul.bf16.gmra.mxu0 %v902
      %v916 = vpop.f32.mrf.mxu0
      %v917 = vadd.f32 0.0, %v916
      %v918 = vpop.f32.mrf.mxu0
      %919 = vdwg.mxu0
      %v920 = vld [vmem:[%s595] sm:$0xf]
      %v921 = vld [vmem:[%s595 + $0x4] sm:$0xf]
      %v922 = vld [vmem:[%s595 + $0x8] sm:$0xf]
      %v923 = vld [vmem:[%s595 + $0xc] sm:$0xf]
      %v924 = vld [vmem:[%s598] sm:$0x1]
      %v926 = vperm.slane %v924, 0
      %v928 = vadd.f32 %v926, 0.0
      %v929 = vpack.c.bf16 %v854, %v854
      %v931 = vsel %vm695, %v929, 0
      %v934 = vsel %vm840, %v920, 0
      %936 = vmatpush.bf16.msra.mxu0 0
      %937 = vmatpush.bf16.msra.mxu0 0
      %938 = vmatpush.bf16.msra.mxu0 0
      %939 = vmatpush.bf16.msra.mxu0 0
      %940 = vmatpush.bf16.msra.mxu0 0
      %941 = vmatpush.bf16.msra.mxu0 0
      %942 = vmatpush.bf16.msra.mxu0 0
      %943 = vmatpush.bf16.msra.mxu0 %v934
      %944 = vmatmul.bf16.gmra.mxu0 %v931
      %v945 = vpop.f32.mrf.mxu0
      %v946 = vadd.f32 0.0, %v945
      %v947 = vpop.f32.mrf.mxu0
      %948 = vdwg.mxu0
      %v949 = vadd.f32 %v928, %v946
      %v950 = vpack.c.bf16 %v875, %v875
      %v952 = vsel %vm695, %v950, 0
      %v955 = vsel %vm840, %v921, 0
      %957 = vmatpush.bf16.msra.mxu0 0
      %958 = vmatpush.bf16.msra.mxu0 0
      %959 = vmatpush.bf16.msra.mxu0 0
      %960 = vmatpush.bf16.msra.mxu0 0
      %961 = vmatpush.bf16.msra.mxu0 0
      %962 = vmatpush.bf16.msra.mxu0 0
      %963 = vmatpush.bf16.msra.mxu0 0
      %964 = vmatpush.bf16.msra.mxu0 %v955
      %965 = vmatmul.bf16.gmra.mxu0 %v952
      %v966 = vpop.f32.mrf.mxu0
      %v967 = vadd.f32 0.0, %v966
      %v968 = vpop.f32.mrf.mxu0
      %969 = vdwg.mxu0
      %v970 = vadd.f32 %v949, %v967
      %v971 = vpack.c.bf16 %v896, %v896
      %v973 = vsel %vm695, %v971, 0
      %v976 = vsel %vm840, %v922, 0
      %978 = vmatpush.bf16.msra.mxu0 0
      %979 = vmatpush.bf16.msra.mxu0 0
      %980 = vmatpush.bf16.msra.mxu0 0
      %981 = vmatpush.bf16.msra.mxu0 0
      %982 = vmatpush.bf16.msra.mxu0 0
      %983 = vmatpush.bf16.msra.mxu0 0
      %984 = vmatpush.bf16.msra.mxu0 0
      %985 = vmatpush.bf16.msra.mxu0 %v976
      %986 = vmatmul.bf16.gmra.mxu0 %v973
      %v987 = vpop.f32.mrf.mxu0
      %v988 = vadd.f32 0.0, %v987
      %v989 = vpop.f32.mrf.mxu0
      %990 = vdwg.mxu0
      %v991 = vadd.f32 %v970, %v988
      %v992 = vpack.c.bf16 %v917, %v917
      %v994 = vsel %vm695, %v992, 0
      %v997 = vsel %vm840, %v923, 0
      %999 = vmatpush.bf16.msra.mxu0 0
      %1000 = vmatpush.bf16.msra.mxu0 0
      %1001 = vmatpush.bf16.msra.mxu0 0
      %1002 = vmatpush.bf16.msra.mxu0 0
      %1003 = vmatpush.bf16.msra.mxu0 0
      %1004 = vmatpush.bf16.msra.mxu0 0
      %1005 = vmatpush.bf16.msra.mxu0 0
      %1006 = vmatpush.bf16.msra.mxu0 %v997
      %1007 = vmatmul.bf16.gmra.mxu0 %v994
      %v1008 = vpop.f32.mrf.mxu0
      %v1009 = vadd.f32 0.0, %v1008
      %v1010 = vpop.f32.mrf.mxu0
      %1011 = vdwg.mxu0
      %v1012 = vadd.f32 %v991, %v1009
      %v1013 = vadd.f32 %v636, %v1012
      %v1014 = vld [vmem:[%s601] sm:$0x1]
      %v1015 = vld [vmem:[%s604] sm:$0x1]
      %v1016 = vsel %vm658, %v1013, 0.0
      %1017 = vadd.xlane.f32.xlu0 %v1016
      %v1018 = vpop.xlane.xlu0 %1017
      %v1019 = vrcp.pop 32.0
      %v1020 = vmul.f32 32.0, %v1019
      %v1021 = vsub.f32 1.0, %v1020
      %v1022 = vmul.f32 %v1019, %v1021
      %v1023 = vadd.f32 %v1019, %v1022
      %vm1024 = vweird.f32 %v1019
      %v1025 = vsel %vm1024, %v1019, %v1023
      %v1026 = vmul.f32 %v1018, %v1025
      %v1027 = vsub.f32 %v1013, %v1026
      %v1028 = vmul.f32 %v1027, %v1027
      %v1029 = vsel %vm658, %v1028, 0.0
      %1030 = vadd.xlane.f32.xlu0 %v1029
      %v1031 = vpop.xlane.xlu0 %1030
      %v1032 = vmul.f32 %v1031, %v1025
      %v1033 = vadd.f32 %v1032, 1e-05
      %v1034 = vrsqrt.pop %v1033
      %v1035 = vmul.f32 %v1034, %v1033
      %v1036 = vmul.f32 %v1035, %v1034
      %v1037 = vmul.f32 0.5, %v1036
      %v1038 = vsub.f32 1.5, %v1037
      %v1039 = vmul.f32 %v1034, %v1038
      %vm1040 = vweird.f32 %v1033
      %vm1041 = vweird.f32 %v1034
      %vm1042 = vmor %vm1040, %vm1041
      %v1043 = vsel %vm1042, %v1034, %v1039
      %v1044 = vmul.f32 %v1027, %v1043
      %v1046 = vperm.slane %v1014, 0
      %v1048 = vmul.f32 %v1044, %v1046
      %v1050 = vperm.slane %v1015, 0
      %v1052 = vadd.f32 %v1048, %v1050
      %v1053 = vld [vmem:[%s609] sm:$0xff]
      %v1054 = vld [vmem:[%s609 + $0x8] sm:$0xff]
      %v1055 = vld [vmem:[%s609 + $0x10] sm:$0xff]
      %v1056 = vld [vmem:[%s609 + $0x18] sm:$0xff]
      %v1057 = vld [vmem:[%s609 + $0x20] sm:$0xff]
      %v1058 = vld [vmem:[%s609 + $0x28] sm:$0xff]
      %v1059 = vld [vmem:[%s609 + $0x30] sm:$0xff]
      %v1060 = vld [vmem:[%s609 + $0x38] sm:$0xff]
      %v1061 = vld [vmem:[%s609 + $0x40] sm:$0xff]
      %v1062 = vld [vmem:[%s609 + $0x48] sm:$0xff]
      %v1063 = vld [vmem:[%s609 + $0x50] sm:$0xff]
      %v1064 = vld [vmem:[%s609 + $0x58] sm:$0xff]
      %v1065 = vld [vmem:[%s609 + $0x60] sm:$0xff]
      %v1066 = vld [vmem:[%s609 + $0x68] sm:$0xff]
      %v1067 = vld [vmem:[%s609 + $0x70] sm:$0xff]
      %v1068 = vld [vmem:[%s609 + $0x78] sm:$0xff]
      %v1069 = vld [vmem:[%s609 + $0x80] sm:$0xff]
      %v1070 = vld [vmem:[%s609 + $0x88] sm:$0xff]
      %v1071 = vld [vmem:[%s609 + $0x90] sm:$0xff]
      %v1072 = vld [vmem:[%s609 + $0x98] sm:$0xff]
      %v1073 = vld [vmem:[%s609 + $0xa0] sm:$0xff]
      %v1074 = vld [vmem:[%s609 + $0xa8] sm:$0xff]
      %v1075 = vld [vmem:[%s609 + $0xb0] sm:$0xff]
      %v1076 = vld [vmem:[%s609 + $0xb8] sm:$0xff]
      %v1077 = vld [vmem:[%s609 + $0xc0] sm:$0xff]
      %v1078 = vld [vmem:[%s609 + $0xc8] sm:$0xff]
      %v1079 = vld [vmem:[%s609 + $0xd0] sm:$0xff]
      %v1080 = vld [vmem:[%s609 + $0xd8] sm:$0xff]
      %v1081 = vld [vmem:[%s609 + $0xe0] sm:$0xff]
      %v1082 = vld [vmem:[%s609 + $0xe8] sm:$0xff]
      %v1083 = vld [vmem:[%s609 + $0xf0] sm:$0xff]
      %v1084 = vld [vmem:[%s609 + $0xf8] sm:$0xff]
      %v1085 = vpack.c.bf16 %v1052, %v1052
      %v1086 = vld [vmem:[%s613] sm:$0xff]
      %v1087 = vld [vmem:[%s613 + $0x8] sm:$0xff]
      %v1090 = vperm.slane %v1086, 0
      %v1091 = vperm.slane %v1086, 1
      %v1092 = vperm.slane %v1086, 2
      %v1093 = vperm.slane %v1086, 3
      %v1094 = vperm.slane %v1086, 4
      %v1095 = vperm.slane %v1086, 5
      %v1096 = vperm.slane %v1086, 6
      %v1097 = vperm.slane %v1086, 7
      %v1098 = vperm.slane %v1087, 0
      %v1099 = vperm.slane %v1087, 1
      %v1100 = vperm.slane %v1087, 2
      %v1101 = vperm.slane %v1087, 3
      %v1102 = vperm.slane %v1087, 4
      %v1103 = vperm.slane %v1087, 5
      %v1104 = vperm.slane %v1087, 6
      %v1105 = vperm.slane %v1087, 7
      %v1154 = vunpack.c.l.b16 %v1053
      %v1155 = vunpack.c.h.b16 %v1053
      %v1156 = vunpack.c.l.b16 %v1054
      %v1157 = vunpack.c.h.b16 %v1054
      %v1158 = vunpack.c.l.b16 %v1055
      %v1159 = vunpack.c.h.b16 %v1055
      %v1160 = vunpack.c.l.b16 %v1056
      %v1161 = vunpack.c.h.b16 %v1056
      %v1162 = vunpack.c.l.b16 %v1057
      %v1163 = vunpack.c.h.b16 %v1057
      %v1164 = vunpack.c.l.b16 %v1058
      %v1165 = vunpack.c.h.b16 %v1058
      %v1166 = vunpack.c.l.b16 %v1059
      %v1167 = vunpack.c.h.b16 %v1059
      %v1168 = vunpack.c.l.b16 %v1060
      %v1169 = vunpack.c.h.b16 %v1060
      %v1170 = vunpack.c.l.b16 %v1061
      %v1171 = vunpack.c.h.b16 %v1061
      %v1172 = vunpack.c.l.b16 %v1062
      %v1173 = vunpack.c.h.b16 %v1062
      %v1174 = vunpack.c.l.b16 %v1063
      %v1175 = vunpack.c.h.b16 %v1063
      %v1176 = vunpack.c.l.b16 %v1064
      %v1177 = vunpack.c.h.b16 %v1064
      %v1178 = vunpack.c.l.b16 %v1065
      %v1179 = vunpack.c.h.b16 %v1065
      %v1180 = vunpack.c.l.b16 %v1066
      %v1181 = vunpack.c.h.b16 %v1066
      %v1182 = vunpack.c.l.b16 %v1067
      %v1183 = vunpack.c.h.b16 %v1067
      %v1184 = vunpack.c.l.b16 %v1068
      %v1185 = vunpack.c.h.b16 %v1068
      %v1186 = vunpack.c.l.b16 %v1069
      %v1187 = vunpack.c.h.b16 %v1069
      %v1188 = vunpack.c.l.b16 %v1070
      %v1189 = vunpack.c.h.b16 %v1070
      %v1190 = vunpack.c.l.b16 %v1071
      %v1191 = vunpack.c.h.b16 %v1071
      %v1192 = vunpack.c.l.b16 %v1072
      %v1193 = vunpack.c.h.b16 %v1072
      %v1194 = vunpack.c.l.b16 %v1073
      %v1195 = vunpack.c.h.b16 %v1073
      %v1196 = vunpack.c.l.b16 %v1074
      %v1197 = vunpack.c.h.b16 %v1074
      %v1198 = vunpack.c.l.b16 %v1075
      %v1199 = vunpack.c.h.b16 %v1075
      %v1200 = vunpack.c.l.b16 %v1076
      %v1201 = vunpack.c.h.b16 %v1076
      %v1202 = vunpack.c.l.b16 %v1077
      %v1203 = vunpack.c.h.b16 %v1077
      %v1204 = vunpack.c.l.b16 %v1078
      %v1205 = vunpack.c.h.b16 %v1078
      %v1206 = vunpack.c.l.b16 %v1079
      %v1207 = vunpack.c.h.b16 %v1079
      %v1208 = vunpack.c.l.b16 %v1080
      %v1209 = vunpack.c.h.b16 %v1080
      %v1210 = vunpack.c.l.b16 %v1081
      %v1211 = vunpack.c.h.b16 %v1081
      %v1212 = vunpack.c.l.b16 %v1082
      %v1213 = vunpack.c.h.b16 %v1082
      %v1214 = vunpack.c.l.b16 %v1083
      %v1215 = vunpack.c.h.b16 %v1083
      %v1216 = vunpack.c.l.b16 %v1084
      %v1217 = vunpack.c.h.b16 %v1084
      %v1218 = vpack.c.b16 %v1170, %v1154
      %v1219 = vpack.c.b16 %v1171, %v1155
      %v1220 = vpack.c.b16 %v1172, %v1156
      %v1221 = vpack.c.b16 %v1173, %v1157
      %v1222 = vpack.c.b16 %v1174, %v1158
      %v1223 = vpack.c.b16 %v1175, %v1159
      %v1224 = vpack.c.b16 %v1176, %v1160
      %v1225 = vpack.c.b16 %v1177, %v1161
      %v1226 = vpack.c.b16 %v1178, %v1162
      %v1227 = vpack.c.b16 %v1179, %v1163
      %v1228 = vpack.c.b16 %v1180, %v1164
      %v1229 = vpack.c.b16 %v1181, %v1165
      %v1230 = vpack.c.b16 %v1182, %v1166
      %v1231 = vpack.c.b16 %v1183, %v1167
      %v1232 = vpack.c.b16 %v1184, %v1168
      %v1233 = vpack.c.b16 %v1185, %v1169
      %v1234 = vpack.c.b16 %v1202, %v1186
      %v1235 = vpack.c.b16 %v1203, %v1187
      %v1236 = vpack.c.b16 %v1204, %v1188
      %v1237 = vpack.c.b16 %v1205, %v1189
      %v1238 = vpack.c.b16 %v1206, %v1190
      %v1239 = vpack.c.b16 %v1207, %v1191
      %v1240 = vpack.c.b16 %v1208, %v1192
      %v1241 = vpack.c.b16 %v1209, %v1193
      %v1242 = vpack.c.b16 %v1210, %v1194
      %v1243 = vpack.c.b16 %v1211, %v1195
      %v1244 = vpack.c.b16 %v1212, %v1196
      %v1245 = vpack.c.b16 %v1213, %v1197
      %v1246 = vpack.c.b16 %v1214, %v1198
      %v1247 = vpack.c.b16 %v1215, %v1199
      %v1248 = vpack.c.b16 %v1216, %v1200
      %v1249 = vpack.c.b16 %v1217, %v1201
      %v1283 = vsel %vm658, %v1085, 0
      %1285 = vmatpush.bf16.msra.mxu0 0
      %1286 = vmatpush.bf16.msra.mxu0 0
      %1287 = vmatpush.bf16.msra.mxu0 0
      %1288 = vmatpush.bf16.msra.mxu0 0
      %1289 = vmatpush.bf16.msra.mxu0 0
      %1290 = vmatpush.bf16.msra.mxu0 0
      %1291 = vmatpush.bf16.msra.mxu0 %v1234
      %1292 = vmatpush.bf16.msra.mxu0 %v1218
      %1293 = vmatmul.bf16.gmra.mxu0 %v1283
      %v1294 = vpop.f32.mrf.mxu0
      %v1295 = vadd.f32 %v1090, %v1294
      %v1296 = vpop.f32.mrf.mxu0
      %1297 = vdwg.mxu0
      %1298 = vmatpush.bf16.msra.mxu0 0
      %1299 = vmatpush.bf16.msra.mxu0 0
      %1300 = vmatpush.bf16.msra.mxu0 0
      %1301 = vmatpush.bf16.msra.mxu0 0
      %1302 = vmatpush.bf16.msra.mxu0 0
      %1303 = vmatpush.bf16.msra.mxu0 0
      %1304 = vmatpush.bf16.msra.mxu0 %v1235
      %1305 = vmatpush.bf16.msra.mxu0 %v1219
      %1306 = vmatmul.bf16.gmra.mxu0 %v1283
      %v1307 = vpop.f32.mrf.mxu0
      %v1308 = vadd.f32 %v1091, %v1307
      %v1309 = vpop.f32.mrf.mxu0
      %1310 = vdwg.mxu0
      %1311 = vmatpush.bf16.msra.mxu0 0
      %1312 = vmatpush.bf16.msra.mxu0 0
      %1313 = vmatpush.bf16.msra.mxu0 0
      %1314 = vmatpush.bf16.msra.mxu0 0
      %1315 = vmatpush.bf16.msra.mxu0 0
      %1316 = vmatpush.bf16.msra.mxu0 0
      %1317 = vmatpush.bf16.msra.mxu0 %v1236
      %1318 = vmatpush.bf16.msra.mxu0 %v1220
      %1319 = vmatmul.bf16.gmra.mxu0 %v1283
      %v1320 = vpop.f32.mrf.mxu0
      %v1321 = vadd.f32 %v1092, %v1320
      %v1322 = vpop.f32.mrf.mxu0
      %1323 = vdwg.mxu0
      %1324 = vmatpush.bf16.msra.mxu0 0
      %1325 = vmatpush.bf16.msra.mxu0 0
      %1326 = vmatpush.bf16.msra.mxu0 0
      %1327 = vmatpush.bf16.msra.mxu0 0
      %1328 = vmatpush.bf16.msra.mxu0 0
      %1329 = vmatpush.bf16.msra.mxu0 0
      %1330 = vmatpush.bf16.msra.mxu0 %v1237
      %1331 = vmatpush.bf16.msra.mxu0 %v1221
      %1332 = vmatmul.bf16.gmra.mxu0 %v1283
      %v1333 = vpop.f32.mrf.mxu0
      %v1334 = vadd.f32 %v1093, %v1333
      %v1335 = vpop.f32.mrf.mxu0
      %1336 = vdwg.mxu0
      %1337 = vmatpush.bf16.msra.mxu0 0
      %1338 = vmatpush.bf16.msra.mxu0 0
      %1339 = vmatpush.bf16.msra.mxu0 0
      %1340 = vmatpush.bf16.msra.mxu0 0
      %1341 = vmatpush.bf16.msra.mxu0 0
      %1342 = vmatpush.bf16.msra.mxu0 0
      %1343 = vmatpush.bf16.msra.mxu0 %v1238
      %1344 = vmatpush.bf16.msra.mxu0 %v1222
      %1345 = vmatmul.bf16.gmra.mxu0 %v1283
      %v1346 = vpop.f32.mrf.mxu0
      %v1347 = vadd.f32 %v1094, %v1346
      %v1348 = vpop.f32.mrf.mxu0
      %1349 = vdwg.mxu0
      %1350 = vmatpush.bf16.msra.mxu0 0
      %1351 = vmatpush.bf16.msra.mxu0 0
      %1352 = vmatpush.bf16.msra.mxu0 0
      %1353 = vmatpush.bf16.msra.mxu0 0
      %1354 = vmatpush.bf16.msra.mxu0 0
      %1355 = vmatpush.bf16.msra.mxu0 0
      %1356 = vmatpush.bf16.msra.mxu0 %v1239
      %1357 = vmatpush.bf16.msra.mxu0 %v1223
      %1358 = vmatmul.bf16.gmra.mxu0 %v1283
      %v1359 = vpop.f32.mrf.mxu0
      %v1360 = vadd.f32 %v1095, %v1359
      %v1361 = vpop.f32.mrf.mxu0
      %1362 = vdwg.mxu0
      %1363 = vmatpush.bf16.msra.mxu0 0
      %1364 = vmatpush.bf16.msra.mxu0 0
      %1365 = vmatpush.bf16.msra.mxu0 0
      %1366 = vmatpush.bf16.msra.mxu0 0
      %1367 = vmatpush.bf16.msra.mxu0 0
      %1368 = vmatpush.bf16.msra.mxu0 0
      %1369 = vmatpush.bf16.msra.mxu0 %v1240
      %1370 = vmatpush.bf16.msra.mxu0 %v1224
      %1371 = vmatmul.bf16.gmra.mxu0 %v1283
      %v1372 = vpop.f32.mrf.mxu0
      %v1373 = vadd.f32 %v1096, %v1372
      %v1374 = vpop.f32.mrf.mxu0
      %1375 = vdwg.mxu0
      %1376 = vmatpush.bf16.msra.mxu0 0
      %1377 = vmatpush.bf16.msra.mxu0 0
      %1378 = vmatpush.bf16.msra.mxu0 0
      %1379 = vmatpush.bf16.msra.mxu0 0
      %1380 = vmatpush.bf16.msra.mxu0 0
      %1381 = vmatpush.bf16.msra.mxu0 0
      %1382 = vmatpush.bf16.msra.mxu0 %v1241
      %1383 = vmatpush.bf16.msra.mxu0 %v1225
      %1384 = vmatmul.bf16.gmra.mxu0 %v1283
      %v1385 = vpop.f32.mrf.mxu0
      %v1386 = vadd.f32 %v1097, %v1385
      %v1387 = vpop.f32.mrf.mxu0
      %1388 = vdwg.mxu0
      %1389 = vmatpush.bf16.msra.mxu0 0
      %1390 = vmatpush.bf16.msra.mxu0 0
      %1391 = vmatpush.bf16.msra.mxu0 0
      %1392 = vmatpush.bf16.msra.mxu0 0
      %1393 = vmatpush.bf16.msra.mxu0 0
      %1394 = vmatpush.bf16.msra.mxu0 0
      %1395 = vmatpush.bf16.msra.mxu0 %v1242
      %1396 = vmatpush.bf16.msra.mxu0 %v1226
      %1397 = vmatmul.bf16.gmra.mxu0 %v1283
      %v1398 = vpop.f32.mrf.mxu0
      %v1399 = vadd.f32 %v1098, %v1398
      %v1400 = vpop.f32.mrf.mxu0
      %1401 = vdwg.mxu0
      %1402 = vmatpush.bf16.msra.mxu0 0
      %1403 = vmatpush.bf16.msra.mxu0 0
      %1404 = vmatpush.bf16.msra.mxu0 0
      %1405 = vmatpush.bf16.msra.mxu0 0
      %1406 = vmatpush.bf16.msra.mxu0 0
      %1407 = vmatpush.bf16.msra.mxu0 0
      %1408 = vmatpush.bf16.msra.mxu0 %v1243
      %1409 = vmatpush.bf16.msra.mxu0 %v1227
      %1410 = vmatmul.bf16.gmra.mxu0 %v1283
      %v1411 = vpop.f32.mrf.mxu0
      %v1412 = vadd.f32 %v1099, %v1411
      %v1413 = vpop.f32.mrf.mxu0
      %1414 = vdwg.mxu0
      %1415 = vmatpush.bf16.msra.mxu0 0
      %1416 = vmatpush.bf16.msra.mxu0 0
      %1417 = vmatpush.bf16.msra.mxu0 0
      %1418 = vmatpush.bf16.msra.mxu0 0
      %1419 = vmatpush.bf16.msra.mxu0 0
      %1420 = vmatpush.bf16.msra.mxu0 0
      %1421 = vmatpush.bf16.msra.mxu0 %v1244
      %1422 = vmatpush.bf16.msra.mxu0 %v1228
      %1423 = vmatmul.bf16.gmra.mxu0 %v1283
      %v1424 = vpop.f32.mrf.mxu0
      %v1425 = vadd.f32 %v1100, %v1424
      %v1426 = vpop.f32.mrf.mxu0
      %1427 = vdwg.mxu0
      %1428 = vmatpush.bf16.msra.mxu0 0
      %1429 = vmatpush.bf16.msra.mxu0 0
      %1430 = vmatpush.bf16.msra.mxu0 0
      %1431 = vmatpush.bf16.msra.mxu0 0
      %1432 = vmatpush.bf16.msra.mxu0 0
      %1433 = vmatpush.bf16.msra.mxu0 0
      %1434 = vmatpush.bf16.msra.mxu0 %v1245
      %1435 = vmatpush.bf16.msra.mxu0 %v1229
      %1436 = vmatmul.bf16.gmra.mxu0 %v1283
      %v1437 = vpop.f32.mrf.mxu0
      %v1438 = vadd.f32 %v1101, %v1437
      %v1439 = vpop.f32.mrf.mxu0
      %1440 = vdwg.mxu0
      %1441 = vmatpush.bf16.msra.mxu0 0
      %1442 = vmatpush.bf16.msra.mxu0 0
      %1443 = vmatpush.bf16.msra.mxu0 0
      %1444 = vmatpush.bf16.msra.mxu0 0
      %1445 = vmatpush.bf16.msra.mxu0 0
      %1446 = vmatpush.bf16.msra.mxu0 0
      %1447 = vmatpush.bf16.msra.mxu0 %v1246
      %1448 = vmatpush.bf16.msra.mxu0 %v1230
      %1449 = vmatmul.bf16.gmra.mxu0 %v1283
      %v1450 = vpop.f32.mrf.mxu0
      %v1451 = vadd.f32 %v1102, %v1450
      %v1452 = vpop.f32.mrf.mxu0
      %1453 = vdwg.mxu0
      %1454 = vmatpush.bf16.msra.mxu0 0
      %1455 = vmatpush.bf16.msra.mxu0 0
      %1456 = vmatpush.bf16.msra.mxu0 0
      %1457 = vmatpush.bf16.msra.mxu0 0
      %1458 = vmatpush.bf16.msra.mxu0 0
      %1459 = vmatpush.bf16.msra.mxu0 0
      %1460 = vmatpush.bf16.msra.mxu0 %v1247
      %1461 = vmatpush.bf16.msra.mxu0 %v1231
      %1462 = vmatmul.bf16.gmra.mxu0 %v1283
      %v1463 = vpop.f32.mrf.mxu0
      %v1464 = vadd.f32 %v1103, %v1463
      %v1465 = vpop.f32.mrf.mxu0
      %1466 = vdwg.mxu0
      %1467 = vmatpush.bf16.msra.mxu0 0
      %1468 = vmatpush.bf16.msra.mxu0 0
      %1469 = vmatpush.bf16.msra.mxu0 0
      %1470 = vmatpush.bf16.msra.mxu0 0
      %1471 = vmatpush.bf16.msra.mxu0 0
      %1472 = vmatpush.bf16.msra.mxu0 0
      %1473 = vmatpush.bf16.msra.mxu0 %v1248
      %1474 = vmatpush.bf16.msra.mxu0 %v1232
      %1475 = vmatmul.bf16.gmra.mxu0 %v1283
      %v1476 = vpop.f32.mrf.mxu0
      %v1477 = vadd.f32 %v1104, %v1476
      %v1478 = vpop.f32.mrf.mxu0
      %1479 = vdwg.mxu0
      %1480 = vmatpush.bf16.msra.mxu0 0
      %1481 = vmatpush.bf16.msra.mxu0 0
      %1482 = vmatpush.bf16.msra.mxu0 0
      %1483 = vmatpush.bf16.msra.mxu0 0
      %1484 = vmatpush.bf16.msra.mxu0 0
      %1485 = vmatpush.bf16.msra.mxu0 0
      %1486 = vmatpush.bf16.msra.mxu0 %v1249
      %1487 = vmatpush.bf16.msra.mxu0 %v1233
      %1488 = vmatmul.bf16.gmra.mxu0 %v1283
      %v1489 = vpop.f32.mrf.mxu0
      %v1490 = vadd.f32 %v1105, %v1489
      %v1491 = vpop.f32.mrf.mxu0
      %1492 = vdwg.mxu0
      %v1493 = vmax.f32 %v1295, 0.0
      %v1494 = vmax.f32 %v1308, 0.0
      %v1495 = vmax.f32 %v1321, 0.0
      %v1496 = vmax.f32 %v1334, 0.0
      %v1497 = vmax.f32 %v1347, 0.0
      %v1498 = vmax.f32 %v1360, 0.0
      %v1499 = vmax.f32 %v1373, 0.0
      %v1500 = vmax.f32 %v1386, 0.0
      %v1501 = vmax.f32 %v1399, 0.0
      %v1502 = vmax.f32 %v1412, 0.0
      %v1503 = vmax.f32 %v1425, 0.0
      %v1504 = vmax.f32 %v1438, 0.0
      %v1505 = vmax.f32 %v1451, 0.0
      %v1506 = vmax.f32 %v1464, 0.0
      %v1507 = vmax.f32 %v1477, 0.0
      %v1508 = vmax.f32 %v1490, 0.0
      %v1509 = vld [vmem:[%s618] sm:$0xf]
      %v1510 = vld [vmem:[%s618 + $0x4] sm:$0xf]
      %v1511 = vld [vmem:[%s618 + $0x8] sm:$0xf]
      %v1512 = vld [vmem:[%s618 + $0xc] sm:$0xf]
      %v1513 = vld [vmem:[%s618 + $0x10] sm:$0xf]
      %v1514 = vld [vmem:[%s618 + $0x14] sm:$0xf]
      %v1515 = vld [vmem:[%s618 + $0x18] sm:$0xf]
      %v1516 = vld [vmem:[%s618 + $0x1c] sm:$0xf]
      %v1517 = vld [vmem:[%s618 + $0x20] sm:$0xf]
      %v1518 = vld [vmem:[%s618 + $0x24] sm:$0xf]
      %v1519 = vld [vmem:[%s618 + $0x28] sm:$0xf]
      %v1520 = vld [vmem:[%s618 + $0x2c] sm:$0xf]
      %v1521 = vld [vmem:[%s618 + $0x30] sm:$0xf]
      %v1522 = vld [vmem:[%s618 + $0x34] sm:$0xf]
      %v1523 = vld [vmem:[%s618 + $0x38] sm:$0xf]
      %v1524 = vld [vmem:[%s618 + $0x3c] sm:$0xf]
      %v1525 = vld [vmem:[%s618 + $0x40] sm:$0xf]
      %v1526 = vld [vmem:[%s618 + $0x44] sm:$0xf]
      %v1527 = vld [vmem:[%s618 + $0x48] sm:$0xf]
      %v1528 = vld [vmem:[%s618 + $0x4c] sm:$0xf]
      %v1529 = vld [vmem:[%s618 + $0x50] sm:$0xf]
      %v1530 = vld [vmem:[%s618 + $0x54] sm:$0xf]
      %v1531 = vld [vmem:[%s618 + $0x58] sm:$0xf]
      %v1532 = vld [vmem:[%s618 + $0x5c] sm:$0xf]
      %v1533 = vld [vmem:[%s618 + $0x60] sm:$0xf]
      %v1534 = vld [vmem:[%s618 + $0x64] sm:$0xf]
      %v1535 = vld [vmem:[%s618 + $0x68] sm:$0xf]
      %v1536 = vld [vmem:[%s618 + $0x6c] sm:$0xf]
      %v1537 = vld [vmem:[%s618 + $0x70] sm:$0xf]
      %v1538 = vld [vmem:[%s618 + $0x74] sm:$0xf]
      %v1539 = vld [vmem:[%s618 + $0x78] sm:$0xf]
      %v1540 = vld [vmem:[%s618 + $0x7c] sm:$0xf]
      %v1541 = vld [vmem:[%s618 + $0x80] sm:$0xf]
      %v1542 = vld [vmem:[%s618 + $0x84] sm:$0xf]
      %v1543 = vld [vmem:[%s618 + $0x88] sm:$0xf]
      %v1544 = vld [vmem:[%s618 + $0x8c] sm:$0xf]
      %v1545 = vld [vmem:[%s618 + $0x90] sm:$0xf]
      %v1546 = vld [vmem:[%s618 + $0x94] sm:$0xf]
      %v1547 = vld [vmem:[%s618 + $0x98] sm:$0xf]
      %v1548 = vld [vmem:[%s618 + $0x9c] sm:$0xf]
      %v1549 = vld [vmem:[%s618 + $0xa0] sm:$0xf]
      %v1550 = vld [vmem:[%s618 + $0xa4] sm:$0xf]
      %v1551 = vld [vmem:[%s618 + $0xa8] sm:$0xf]
      %v1552 = vld [vmem:[%s618 + $0xac] sm:$0xf]
      %v1553 = vld [vmem:[%s618 + $0xb0] sm:$0xf]
      %v1554 = vld [vmem:[%s618 + $0xb4] sm:$0xf]
      %v1555 = vld [vmem:[%s618 + $0xb8] sm:$0xf]
      %v1556 = vld [vmem:[%s618 + $0xbc] sm:$0xf]
      %v1557 = vld [vmem:[%s618 + $0xc0] sm:$0xf]
      %v1558 = vld [vmem:[%s618 + $0xc4] sm:$0xf]
      %v1559 = vld [vmem:[%s618 + $0xc8] sm:$0xf]
      %v1560 = vld [vmem:[%s618 + $0xcc] sm:$0xf]
      %v1561 = vld [vmem:[%s618 + $0xd0] sm:$0xf]
      %v1562 = vld [vmem:[%s618 + $0xd4] sm:$0xf]
      %v1563 = vld [vmem:[%s618 + $0xd8] sm:$0xf]
      %v1564 = vld [vmem:[%s618 + $0xdc] sm:$0xf]
      %v1565 = vld [vmem:[%s618 + $0xe0] sm:$0xf]
      %v1566 = vld [vmem:[%s618 + $0xe4] sm:$0xf]
      %v1567 = vld [vmem:[%s618 + $0xe8] sm:$0xf]
      %v1568 = vld [vmem:[%s618 + $0xec] sm:$0xf]
      %v1569 = vld [vmem:[%s618 + $0xf0] sm:$0xf]
      %v1570 = vld [vmem:[%s618 + $0xf4] sm:$0xf]
      %v1571 = vld [vmem:[%s618 + $0xf8] sm:$0xf]
      %v1572 = vld [vmem:[%s618 + $0xfc] sm:$0xf]
      %v1573 = vld [vmem:[%s618 + $0x100] sm:$0xf]
      %v1574 = vld [vmem:[%s618 + $0x104] sm:$0xf]
      %v1575 = vld [vmem:[%s618 + $0x108] sm:$0xf]
      %v1576 = vld [vmem:[%s618 + $0x10c] sm:$0xf]
      %v1577 = vld [vmem:[%s618 + $0x110] sm:$0xf]
      %v1578 = vld [vmem:[%s618 + $0x114] sm:$0xf]
      %v1579 = vld [vmem:[%s618 + $0x118] sm:$0xf]
      %v1580 = vld [vmem:[%s618 + $0x11c] sm:$0xf]
      %v1581 = vld [vmem:[%s618 + $0x120] sm:$0xf]
      %v1582 = vld [vmem:[%s618 + $0x124] sm:$0xf]
      %v1583 = vld [vmem:[%s618 + $0x128] sm:$0xf]
      %v1584 = vld [vmem:[%s618 + $0x12c] sm:$0xf]
      %v1585 = vld [vmem:[%s618 + $0x130] sm:$0xf]
      %v1586 = vld [vmem:[%s618 + $0x134] sm:$0xf]
      %v1587 = vld [vmem:[%s618 + $0x138] sm:$0xf]
      %v1588 = vld [vmem:[%s618 + $0x13c] sm:$0xf]
      %v1589 = vld [vmem:[%s618 + $0x140] sm:$0xf]
      %v1590 = vld [vmem:[%s618 + $0x144] sm:$0xf]
      %v1591 = vld [vmem:[%s618 + $0x148] sm:$0xf]
      %v1592 = vld [vmem:[%s618 + $0x14c] sm:$0xf]
      %v1593 = vld [vmem:[%s618 + $0x150] sm:$0xf]
      %v1594 = vld [vmem:[%s618 + $0x154] sm:$0xf]
      %v1595 = vld [vmem:[%s618 + $0x158] sm:$0xf]
      %v1596 = vld [vmem:[%s618 + $0x15c] sm:$0xf]
      %v1597 = vld [vmem:[%s618 + $0x160] sm:$0xf]
      %v1598 = vld [vmem:[%s618 + $0x164] sm:$0xf]
      %v1599 = vld [vmem:[%s618 + $0x168] sm:$0xf]
      %v1600 = vld [vmem:[%s618 + $0x16c] sm:$0xf]
      %v1601 = vld [vmem:[%s618 + $0x170] sm:$0xf]
      %v1602 = vld [vmem:[%s618 + $0x174] sm:$0xf]
      %v1603 = vld [vmem:[%s618 + $0x178] sm:$0xf]
      %v1604 = vld [vmem:[%s618 + $0x17c] sm:$0xf]
      %v1605 = vld [vmem:[%s618 + $0x180] sm:$0xf]
      %v1606 = vld [vmem:[%s618 + $0x184] sm:$0xf]
      %v1607 = vld [vmem:[%s618 + $0x188] sm:$0xf]
      %v1608 = vld [vmem:[%s618 + $0x18c] sm:$0xf]
      %v1609 = vld [vmem:[%s618 + $0x190] sm:$0xf]
      %v1610 = vld [vmem:[%s618 + $0x194] sm:$0xf]
      %v1611 = vld [vmem:[%s618 + $0x198] sm:$0xf]
      %v1612 = vld [vmem:[%s618 + $0x19c] sm:$0xf]
      %v1613 = vld [vmem:[%s618 + $0x1a0] sm:$0xf]
      %v1614 = vld [vmem:[%s618 + $0x1a4] sm:$0xf]
      %v1615 = vld [vmem:[%s618 + $0x1a8] sm:$0xf]
      %v1616 = vld [vmem:[%s618 + $0x1ac] sm:$0xf]
      %v1617 = vld [vmem:[%s618 + $0x1b0] sm:$0xf]
      %v1618 = vld [vmem:[%s618 + $0x1b4] sm:$0xf]
      %v1619 = vld [vmem:[%s618 + $0x1b8] sm:$0xf]
      %v1620 = vld [vmem:[%s618 + $0x1bc] sm:$0xf]
      %v1621 = vld [vmem:[%s618 + $0x1c0] sm:$0xf]
      %v1622 = vld [vmem:[%s618 + $0x1c4] sm:$0xf]
      %v1623 = vld [vmem:[%s618 + $0x1c8] sm:$0xf]
      %v1624 = vld [vmem:[%s618 + $0x1cc] sm:$0xf]
      %v1625 = vld [vmem:[%s618 + $0x1d0] sm:$0xf]
      %v1626 = vld [vmem:[%s618 + $0x1d4] sm:$0xf]
      %v1627 = vld [vmem:[%s618 + $0x1d8] sm:$0xf]
      %v1628 = vld [vmem:[%s618 + $0x1dc] sm:$0xf]
      %v1629 = vld [vmem:[%s618 + $0x1e0] sm:$0xf]
      %v1630 = vld [vmem:[%s618 + $0x1e4] sm:$0xf]
      %v1631 = vld [vmem:[%s618 + $0x1e8] sm:$0xf]
      %v1632 = vld [vmem:[%s618 + $0x1ec] sm:$0xf]
      %v1633 = vld [vmem:[%s618 + $0x1f0] sm:$0xf]
      %v1634 = vld [vmem:[%s618 + $0x1f4] sm:$0xf]
      %v1635 = vld [vmem:[%s618 + $0x1f8] sm:$0xf]
      %v1636 = vld [vmem:[%s618 + $0x1fc] sm:$0xf]
      %v1637 = vld [vmem:[%s618 + $0x200] sm:$0xf]
      %v1638 = vld [vmem:[%s618 + $0x204] sm:$0xf]
      %v1639 = vld [vmem:[%s618 + $0x208] sm:$0xf]
      %v1640 = vld [vmem:[%s618 + $0x20c] sm:$0xf]
      %v1641 = vld [vmem:[%s618 + $0x210] sm:$0xf]
      %v1642 = vld [vmem:[%s618 + $0x214] sm:$0xf]
      %v1643 = vld [vmem:[%s618 + $0x218] sm:$0xf]
      %v1644 = vld [vmem:[%s618 + $0x21c] sm:$0xf]
      %v1645 = vld [vmem:[%s618 + $0x220] sm:$0xf]
      %v1646 = vld [vmem:[%s618 + $0x224] sm:$0xf]
      %v1647 = vld [vmem:[%s618 + $0x228] sm:$0xf]
      %v1648 = vld [vmem:[%s618 + $0x22c] sm:$0xf]
      %v1649 = vld [vmem:[%s618 + $0x230] sm:$0xf]
      %v1650 = vld [vmem:[%s618 + $0x234] sm:$0xf]
      %v1651 = vld [vmem:[%s618 + $0x238] sm:$0xf]
      %v1652 = vld [vmem:[%s618 + $0x23c] sm:$0xf]
      %v1653 = vld [vmem:[%s618 + $0x240] sm:$0xf]
      %v1654 = vld [vmem:[%s618 + $0x244] sm:$0xf]
      %v1655 = vld [vmem:[%s618 + $0x248] sm:$0xf]
      %v1656 = vld [vmem:[%s618 + $0x24c] sm:$0xf]
      %v1657 = vld [vmem:[%s618 + $0x250] sm:$0xf]
      %v1658 = vld [vmem:[%s618 + $0x254] sm:$0xf]
      %v1659 = vld [vmem:[%s618 + $0x258] sm:$0xf]
      %v1660 = vld [vmem:[%s618 + $0x25c] sm:$0xf]
      %v1661 = vld [vmem:[%s618 + $0x260] sm:$0xf]
      %v1662 = vld [vmem:[%s618 + $0x264] sm:$0xf]
      %v1663 = vld [vmem:[%s618 + $0x268] sm:$0xf]
      %v1664 = vld [vmem:[%s618 + $0x26c] sm:$0xf]
      %v1665 = vld [vmem:[%s618 + $0x270] sm:$0xf]
      %v1666 = vld [vmem:[%s618 + $0x274] sm:$0xf]
      %v1667 = vld [vmem:[%s618 + $0x278] sm:$0xf]
      %v1668 = vld [vmem:[%s618 + $0x27c] sm:$0xf]
      %v1669 = vld [vmem:[%s618 + $0x280] sm:$0xf]
      %v1670 = vld [vmem:[%s618 + $0x284] sm:$0xf]
      %v1671 = vld [vmem:[%s618 + $0x288] sm:$0xf]
      %v1672 = vld [vmem:[%s618 + $0x28c] sm:$0xf]
      %v1673 = vld [vmem:[%s618 + $0x290] sm:$0xf]
      %v1674 = vld [vmem:[%s618 + $0x294] sm:$0xf]
      %v1675 = vld [vmem:[%s618 + $0x298] sm:$0xf]
      %v1676 = vld [vmem:[%s618 + $0x29c] sm:$0xf]
      %v1677 = vld [vmem:[%s618 + $0x2a0] sm:$0xf]
      %v1678 = vld [vmem:[%s618 + $0x2a4] sm:$0xf]
      %v1679 = vld [vmem:[%s618 + $0x2a8] sm:$0xf]
      %v1680 = vld [vmem:[%s618 + $0x2ac] sm:$0xf]
      %v1681 = vld [vmem:[%s618 + $0x2b0] sm:$0xf]
      %v1682 = vld [vmem:[%s618 + $0x2b4] sm:$0xf]
      %v1683 = vld [vmem:[%s618 + $0x2b8] sm:$0xf]
      %v1684 = vld [vmem:[%s618 + $0x2bc] sm:$0xf]
      %v1685 = vld [vmem:[%s618 + $0x2c0] sm:$0xf]
      %v1686 = vld [vmem:[%s618 + $0x2c4] sm:$0xf]
      %v1687 = vld [vmem:[%s618 + $0x2c8] sm:$0xf]
      %v1688 = vld [vmem:[%s618 + $0x2cc] sm:$0xf]
      %v1689 = vld [vmem:[%s618 + $0x2d0] sm:$0xf]
      %v1690 = vld [vmem:[%s618 + $0x2d4] sm:$0xf]
      %v1691 = vld [vmem:[%s618 + $0x2d8] sm:$0xf]
      %v1692 = vld [vmem:[%s618 + $0x2dc] sm:$0xf]
      %v1693 = vld [vmem:[%s618 + $0x2e0] sm:$0xf]
      %v1694 = vld [vmem:[%s618 + $0x2e4] sm:$0xf]
      %v1695 = vld [vmem:[%s618 + $0x2e8] sm:$0xf]
      %v1696 = vld [vmem:[%s618 + $0x2ec] sm:$0xf]
      %v1697 = vld [vmem:[%s618 + $0x2f0] sm:$0xf]
      %v1698 = vld [vmem:[%s618 + $0x2f4] sm:$0xf]
      %v1699 = vld [vmem:[%s618 + $0x2f8] sm:$0xf]
      %v1700 = vld [vmem:[%s618 + $0x2fc] sm:$0xf]
      %v1701 = vld [vmem:[%s618 + $0x300] sm:$0xf]
      %v1702 = vld [vmem:[%s618 + $0x304] sm:$0xf]
      %v1703 = vld [vmem:[%s618 + $0x308] sm:$0xf]
      %v1704 = vld [vmem:[%s618 + $0x30c] sm:$0xf]
      %v1705 = vld [vmem:[%s618 + $0x310] sm:$0xf]
      %v1706 = vld [vmem:[%s618 + $0x314] sm:$0xf]
      %v1707 = vld [vmem:[%s618 + $0x318] sm:$0xf]
      %v1708 = vld [vmem:[%s618 + $0x31c] sm:$0xf]
      %v1709 = vld [vmem:[%s618 + $0x320] sm:$0xf]
      %v1710 = vld [vmem:[%s618 + $0x324] sm:$0xf]
      %v1711 = vld [vmem:[%s618 + $0x328] sm:$0xf]
      %v1712 = vld [vmem:[%s618 + $0x32c] sm:$0xf]
      %v1713 = vld [vmem:[%s618 + $0x330] sm:$0xf]
      %v1714 = vld [vmem:[%s618 + $0x334] sm:$0xf]
      %v1715 = vld [vmem:[%s618 + $0x338] sm:$0xf]
      %v1716 = vld [vmem:[%s618 + $0x33c] sm:$0xf]
      %v1717 = vld [vmem:[%s618 + $0x340] sm:$0xf]
      %v1718 = vld [vmem:[%s618 + $0x344] sm:$0xf]
      %v1719 = vld [vmem:[%s618 + $0x348] sm:$0xf]
      %v1720 = vld [vmem:[%s618 + $0x34c] sm:$0xf]
      %v1721 = vld [vmem:[%s618 + $0x350] sm:$0xf]
      %v1722 = vld [vmem:[%s618 + $0x354] sm:$0xf]
      %v1723 = vld [vmem:[%s618 + $0x358] sm:$0xf]
      %v1724 = vld [vmem:[%s618 + $0x35c] sm:$0xf]
      %v1725 = vld [vmem:[%s618 + $0x360] sm:$0xf]
      %v1726 = vld [vmem:[%s618 + $0x364] sm:$0xf]
      %v1727 = vld [vmem:[%s618 + $0x368] sm:$0xf]
      %v1728 = vld [vmem:[%s618 + $0x36c] sm:$0xf]
      %v1729 = vld [vmem:[%s618 + $0x370] sm:$0xf]
      %v1730 = vld [vmem:[%s618 + $0x374] sm:$0xf]
      %v1731 = vld [vmem:[%s618 + $0x378] sm:$0xf]
      %v1732 = vld [vmem:[%s618 + $0x37c] sm:$0xf]
      %v1733 = vld [vmem:[%s618 + $0x380] sm:$0xf]
      %v1734 = vld [vmem:[%s618 + $0x384] sm:$0xf]
      %v1735 = vld [vmem:[%s618 + $0x388] sm:$0xf]
      %v1736 = vld [vmem:[%s618 + $0x38c] sm:$0xf]
      %v1737 = vld [vmem:[%s618 + $0x390] sm:$0xf]
      %v1738 = vld [vmem:[%s618 + $0x394] sm:$0xf]
      %v1739 = vld [vmem:[%s618 + $0x398] sm:$0xf]
      %v1740 = vld [vmem:[%s618 + $0x39c] sm:$0xf]
      %v1741 = vld [vmem:[%s618 + $0x3a0] sm:$0xf]
      %v1742 = vld [vmem:[%s618 + $0x3a4] sm:$0xf]
      %v1743 = vld [vmem:[%s618 + $0x3a8] sm:$0xf]
      %v1744 = vld [vmem:[%s618 + $0x3ac] sm:$0xf]
      %v1745 = vld [vmem:[%s618 + $0x3b0] sm:$0xf]
      %v1746 = vld [vmem:[%s618 + $0x3b4] sm:$0xf]
      %v1747 = vld [vmem:[%s618 + $0x3b8] sm:$0xf]
      %v1748 = vld [vmem:[%s618 + $0x3bc] sm:$0xf]
      %v1749 = vld [vmem:[%s618 + $0x3c0] sm:$0xf]
      %v1750 = vld [vmem:[%s618 + $0x3c4] sm:$0xf]
      %v1751 = vld [vmem:[%s618 + $0x3c8] sm:$0xf]
      %v1752 = vld [vmem:[%s618 + $0x3cc] sm:$0xf]
      %v1753 = vld [vmem:[%s618 + $0x3d0] sm:$0xf]
      %v1754 = vld [vmem:[%s618 + $0x3d4] sm:$0xf]
      %v1755 = vld [vmem:[%s618 + $0x3d8] sm:$0xf]
      %v1756 = vld [vmem:[%s618 + $0x3dc] sm:$0xf]
      %v1757 = vld [vmem:[%s618 + $0x3e0] sm:$0xf]
      %v1758 = vld [vmem:[%s618 + $0x3e4] sm:$0xf]
      %v1759 = vld [vmem:[%s618 + $0x3e8] sm:$0xf]
      %v1760 = vld [vmem:[%s618 + $0x3ec] sm:$0xf]
      %v1761 = vld [vmem:[%s618 + $0x3f0] sm:$0xf]
      %v1762 = vld [vmem:[%s618 + $0x3f4] sm:$0xf]
      %v1763 = vld [vmem:[%s618 + $0x3f8] sm:$0xf]
      %v1764 = vld [vmem:[%s618 + $0x3fc] sm:$0xf]
      %v1765 = vpack.c.bf16 %v1493, %v1493
      %v1766 = vpack.c.bf16 %v1494, %v1494
      %v1767 = vpack.c.bf16 %v1495, %v1495
      %v1768 = vpack.c.bf16 %v1496, %v1496
      %v1769 = vpack.c.bf16 %v1497, %v1497
      %v1770 = vpack.c.bf16 %v1498, %v1498
      %v1771 = vpack.c.bf16 %v1499, %v1499
      %v1772 = vpack.c.bf16 %v1500, %v1500
      %v1773 = vpack.c.bf16 %v1501, %v1501
      %v1774 = vpack.c.bf16 %v1502, %v1502
      %v1775 = vpack.c.bf16 %v1503, %v1503
      %v1776 = vpack.c.bf16 %v1504, %v1504
      %v1777 = vpack.c.bf16 %v1505, %v1505
      %v1778 = vpack.c.bf16 %v1506, %v1506
      %v1779 = vpack.c.bf16 %v1507, %v1507
      %v1780 = vpack.c.bf16 %v1508, %v1508
      %v1781 = vld [vmem:[%s621] sm:$0x1]
      %v1783 = vperm.slane %v1781, 0
      %v2041 = vunpack.c.l.b16 %v1509
      %v2042 = vunpack.c.l.b16 %v1510
      %v2043 = vunpack.c.l.b16 %v1511
      %v2044 = vunpack.c.l.b16 %v1512
      %v2045 = vunpack.c.l.b16 %v1513
      %v2046 = vunpack.c.l.b16 %v1514
      %v2047 = vunpack.c.l.b16 %v1515
      %v2048 = vunpack.c.l.b16 %v1516
      %v2049 = vunpack.c.l.b16 %v1517
      %v2050 = vunpack.c.l.b16 %v1518
      %v2051 = vunpack.c.l.b16 %v1519
      %v2052 = vunpack.c.l.b16 %v1520
      %v2053 = vunpack.c.l.b16 %v1521
      %v2054 = vunpack.c.l.b16 %v1522
      %v2055 = vunpack.c.l.b16 %v1523
      %v2056 = vunpack.c.l.b16 %v1524
      %v2057 = vunpack.c.l.b16 %v1525
      %v2058 = vunpack.c.l.b16 %v1526
      %v2059 = vunpack.c.l.b16 %v1527
      %v2060 = vunpack.c.l.b16 %v1528
      %v2061 = vunpack.c.l.b16 %v1529
      %v2062 = vunpack.c.l.b16 %v1530
      %v2063 = vunpack.c.l.b16 %v1531
      %v2064 = vunpack.c.l.b16 %v1532
      %v2065 = vunpack.c.l.b16 %v1533
      %v2066 = vunpack.c.l.b16 %v1534
      %v2067 = vunpack.c.l.b16 %v1535
      %v2068 = vunpack.c.l.b16 %v1536
      %v2069 = vunpack.c.l.b16 %v1537
      %v2070 = vunpack.c.l.b16 %v1538
      %v2071 = vunpack.c.l.b16 %v1539
      %v2072 = vunpack.c.l.b16 %v1540
      %v2073 = vunpack.c.l.b16 %v1541
      %v2074 = vunpack.c.l.b16 %v1542
      %v2075 = vunpack.c.l.b16 %v1543
      %v2076 = vunpack.c.l.b16 %v1544
      %v2077 = vunpack.c.l.b16 %v1545
      %v2078 = vunpack.c.l.b16 %v1546
      %v2079 = vunpack.c.l.b16 %v1547
      %v2080 = vunpack.c.l.b16 %v1548
      %v2081 = vunpack.c.l.b16 %v1549
      %v2082 = vunpack.c.l.b16 %v1550
      %v2083 = vunpack.c.l.b16 %v1551
      %v2084 = vunpack.c.l.b16 %v1552
      %v2085 = vunpack.c.l.b16 %v1553
      %v2086 = vunpack.c.l.b16 %v1554
      %v2087 = vunpack.c.l.b16 %v1555
      %v2088 = vunpack.c.l.b16 %v1556
      %v2089 = vunpack.c.l.b16 %v1557
      %v2090 = vunpack.c.l.b16 %v1558
      %v2091 = vunpack.c.l.b16 %v1559
      %v2092 = vunpack.c.l.b16 %v1560
      %v2093 = vunpack.c.l.b16 %v1561
      %v2094 = vunpack.c.l.b16 %v1562
      %v2095 = vunpack.c.l.b16 %v1563
      %v2096 = vunpack.c.l.b16 %v1564
      %v2097 = vunpack.c.l.b16 %v1565
      %v2098 = vunpack.c.l.b16 %v1566
      %v2099 = vunpack.c.l.b16 %v1567
      %v2100 = vunpack.c.l.b16 %v1568
      %v2101 = vunpack.c.l.b16 %v1569
      %v2102 = vunpack.c.l.b16 %v1570
      %v2103 = vunpack.c.l.b16 %v1571
      %v2104 = vunpack.c.l.b16 %v1572
      %v2105 = vunpack.c.l.b16 %v1573
      %v2106 = vunpack.c.l.b16 %v1574
      %v2107 = vunpack.c.l.b16 %v1575
      %v2108 = vunpack.c.l.b16 %v1576
      %v2109 = vunpack.c.l.b16 %v1577
      %v2110 = vunpack.c.l.b16 %v1578
      %v2111 = vunpack.c.l.b16 %v1579
      %v2112 = vunpack.c.l.b16 %v1580
      %v2113 = vunpack.c.l.b16 %v1581
      %v2114 = vunpack.c.l.b16 %v1582
      %v2115 = vunpack.c.l.b16 %v1583
      %v2116 = vunpack.c.l.b16 %v1584
      %v2117 = vunpack.c.l.b16 %v1585
      %v2118 = vunpack.c.l.b16 %v1586
      %v2119 = vunpack.c.l.b16 %v1587
      %v2120 = vunpack.c.l.b16 %v1588
      %v2121 = vunpack.c.l.b16 %v1589
      %v2122 = vunpack.c.l.b16 %v1590
      %v2123 = vunpack.c.l.b16 %v1591
      %v2124 = vunpack.c.l.b16 %v1592
      %v2125 = vunpack.c.l.b16 %v1593
      %v2126 = vunpack.c.l.b16 %v1594
      %v2127 = vunpack.c.l.b16 %v1595
      %v2128 = vunpack.c.l.b16 %v1596
      %v2129 = vunpack.c.l.b16 %v1597
      %v2130 = vunpack.c.l.b16 %v1598
      %v2131 = vunpack.c.l.b16 %v1599
      %v2132 = vunpack.c.l.b16 %v1600
      %v2133 = vunpack.c.l.b16 %v1601
      %v2134 = vunpack.c.l.b16 %v1602
      %v2135 = vunpack.c.l.b16 %v1603
      %v2136 = vunpack.c.l.b16 %v1604
      %v2137 = vunpack.c.l.b16 %v1605
      %v2138 = vunpack.c.l.b16 %v1606
      %v2139 = vunpack.c.l.b16 %v1607
      %v2140 = vunpack.c.l.b16 %v1608
      %v2141 = vunpack.c.l.b16 %v1609
      %v2142 = vunpack.c.l.b16 %v1610
      %v2143 = vunpack.c.l.b16 %v1611
      %v2144 = vunpack.c.l.b16 %v1612
      %v2145 = vunpack.c.l.b16 %v1613
      %v2146 = vunpack.c.l.b16 %v1614
      %v2147 = vunpack.c.l.b16 %v1615
      %v2148 = vunpack.c.l.b16 %v1616
      %v2149 = vunpack.c.l.b16 %v1617
      %v2150 = vunpack.c.l.b16 %v1618
      %v2151 = vunpack.c.l.b16 %v1619
      %v2152 = vunpack.c.l.b16 %v1620
      %v2153 = vunpack.c.l.b16 %v1621
      %v2154 = vunpack.c.l.b16 %v1622
      %v2155 = vunpack.c.l.b16 %v1623
      %v2156 = vunpack.c.l.b16 %v1624
      %v2157 = vunpack.c.l.b16 %v1625
      %v2158 = vunpack.c.l.b16 %v1626
      %v2159 = vunpack.c.l.b16 %v1627
      %v2160 = vunpack.c.l.b16 %v1628
      %v2161 = vunpack.c.l.b16 %v1629
      %v2162 = vunpack.c.l.b16 %v1630
      %v2163 = vunpack.c.l.b16 %v1631
      %v2164 = vunpack.c.l.b16 %v1632
      %v2165 = vunpack.c.l.b16 %v1633
      %v2166 = vunpack.c.l.b16 %v1634
      %v2167 = vunpack.c.l.b16 %v1635
      %v2168 = vunpack.c.l.b16 %v1636
      %v2169 = vunpack.c.l.b16 %v1637
      %v2170 = vunpack.c.l.b16 %v1638
      %v2171 = vunpack.c.l.b16 %v1639
      %v2172 = vunpack.c.l.b16 %v1640
      %v2173 = vunpack.c.l.b16 %v1641
      %v2174 = vunpack.c.l.b16 %v1642
      %v2175 = vunpack.c.l.b16 %v1643
      %v2176 = vunpack.c.l.b16 %v1644
      %v2177 = vunpack.c.l.b16 %v1645
      %v2178 = vunpack.c.l.b16 %v1646
      %v2179 = vunpack.c.l.b16 %v1647
      %v2180 = vunpack.c.l.b16 %v1648
      %v2181 = vunpack.c.l.b16 %v1649
      %v2182 = vunpack.c.l.b16 %v1650
      %v2183 = vunpack.c.l.b16 %v1651
      %v2184 = vunpack.c.l.b16 %v1652
      %v2185 = vunpack.c.l.b16 %v1653
      %v2186 = vunpack.c.l.b16 %v1654
      %v2187 = vunpack.c.l.b16 %v1655
      %v2188 = vunpack.c.l.b16 %v1656
      %v2189 = vunpack.c.l.b16 %v1657
      %v2190 = vunpack.c.l.b16 %v1658
      %v2191 = vunpack.c.l.b16 %v1659
      %v2192 = vunpack.c.l.b16 %v1660
      %v2193 = vunpack.c.l.b16 %v1661
      %v2194 = vunpack.c.l.b16 %v1662
      %v2195 = vunpack.c.l.b16 %v1663
      %v2196 = vunpack.c.l.b16 %v1664
      %v2197 = vunpack.c.l.b16 %v1665
      %v2198 = vunpack.c.l.b16 %v1666
      %v2199 = vunpack.c.l.b16 %v1667
      %v2200 = vunpack.c.l.b16 %v1668
      %v2201 = vunpack.c.l.b16 %v1669
      %v2202 = vunpack.c.l.b16 %v1670
      %v2203 = vunpack.c.l.b16 %v1671
      %v2204 = vunpack.c.l.b16 %v1672
      %v2205 = vunpack.c.l.b16 %v1673
      %v2206 = vunpack.c.l.b16 %v1674
      %v2207 = vunpack.c.l.b16 %v1675
      %v2208 = vunpack.c.l.b16 %v1676
      %v2209 = vunpack.c.l.b16 %v1677
      %v2210 = vunpack.c.l.b16 %v1678
      %v2211 = vunpack.c.l.b16 %v1679
      %v2212 = vunpack.c.l.b16 %v1680
      %v2213 = vunpack.c.l.b16 %v1681
      %v2214 = vunpack.c.l.b16 %v1682
      %v2215 = vunpack.c.l.b16 %v1683
      %v2216 = vunpack.c.l.b16 %v1684
      %v2217 = vunpack.c.l.b16 %v1685
      %v2218 = vunpack.c.l.b16 %v1686
      %v2219 = vunpack.c.l.b16 %v1687
      %v2220 = vunpack.c.l.b16 %v1688
      %v2221 = vunpack.c.l.b16 %v1689
      %v2222 = vunpack.c.l.b16 %v1690
      %v2223 = vunpack.c.l.b16 %v1691
      %v2224 = vunpack.c.l.b16 %v1692
      %v2225 = vunpack.c.l.b16 %v1693
      %v2226 = vunpack.c.l.b16 %v1694
      %v2227 = vunpack.c.l.b16 %v1695
      %v2228 = vunpack.c.l.b16 %v1696
      %v2229 = vunpack.c.l.b16 %v1697
      %v2230 = vunpack.c.l.b16 %v1698
      %v2231 = vunpack.c.l.b16 %v1699
      %v2232 = vunpack.c.l.b16 %v1700
      %v2233 = vunpack.c.l.b16 %v1701
      %v2234 = vunpack.c.l.b16 %v1702
      %v2235 = vunpack.c.l.b16 %v1703
      %v2236 = vunpack.c.l.b16 %v1704
      %v2237 = vunpack.c.l.b16 %v1705
      %v2238 = vunpack.c.l.b16 %v1706
      %v2239 = vunpack.c.l.b16 %v1707
      %v2240 = vunpack.c.l.b16 %v1708
      %v2241 = vunpack.c.l.b16 %v1709
      %v2242 = vunpack.c.l.b16 %v1710
      %v2243 = vunpack.c.l.b16 %v1711
      %v2244 = vunpack.c.l.b16 %v1712
      %v2245 = vunpack.c.l.b16 %v1713
      %v2246 = vunpack.c.l.b16 %v1714
      %v2247 = vunpack.c.l.b16 %v1715
      %v2248 = vunpack.c.l.b16 %v1716
      %v2249 = vunpack.c.l.b16 %v1717
      %v2250 = vunpack.c.l.b16 %v1718
      %v2251 = vunpack.c.l.b16 %v1719
      %v2252 = vunpack.c.l.b16 %v1720
      %v2253 = vunpack.c.l.b16 %v1721
      %v2254 = vunpack.c.l.b16 %v1722
      %v2255 = vunpack.c.l.b16 %v1723
      %v2256 = vunpack.c.l.b16 %v1724
      %v2257 = vunpack.c.l.b16 %v1725
      %v2258 = vunpack.c.l.b16 %v1726
      %v2259 = vunpack.c.l.b16 %v1727
      %v2260 = vunpack.c.l.b16 %v1728
      %v2261 = vunpack.c.l.b16 %v1729
      %v2262 = vunpack.c.l.b16 %v1730
      %v2263 = vunpack.c.l.b16 %v1731
      %v2264 = vunpack.c.l.b16 %v1732
      %v2265 = vunpack.c.l.b16 %v1733
      %v2266 = vunpack.c.l.b16 %v1734
      %v2267 = vunpack.c.l.b16 %v1735
      %v2268 = vunpack.c.l.b16 %v1736
      %v2269 = vunpack.c.l.b16 %v1737
      %v2270 = vunpack.c.l.b16 %v1738
      %v2271 = vunpack.c.l.b16 %v1739
      %v2272 = vunpack.c.l.b16 %v1740
      %v2273 = vunpack.c.l.b16 %v1741
      %v2274 = vunpack.c.l.b16 %v1742
      %v2275 = vunpack.c.l.b16 %v1743
      %v2276 = vunpack.c.l.b16 %v1744
      %v2277 = vunpack.c.l.b16 %v1745
      %v2278 = vunpack.c.l.b16 %v1746
      %v2279 = vunpack.c.l.b16 %v1747
      %v2280 = vunpack.c.l.b16 %v1748
      %v2281 = vunpack.c.l.b16 %v1749
      %v2282 = vunpack.c.l.b16 %v1750
      %v2283 = vunpack.c.l.b16 %v1751
      %v2284 = vunpack.c.l.b16 %v1752
      %v2285 = vunpack.c.l.b16 %v1753
      %v2286 = vunpack.c.l.b16 %v1754
      %v2287 = vunpack.c.l.b16 %v1755
      %v2288 = vunpack.c.l.b16 %v1756
      %v2289 = vunpack.c.l.b16 %v1757
      %v2290 = vunpack.c.l.b16 %v1758
      %v2291 = vunpack.c.l.b16 %v1759
      %v2292 = vunpack.c.l.b16 %v1760
      %v2293 = vunpack.c.l.b16 %v1761
      %v2294 = vunpack.c.l.b16 %v1762
      %v2295 = vunpack.c.l.b16 %v1763
      %v2296 = vunpack.c.l.b16 %v1764
      %v2297 = vpack.c.b16 %v2042, %v2041
      %v2298 = vpack.c.b16 %v2044, %v2043
      %v2299 = vpack.c.b16 %v2046, %v2045
      %v2300 = vpack.c.b16 %v2048, %v2047
      %v2301 = vpack.c.b16 %v2050, %v2049
      %v2302 = vpack.c.b16 %v2052, %v2051
      %v2303 = vpack.c.b16 %v2054, %v2053
      %v2304 = vpack.c.b16 %v2056, %v2055
      %v2305 = vpack.c.b16 %v2058, %v2057
      %v2306 = vpack.c.b16 %v2060, %v2059
      %v2307 = vpack.c.b16 %v2062, %v2061
      %v2308 = vpack.c.b16 %v2064, %v2063
      %v2309 = vpack.c.b16 %v2066, %v2065
      %v2310 = vpack.c.b16 %v2068, %v2067
      %v2311 = vpack.c.b16 %v2070, %v2069
      %v2312 = vpack.c.b16 %v2072, %v2071
      %v2313 = vpack.c.b16 %v2074, %v2073
      %v2314 = vpack.c.b16 %v2076, %v2075
      %v2315 = vpack.c.b16 %v2078, %v2077
      %v2316 = vpack.c.b16 %v2080, %v2079
      %v2317 = vpack.c.b16 %v2082, %v2081
      %v2318 = vpack.c.b16 %v2084, %v2083
      %v2319 = vpack.c.b16 %v2086, %v2085
      %v2320 = vpack.c.b16 %v2088, %v2087
      %v2321 = vpack.c.b16 %v2090, %v2089
      %v2322 = vpack.c.b16 %v2092, %v2091
      %v2323 = vpack.c.b16 %v2094, %v2093
      %v2324 = vpack.c.b16 %v2096, %v2095
      %v2325 = vpack.c.b16 %v2098, %v2097
      %v2326 = vpack.c.b16 %v2100, %v2099
      %v2327 = vpack.c.b16 %v2102, %v2101
      %v2328 = vpack.c.b16 %v2104, %v2103
      %v2329 = vpack.c.b16 %v2106, %v2105
      %v2330 = vpack.c.b16 %v2108, %v2107
      %v2331 = vpack.c.b16 %v2110, %v2109
      %v2332 = vpack.c.b16 %v2112, %v2111
      %v2333 = vpack.c.b16 %v2114, %v2113
      %v2334 = vpack.c.b16 %v2116, %v2115
      %v2335 = vpack.c.b16 %v2118, %v2117
      %v2336 = vpack.c.b16 %v2120, %v2119
      %v2337 = vpack.c.b16 %v2122, %v2121
      %v2338 = vpack.c.b16 %v2124, %v2123
      %v2339 = vpack.c.b16 %v2126, %v2125
      %v2340 = vpack.c.b16 %v2128, %v2127
      %v2341 = vpack.c.b16 %v2130, %v2129
      %v2342 = vpack.c.b16 %v2132, %v2131
      %v2343 = vpack.c.b16 %v2134, %v2133
      %v2344 = vpack.c.b16 %v2136, %v2135
      %v2345 = vpack.c.b16 %v2138, %v2137
      %v2346 = vpack.c.b16 %v2140, %v2139
      %v2347 = vpack.c.b16 %v2142, %v2141
      %v2348 = vpack.c.b16 %v2144, %v2143
      %v2349 = vpack.c.b16 %v2146, %v2145
      %v2350 = vpack.c.b16 %v2148, %v2147
      %v2351 = vpack.c.b16 %v2150, %v2149
      %v2352 = vpack.c.b16 %v2152, %v2151
      %v2353 = vpack.c.b16 %v2154, %v2153
      %v2354 = vpack.c.b16 %v2156, %v2155
      %v2355 = vpack.c.b16 %v2158, %v2157
      %v2356 = vpack.c.b16 %v2160, %v2159
      %v2357 = vpack.c.b16 %v2162, %v2161
      %v2358 = vpack.c.b16 %v2164, %v2163
      %v2359 = vpack.c.b16 %v2166, %v2165
      %v2360 = vpack.c.b16 %v2168, %v2167
      %v2361 = vpack.c.b16 %v2170, %v2169
      %v2362 = vpack.c.b16 %v2172, %v2171
      %v2363 = vpack.c.b16 %v2174, %v2173
      %v2364 = vpack.c.b16 %v2176, %v2175
      %v2365 = vpack.c.b16 %v2178, %v2177
      %v2366 = vpack.c.b16 %v2180, %v2179
      %v2367 = vpack.c.b16 %v2182, %v2181
      %v2368 = vpack.c.b16 %v2184, %v2183
      %v2369 = vpack.c.b16 %v2186, %v2185
      %v2370 = vpack.c.b16 %v2188, %v2187
      %v2371 = vpack.c.b16 %v2190, %v2189
      %v2372 = vpack.c.b16 %v2192, %v2191
      %v2373 = vpack.c.b16 %v2194, %v2193
      %v2374 = vpack.c.b16 %v2196, %v2195
      %v2375 = vpack.c.b16 %v2198, %v2197
      %v2376 = vpack.c.b16 %v2200, %v2199
      %v2377 = vpack.c.b16 %v2202, %v2201
      %v2378 = vpack.c.b16 %v2204, %v2203
      %v2379 = vpack.c.b16 %v2206, %v2205
      %v2380 = vpack.c.b16 %v2208, %v2207
      %v2381 = vpack.c.b16 %v2210, %v2209
      %v2382 = vpack.c.b16 %v2212, %v2211
      %v2383 = vpack.c.b16 %v2214, %v2213
      %v2384 = vpack.c.b16 %v2216, %v2215
      %v2385 = vpack.c.b16 %v2218, %v2217
      %v2386 = vpack.c.b16 %v2220, %v2219
      %v2387 = vpack.c.b16 %v2222, %v2221
      %v2388 = vpack.c.b16 %v2224, %v2223
      %v2389 = vpack.c.b16 %v2226, %v2225
      %v2390 = vpack.c.b16 %v2228, %v2227
      %v2391 = vpack.c.b16 %v2230, %v2229
      %v2392 = vpack.c.b16 %v2232, %v2231
      %v2393 = vpack.c.b16 %v2234, %v2233
      %v2394 = vpack.c.b16 %v2236, %v2235
      %v2395 = vpack.c.b16 %v2238, %v2237
      %v2396 = vpack.c.b16 %v2240, %v2239
      %v2397 = vpack.c.b16 %v2242, %v2241
      %v2398 = vpack.c.b16 %v2244, %v2243
      %v2399 = vpack.c.b16 %v2246, %v2245
      %v2400 = vpack.c.b16 %v2248, %v2247
      %v2401 = vpack.c.b16 %v2250, %v2249
      %v2402 = vpack.c.b16 %v2252, %v2251
      %v2403 = vpack.c.b16 %v2254, %v2253
      %v2404 = vpack.c.b16 %v2256, %v2255
      %v2405 = vpack.c.b16 %v2258, %v2257
      %v2406 = vpack.c.b16 %v2260, %v2259
      %v2407 = vpack.c.b16 %v2262, %v2261
      %v2408 = vpack.c.b16 %v2264, %v2263
      %v2409 = vpack.c.b16 %v2266, %v2265
      %v2410 = vpack.c.b16 %v2268, %v2267
      %v2411 = vpack.c.b16 %v2270, %v2269
      %v2412 = vpack.c.b16 %v2272, %v2271
      %v2413 = vpack.c.b16 %v2274, %v2273
      %v2414 = vpack.c.b16 %v2276, %v2275
      %v2415 = vpack.c.b16 %v2278, %v2277
      %v2416 = vpack.c.b16 %v2280, %v2279
      %v2417 = vpack.c.b16 %v2282, %v2281
      %v2418 = vpack.c.b16 %v2284, %v2283
      %v2419 = vpack.c.b16 %v2286, %v2285
      %v2420 = vpack.c.b16 %v2288, %v2287
      %v2421 = vpack.c.b16 %v2290, %v2289
      %v2422 = vpack.c.b16 %v2292, %v2291
      %v2423 = vpack.c.b16 %v2294, %v2293
      %v2424 = vpack.c.b16 %v2296, %v2295
      %2553 = vmatpush.bf16.msra.mxu0 %v2304
      %2554 = vmatpush.bf16.msra.mxu0 %v2303
      %2555 = vmatpush.bf16.msra.mxu0 %v2302
      %2556 = vmatpush.bf16.msra.mxu0 %v2301
      %2557 = vmatpush.bf16.msra.mxu0 %v2300
      %2558 = vmatpush.bf16.msra.mxu0 %v2299
      %2559 = vmatpush.bf16.msra.mxu0 %v2298
      %2560 = vmatpush.bf16.msra.mxu0 %v2297
      %2561 = vmatmul.bf16.gmra.mxu0 %v1765
      %v2562 = vpop.f32.mrf.mxu0
      %v2563 = vadd.f32 %v1783, %v2562
      %v2564 = vpop.f32.mrf.mxu0
      %2565 = vdwg.mxu0
      %2566 = vmatpush.bf16.msra.mxu0 %v2312
      %2567 = vmatpush.bf16.msra.mxu0 %v2311
      %2568 = vmatpush.bf16.msra.mxu0 %v2310
      %2569 = vmatpush.bf16.msra.mxu0 %v2309
      %2570 = vmatpush.bf16.msra.mxu0 %v2308
      %2571 = vmatpush.bf16.msra.mxu0 %v2307
      %2572 = vmatpush.bf16.msra.mxu0 %v2306
      %2573 = vmatpush.bf16.msra.mxu0 %v2305
      %2574 = vmatmul.bf16.gmra.mxu0 %v1766
      %v2575 = vpop.f32.mrf.mxu0
      %v2576 = vadd.f32 %v2563, %v2575
      %v2577 = vpop.f32.mrf.mxu0
      %2578 = vdwg.mxu0
      %2579 = vmatpush.bf16.msra.mxu0 %v2320
      %2580 = vmatpush.bf16.msra.mxu0 %v2319
      %2581 = vmatpush.bf16.msra.mxu0 %v2318
      %2582 = vmatpush.bf16.msra.mxu0 %v2317
      %2583 = vmatpush.bf16.msra.mxu0 %v2316
      %2584 = vmatpush.bf16.msra.mxu0 %v2315
      %2585 = vmatpush.bf16.msra.mxu0 %v2314
      %2586 = vmatpush.bf16.msra.mxu0 %v2313
      %2587 = vmatmul.bf16.gmra.mxu0 %v1767
      %v2588 = vpop.f32.mrf.mxu0
      %v2589 = vadd.f32 %v2576, %v2588
      %v2590 = vpop.f32.mrf.mxu0
      %2591 = vdwg.mxu0
      %2592 = vmatpush.bf16.msra.mxu0 %v2328
      %2593 = vmatpush.bf16.msra.mxu0 %v2327
      %2594 = vmatpush.bf16.msra.mxu0 %v2326
      %2595 = vmatpush.bf16.msra.mxu0 %v2325
      %2596 = vmatpush.bf16.msra.mxu0 %v2324
      %2597 = vmatpush.bf16.msra.mxu0 %v2323
      %2598 = vmatpush.bf16.msra.mxu0 %v2322
      %2599 = vmatpush.bf16.msra.mxu0 %v2321
      %2600 = vmatmul.bf16.gmra.mxu0 %v1768
      %v2601 = vpop.f32.mrf.mxu0
      %v2602 = vadd.f32 %v2589, %v2601
      %v2603 = vpop.f32.mrf.mxu0
      %2604 = vdwg.mxu0
      %2605 = vmatpush.bf16.msra.mxu0 %v2336
      %2606 = vmatpush.bf16.msra.mxu0 %v2335
      %2607 = vmatpush.bf16.msra.mxu0 %v2334
      %2608 = vmatpush.bf16.msra.mxu0 %v2333
      %2609 = vmatpush.bf16.msra.mxu0 %v2332
      %2610 = vmatpush.bf16.msra.mxu0 %v2331
      %2611 = vmatpush.bf16.msra.mxu0 %v2330
      %2612 = vmatpush.bf16.msra.mxu0 %v2329
      %2613 = vmatmul.bf16.gmra.mxu0 %v1769
      %v2614 = vpop.f32.mrf.mxu0
      %v2615 = vadd.f32 %v2602, %v2614
      %v2616 = vpop.f32.mrf.mxu0
      %2617 = vdwg.mxu0
      %2618 = vmatpush.bf16.msra.mxu0 %v2344
      %2619 = vmatpush.bf16.msra.mxu0 %v2343
      %2620 = vmatpush.bf16.msra.mxu0 %v2342
      %2621 = vmatpush.bf16.msra.mxu0 %v2341
      %2622 = vmatpush.bf16.msra.mxu0 %v2340
      %2623 = vmatpush.bf16.msra.mxu0 %v2339
      %2624 = vmatpush.bf16.msra.mxu0 %v2338
      %2625 = vmatpush.bf16.msra.mxu0 %v2337
      %2626 = vmatmul.bf16.gmra.mxu0 %v1770
      %v2627 = vpop.f32.mrf.mxu0
      %v2628 = vadd.f32 %v2615, %v2627
      %v2629 = vpop.f32.mrf.mxu0
      %2630 = vdwg.mxu0
      %2631 = vmatpush.bf16.msra.mxu0 %v2352
      %2632 = vmatpush.bf16.msra.mxu0 %v2351
      %2633 = vmatpush.bf16.msra.mxu0 %v2350
      %2634 = vmatpush.bf16.msra.mxu0 %v2349
      %2635 = vmatpush.bf16.msra.mxu0 %v2348
      %2636 = vmatpush.bf16.msra.mxu0 %v2347
      %2637 = vmatpush.bf16.msra.mxu0 %v2346
      %2638 = vmatpush.bf16.msra.mxu0 %v2345
      %2639 = vmatmul.bf16.gmra.mxu0 %v1771
      %v2640 = vpop.f32.mrf.mxu0
      %v2641 = vadd.f32 %v2628, %v2640
      %v2642 = vpop.f32.mrf.mxu0
      %2643 = vdwg.mxu0
      %2644 = vmatpush.bf16.msra.mxu0 %v2360
      %2645 = vmatpush.bf16.msra.mxu0 %v2359
      %2646 = vmatpush.bf16.msra.mxu0 %v2358
      %2647 = vmatpush.bf16.msra.mxu0 %v2357
      %2648 = vmatpush.bf16.msra.mxu0 %v2356
      %2649 = vmatpush.bf16.msra.mxu0 %v2355
      %2650 = vmatpush.bf16.msra.mxu0 %v2354
      %2651 = vmatpush.bf16.msra.mxu0 %v2353
      %2652 = vmatmul.bf16.gmra.mxu0 %v1772
      %v2653 = vpop.f32.mrf.mxu0
      %v2654 = vadd.f32 %v2641, %v2653
      %v2655 = vpop.f32.mrf.mxu0
      %2656 = vdwg.mxu0
      %2657 = vmatpush.bf16.msra.mxu0 %v2368
      %2658 = vmatpush.bf16.msra.mxu0 %v2367
      %2659 = vmatpush.bf16.msra.mxu0 %v2366
      %2660 = vmatpush.bf16.msra.mxu0 %v2365
      %2661 = vmatpush.bf16.msra.mxu0 %v2364
      %2662 = vmatpush.bf16.msra.mxu0 %v2363
      %2663 = vmatpush.bf16.msra.mxu0 %v2362
      %2664 = vmatpush.bf16.msra.mxu0 %v2361
      %2665 = vmatmul.bf16.gmra.mxu0 %v1773
      %v2666 = vpop.f32.mrf.mxu0
      %v2667 = vadd.f32 %v2654, %v2666
      %v2668 = vpop.f32.mrf.mxu0
      %2669 = vdwg.mxu0
      %2670 = vmatpush.bf16.msra.mxu0 %v2376
      %2671 = vmatpush.bf16.msra.mxu0 %v2375
      %2672 = vmatpush.bf16.msra.mxu0 %v2374
      %2673 = vmatpush.bf16.msra.mxu0 %v2373
      %2674 = vmatpush.bf16.msra.mxu0 %v2372
      %2675 = vmatpush.bf16.msra.mxu0 %v2371
      %2676 = vmatpush.bf16.msra.mxu0 %v2370
      %2677 = vmatpush.bf16.msra.mxu0 %v2369
      %2678 = vmatmul.bf16.gmra.mxu0 %v1774
      %v2679 = vpop.f32.mrf.mxu0
      %v2680 = vadd.f32 %v2667, %v2679
      %v2681 = vpop.f32.mrf.mxu0
      %2682 = vdwg.mxu0
      %2683 = vmatpush.bf16.msra.mxu0 %v2384
      %2684 = vmatpush.bf16.msra.mxu0 %v2383
      %2685 = vmatpush.bf16.msra.mxu0 %v2382
      %2686 = vmatpush.bf16.msra.mxu0 %v2381
      %2687 = vmatpush.bf16.msra.mxu0 %v2380
      %2688 = vmatpush.bf16.msra.mxu0 %v2379
      %2689 = vmatpush.bf16.msra.mxu0 %v2378
      %2690 = vmatpush.bf16.msra.mxu0 %v2377
      %2691 = vmatmul.bf16.gmra.mxu0 %v1775
      %v2692 = vpop.f32.mrf.mxu0
      %v2693 = vadd.f32 %v2680, %v2692
      %v2694 = vpop.f32.mrf.mxu0
      %2695 = vdwg.mxu0
      %2696 = vmatpush.bf16.msra.mxu0 %v2392
      %2697 = vmatpush.bf16.msra.mxu0 %v2391
      %2698 = vmatpush.bf16.msra.mxu0 %v2390
      %2699 = vmatpush.bf16.msra.mxu0 %v2389
      %2700 = vmatpush.bf16.msra.mxu0 %v2388
      %2701 = vmatpush.bf16.msra.mxu0 %v2387
      %2702 = vmatpush.bf16.msra.mxu0 %v2386
      %2703 = vmatpush.bf16.msra.mxu0 %v2385
      %2704 = vmatmul.bf16.gmra.mxu0 %v1776
      %v2705 = vpop.f32.mrf.mxu0
      %v2706 = vadd.f32 %v2693, %v2705
      %v2707 = vpop.f32.mrf.mxu0
      %2708 = vdwg.mxu0
      %2709 = vmatpush.bf16.msra.mxu0 %v2400
      %2710 = vmatpush.bf16.msra.mxu0 %v2399
      %2711 = vmatpush.bf16.msra.mxu0 %v2398
      %2712 = vmatpush.bf16.msra.mxu0 %v2397
      %2713 = vmatpush.bf16.msra.mxu0 %v2396
      %2714 = vmatpush.bf16.msra.mxu0 %v2395
      %2715 = vmatpush.bf16.msra.mxu0 %v2394
      %2716 = vmatpush.bf16.msra.mxu0 %v2393
      %2717 = vmatmul.bf16.gmra.mxu0 %v1777
      %v2718 = vpop.f32.mrf.mxu0
      %v2719 = vadd.f32 %v2706, %v2718
      %v2720 = vpop.f32.mrf.mxu0
      %2721 = vdwg.mxu0
      %2722 = vmatpush.bf16.msra.mxu0 %v2408
      %2723 = vmatpush.bf16.msra.mxu0 %v2407
      %2724 = vmatpush.bf16.msra.mxu0 %v2406
      %2725 = vmatpush.bf16.msra.mxu0 %v2405
      %2726 = vmatpush.bf16.msra.mxu0 %v2404
      %2727 = vmatpush.bf16.msra.mxu0 %v2403
      %2728 = vmatpush.bf16.msra.mxu0 %v2402
      %2729 = vmatpush.bf16.msra.mxu0 %v2401
      %2730 = vmatmul.bf16.gmra.mxu0 %v1778
      %v2731 = vpop.f32.mrf.mxu0
      %v2732 = vadd.f32 %v2719, %v2731
      %v2733 = vpop.f32.mrf.mxu0
      %2734 = vdwg.mxu0
      %2735 = vmatpush.bf16.msra.mxu0 %v2416
      %2736 = vmatpush.bf16.msra.mxu0 %v2415
      %2737 = vmatpush.bf16.msra.mxu0 %v2414
      %2738 = vmatpush.bf16.msra.mxu0 %v2413
      %2739 = vmatpush.bf16.msra.mxu0 %v2412
      %2740 = vmatpush.bf16.msra.mxu0 %v2411
      %2741 = vmatpush.bf16.msra.mxu0 %v2410
      %2742 = vmatpush.bf16.msra.mxu0 %v2409
      %2743 = vmatmul.bf16.gmra.mxu0 %v1779
      %v2744 = vpop.f32.mrf.mxu0
      %v2745 = vadd.f32 %v2732, %v2744
      %v2746 = vpop.f32.mrf.mxu0
      %2747 = vdwg.mxu0
      %2748 = vmatpush.bf16.msra.mxu0 %v2424
      %2749 = vmatpush.bf16.msra.mxu0 %v2423
      %2750 = vmatpush.bf16.msra.mxu0 %v2422
      %2751 = vmatpush.bf16.msra.mxu0 %v2421
      %2752 = vmatpush.bf16.msra.mxu0 %v2420
      %2753 = vmatpush.bf16.msra.mxu0 %v2419
      %2754 = vmatpush.bf16.msra.mxu0 %v2418
      %2755 = vmatpush.bf16.msra.mxu0 %v2417
      %2756 = vmatmul.bf16.gmra.mxu0 %v1780
      %v2757 = vpop.f32.mrf.mxu0
      %v2758 = vadd.f32 %v2745, %v2757
      %v2759 = vpop.f32.mrf.mxu0
      %2760 = vdwg.mxu0
      %v2761 = vadd.f32 %v1052, %v2758
      %v2762 = vld [vmem:[%s624] sm:$0x1]
      %v2763 = vld [vmem:[%s627] sm:$0x1]
      %v2764 = vsel %vm658, %v2761, 0.0
      %2765 = vadd.xlane.f32.xlu0 %v2764
      %v2766 = vpop.xlane.xlu0 %2765
      %v2767 = vmul.f32 %v2766, %v1025
      %v2768 = vsub.f32 %v2761, %v2767
      %v2769 = vmul.f32 %v2768, %v2768
      %v2770 = vsel %vm658, %v2769, 0.0
      %2771 = vadd.xlane.f32.xlu0 %v2770
      %v2772 = vpop.xlane.xlu0 %2771
      %v2773 = vmul.f32 %v2772, %v1025
      %v2774 = vadd.f32 %v2773, 1e-05
      %v2775 = vrsqrt.pop %v2774
      %v2776 = vmul.f32 %v2775, %v2774
      %v2777 = vmul.f32 %v2776, %v2775
      %v2778 = vmul.f32 0.5, %v2777
      %v2779 = vsub.f32 1.5, %v2778
      %v2780 = vmul.f32 %v2775, %v2779
      %vm2781 = vweird.f32 %v2774
      %vm2782 = vweird.f32 %v2775
      %vm2783 = vmor %vm2781, %vm2782
      %v2784 = vsel %vm2783, %v2775, %v2780
      %v2785 = vmul.f32 %v2768, %v2784
      %v2787 = vperm.slane %v2762, 0
      %v2789 = vmul.f32 %v2785, %v2787
      %v2791 = vperm.slane %v2763, 0
      %v2793 = vadd.f32 %v2789, %v2791
      %2794 = vst.msk [vmem:[#allocation2] sm:$0xff] %vm658, %v2793
      %p2795 = scmp.eq.s32.totalorder %s25, 1
      // Predicated region
      $region81: #{style_transformer_forward.4} parent=75 // pred_check
        %p2796 = pneg %p2795
      $region82: #{style_transformer_forward.4} parent=75 // pred_check_branch
        %2798 = sbr.rel (%p2796) target = $region84
      $region83: #{style_transformer_forward.4} parent=75 // pred_region
        %2799 = vst.msk [vmem:[%s14] sm:$0xff] %vm658, %v2793
      $region84: #{style_transformer_forward.4} parent=75 // pred_fallthru
        _
      // Predicated region
      $region85: #{style_transformer_forward.4} parent=75 // pred_check
        %p2800 = pneg %p392
      $region86: #{style_transformer_forward.4} parent=75 // pred_check_branch
        %2802 = sbr.rel (%p2800) target = $region88
      $region87: #{style_transformer_forward.4} parent=75 // pred_region
        _
      $region88: #{style_transformer_forward.4} parent=75 // pred_fallthru
        _
      // Predicated region
      $region89: #{style_transformer_forward.4} parent=75 // pred_check
        %p2803 = pneg %p392
      $region90: #{style_transformer_forward.4} parent=75 // pred_check_branch
        %2805 = sbr.rel (%p2803) target = $region92
      $region91: #{style_transformer_forward.4} parent=75 // pred_region
        _
      $region92: #{style_transformer_forward.4} parent=75 // pred_fallthru
        _
    $region76: #{style_transformer_forward.4} parent=5 // pred_fallthru
      _
    %p2806 = scmp.le.s32.totalorder 2, %s20
    // Predicated region
    $region93: #{style_transformer_forward.4} parent=5 // pred_check
      %p2807 = pneg %p2806
    $region94: #{style_transformer_forward.4} parent=5 // pred_check_branch
      %2809 = sbr.rel (%p2807) target = $region96
    $region95: #{style_transformer_forward.4} parent=5 // pred_region
      %s2810 = ssub.s32 %s20, 2
    $region96: #{style_transformer_forward.4} parent=5 // pred_fallthru
      _
  $region6: #{style_transformer_forward.4} parent=0 // loop_footer
    %s24 = sadd.s32 1, %s20
  $region7: #{style_transformer_forward.4} parent=0 // loop_footer_branch
    %19 = sbr.rel target = $region3
  $region8: #{style_transformer_forward.4} parent=0 // loop_exit
    _

</llo_original>
